<compile_context>
chip_gen: v7x
topology: tpu7x:2x2x1
jax: 0.10.0
libtpu: 0.0.40
codegen_flags: <defaults>
</compile_context>

<pallas_src>
import math
import functools

import jax
import jax.numpy as jnp
from jax import lax
from jax.experimental import pallas as pl
from jax.experimental.pallas import tpu as pltpu


def bert_embedding_kernel(ids_smem,            # (N,) int32, scalar-prefetch (SMEM)
                          tok_hbm,             # (V, E) HBM ref (pl.ANY), native dtype
                          segs_ref,            # (TS, 1) int32 VMEM block
                          pe_ref,              # (S, E) f32, VMEM-resident (const index)
                          seg_tab_ref,         # (SEG_PAD, E) f32, resident
                          gamma_ref,           # (1, E) f32, resident
                          beta_ref,            # (1, E) f32, resident
                          out_ref,             # (TS, E) f32 output block
                          tok_buf,             # VMEM (2, TS, E) scratch, native dtype
                          sem,                 # DMA semaphores, shape (2,)
                          *, ts, num_seq_tiles, unroll, eps):
    b = pl.program_id(0)
    j = pl.program_id(1)

    slot = j % 2            # buffer holding THIS tile's gathered rows
    nslot = 1 - slot        # buffer for the NEXT tile's rows

    def issue_gather(tile_b, tile_j, dst_slot):
        base = (tile_b * num_seq_tiles + tile_j) * ts

        @pl.loop(0, ts // unroll)
        def _issue(g):
            r0 = g * unroll
            for u in range(unroll):            # partially unrolled issue loop
                r = r0 + u
                row = ids_smem[base + r]
                pltpu.make_async_copy(
                    tok_hbm.at[pl.ds(row, 1), :],
                    tok_buf.at[dst_slot, pl.ds(r, 1), :],
                    sem.at[dst_slot]).start()

    # --- 1. Prime the pipeline at the start of each batch row. ---------------
    @pl.when(j == 0)
    def _():
        issue_gather(b, 0, slot)               # slot == 0 when j == 0

    # --- 2. Prefetch the NEXT tile's rows before waiting on the current one. -
    @pl.when(j + 1 < num_seq_tiles)
    def _():
        issue_gather(b, j + 1, nslot)

    # --- 3. Overlap with the in-flight gather: segment select + positional. --
    segs = segs_ref[...]                       # (TS, 1) int32
    row0 = seg_tab_ref[0:1, :]                 # (1, E)  padding_idx=0 row
    row1 = seg_tab_ref[1:2, :]                 # (1, E)  sent_A
    row2 = seg_tab_ref[2:3, :]                 # (1, E)  sent_B
    seg_emb = jnp.where(segs == 1, row1,
                        jnp.where(segs == 2, row2, row0))   # (TS, E)
    start = pl.multiple_of(j * ts, ts)
    partial = seg_emb + pe_ref[pl.ds(start, ts), :]          # (TS, E)

    # --- 4. ONE aggregate wait for all ts row copies into this slot. ---------
    pltpu.make_async_copy(tok_hbm.at[pl.ds(0, ts), :],
                          tok_buf.at[slot],
                          sem.at[slot]).wait()

    x = tok_buf[slot].astype(jnp.float32) + partial          # (TS, E) f32

    # --- 5. Fused LayerNorm over the last axis, eps=1e-12. -------------------
    mean = jnp.mean(x, axis=-1, keepdims=True)
    xc = x - mean
    var = jnp.mean(xc * xc, axis=-1, keepdims=True)
    y = xc * lax.rsqrt(var + eps) * gamma_ref[...] + beta_ref[...]

    # TODO(synk): dropout(p=0.1) is implemented as identity (eval mode).
    out_ref[...] = y.astype(out_ref.dtype)


def make_sinusoidal_pe(max_len: int, d_model: int) -> jnp.ndarray:
    """Matches BERT-pytorch PositionalEmbedding buffer (non-learned)."""
    position = jnp.arange(max_len, dtype=jnp.float32)[:, None]                  # (L, 1)
    div_term = jnp.exp(jnp.arange(0, d_model, 2, dtype=jnp.float32)
                       * (-(math.log(10000.0) / d_model)))                      # (E/2,)
    pe = jnp.zeros((max_len, d_model), dtype=jnp.float32)
    pe = pe.at[:, 0::2].set(jnp.sin(position * div_term))
    pe = pe.at[:, 1::2].set(jnp.cos(position * div_term))
    return pe


def bert_embedding(sequence, segment_label, tok_table, seg_table, pe, gamma, beta,
                   *, eps=1e-12, tile_seq=256, gather_unroll=8):
    B, S = sequence.shape
    V, E = tok_table.shape
    SEG_PAD = seg_table.shape[0]

    ts = min(tile_seq, S)
    assert S % ts == 0, "tile_seq must divide the sequence length"
    assert ts % gather_unroll == 0, "gather_unroll must divide the tile size"
    assert V >= ts, "vocab must be >= tile size (aggregate-wait descriptor)"
    num_seq_tiles = S // ts
    N = B * S

    ids = sequence.reshape(N).astype(jnp.int32)              # scalar-prefetch -> SMEM
    segs = segment_label.reshape(N, 1).astype(jnp.int32)     # (N, 1) VMEM-tiled
    pe_s = pe[:S].astype(jnp.float32)                        # (S, E), resident once
    seg_tab = seg_table.astype(jnp.float32)
    gamma2 = gamma.reshape(1, E).astype(jnp.float32)
    beta2 = beta.reshape(1, E).astype(jnp.float32)

    kernel = functools.partial(bert_embedding_kernel, ts=ts,
                               num_seq_tiles=num_seq_tiles,
                               unroll=gather_unroll, eps=eps)

    flat_out = pl.pallas_call(
        kernel,
        out_shape=jax.ShapeDtypeStruct((N, E), jnp.float32),
        grid_spec=pltpu.PrefetchScalarGridSpec(
            num_scalar_prefetch=1,
            grid=(B, num_seq_tiles),
            in_specs=[
                pl.BlockSpec(memory_space=pl.ANY),                            # token table (HBM, native dtype)
                pl.BlockSpec((ts, 1), lambda b, j, ids: (b * num_seq_tiles + j, 0)),
                pl.BlockSpec((S, E), lambda b, j, ids: (0, 0)),               # PE: fetched once, resident
                pl.BlockSpec((SEG_PAD, E), lambda b, j, ids: (0, 0)),         # segment table
                pl.BlockSpec((1, E), lambda b, j, ids: (0, 0)),               # LN gamma
                pl.BlockSpec((1, E), lambda b, j, ids: (0, 0)),               # LN beta
            ],
            out_specs=pl.BlockSpec((ts, E), lambda b, j, ids: (b * num_seq_tiles + j, 0)),
            scratch_shapes=[
                pltpu.VMEM((2, ts, E), tok_table.dtype),   # double-buffered gathered rows
                pltpu.SemaphoreType.DMA((2,)),             # one DMA sem per slot
            ],
        ),
        compiler_params=pltpu.CompilerParams(
            dimension_semantics=("parallel", "arbitrary")),
    )(ids, tok_table, segs, pe_s, seg_tab, gamma2, beta2)

    return flat_out.reshape(B, S, E)


def reference(sequence, segment_label, tok_table, seg_table, pe, gamma, beta, eps=1e-12):
    tok = tok_table[sequence].astype(jnp.float32)  # (B, S, E)
    seg = seg_table[segment_label]                 # (B, S, E)
    pos = pe[None, : sequence.shape[1], :]         # (1, S, E)
    x = tok + pos + seg
    mean = jnp.mean(x, axis=-1, keepdims=True)
    var = jnp.mean((x - mean) ** 2, axis=-1, keepdims=True)
    return (x - mean) / jnp.sqrt(var + eps) * gamma + beta


if __name__ == "__main__":
    # Deterministic setup consistent with BERTEmbedding(vocab_size, embed_size).
    vocab_size = 1000
    embed_size = 128          # lane-aligned hidden size
    B, S = 2, 512             # grid = (2, 2) with 256-row tiles
    SEG_PAD = 8               # nn.Embedding(3, E) padded to 8 rows for sublane alignment

    key = jax.random.PRNGKey(0)
    k1, k2, k3, k4 = jax.random.split(key, 4)

    # Parameters (deterministic init). padding_idx=0 -> zero row 0.
    tok_table = jax.random.normal(k1, (vocab_size, embed_size), jnp.float32) * 0.02
    tok_table = tok_table.at[0].set(0.0)
    seg_table = jnp.zeros((SEG_PAD, embed_size), jnp.float32)
    seg_table = seg_table.at[1:3].set(
        jax.random.normal(k2, (2, embed_size), jnp.float32) * 0.02)  # rows 1,2 = sent_A/sent_B
    pe = make_sinusoidal_pe(512, embed_size)
    gamma = jnp.ones((embed_size,), jnp.float32)   # nn.LayerNorm default init
    beta = jnp.zeros((embed_size,), jnp.float32)

    # Inputs.
    sequence = jax.random.randint(k3, (B, S), 0, vocab_size, dtype=jnp.int32)
    segment_label = jax.random.randint(k4, (B, S), 0, 3, dtype=jnp.int32)

    out = bert_embedding(sequence, segment_label, tok_table, seg_table, pe,
                         gamma, beta, tile_seq=256)
    out = jax.block_until_ready(out)

    ref = reference(sequence, segment_label, tok_table, seg_table, pe, gamma, beta)
    assert out.shape == (B, S, embed_size)
    assert jnp.allclose(out, ref, atol=1e-5, rtol=1e-5), "mismatch vs reference"

    print("KERNEL_OK")
</pallas_src>

<mosaic_0001>
module attributes {stable_mosaic.version = 11 : i64} {
  func.func @bert_embedding_kernel(%arg0: i32, %arg1: i32, %arg2: memref<1024xi32, #tpu.memory_space<smem>>, %arg3: memref<1000x128xf32, #tpu.memory_space<any>>, %arg4: memref<256x1xi32, #tpu.memory_space<vmem>>, %arg5: memref<512x128xf32, #tpu.memory_space<vmem>>, %arg6: memref<8x128xf32, #tpu.memory_space<vmem>>, %arg7: memref<1x128xf32, #tpu.memory_space<vmem>>, %arg8: memref<1x128xf32, #tpu.memory_space<vmem>>, %arg9: memref<256x128xf32, #tpu.memory_space<vmem>>, %arg10: memref<2x256x128xf32, #tpu.memory_space<vmem>>, %arg11: memref<2x!tpu.dma_semaphore, #tpu.memory_space<semaphore_mem>>) attributes {dimension_semantics = [#tpu.dimension_semantics<parallel>, #tpu.dimension_semantics<arbitrary>], iteration_bounds = array<i64: 2, 2>, scalar_prefetch = 1 : i64, scratch_operands = 2 : i64, tpu.core_type = #tpu.core_type<tc>, window_params = [{}, {transform_indices = @transform_1, window_bounds = array<i64: 256, 1>}, {pipeline_mode = #tpu.pipeline_mode<synchronous>, transform_indices = @transform_2, window_bounds = array<i64: 512, 128>}, {pipeline_mode = #tpu.pipeline_mode<synchronous>, transform_indices = @transform_3, window_bounds = array<i64: 8, 128>}, {pipeline_mode = #tpu.pipeline_mode<synchronous>, transform_indices = @transform_4, window_bounds = array<i64: 1, 128>}, {pipeline_mode = #tpu.pipeline_mode<synchronous>, transform_indices = @transform_5, window_bounds = array<i64: 1, 128>}, {transform_indices = @transform_6, window_bounds = array<i64: 256, 128>}]} {
    %c2_i32 = arith.constant 2 : i32
    %c0_i32 = arith.constant 0 : i32
    %0 = arith.cmpi eq, %c2_i32, %c0_i32 : i32
    %c1_i32 = arith.constant 1 : i32
    %1 = arith.select %0, %c1_i32, %c2_i32 : i32
    %2 = arith.remsi %arg1, %1 : i32
    %c0_i32_0 = arith.constant 0 : i32
    %3 = arith.cmpi ne, %2, %c0_i32_0 : i32
    %c0_i32_1 = arith.constant 0 : i32
    %4 = arith.cmpi slt, %2, %c0_i32_1 : i32
    %c0_i32_2 = arith.constant 0 : i32
    %5 = arith.cmpi slt, %1, %c0_i32_2 : i32
    %6 = arith.xori %4, %5 : i1
    %7 = arith.andi %6, %3 : i1
    %8 = arith.addi %2, %1 : i32
    %9 = arith.select %7, %8, %2 : i32
    %c1_i32_3 = arith.constant 1 : i32
    %10 = arith.subi %c1_i32_3, %9 : i32
    %c0_i32_4 = arith.constant 0 : i32
    %11 = arith.cmpi eq, %arg1, %c0_i32_4 : i32
    %12 = arith.extui %11 : i1 to i32
    %c0_i32_5 = arith.constant 0 : i32
    %13 = arith.cmpi ne, %12, %c0_i32_5 : i32
    scf.if %13 {
      %c2_i32_33 = arith.constant 2 : i32
      %75 = arith.muli %arg0, %c2_i32_33 : i32
      %c0_i32_34 = arith.constant 0 : i32
      %76 = arith.addi %75, %c0_i32_34 : i32
      %c256_i32_35 = arith.constant 256 : i32
      %77 = arith.muli %76, %c256_i32_35 : i32
      %c0_i32_36 = arith.constant 0 : i32
      %c32_i32 = arith.constant 32 : i32
      %78 = arith.addi %c0_i32_36, %c32_i32 : i32
      %c1_i32_37 = arith.constant 1 : i32
      scf.for %arg12 = %c0_i32_36 to %78 step %c1_i32_37  : i32 {
        %c1_i32_39 = arith.constant 1 : i32
        %79 = arith.muli %arg12, %c1_i32_39 : i32
        %c0_i32_40 = arith.constant 0 : i32
        %80 = arith.addi %c0_i32_40, %79 : i32
        %c8_i32 = arith.constant 8 : i32
        %81 = arith.muli %80, %c8_i32 : i32
        %c0_i32_41 = arith.constant 0 : i32
        %82 = arith.addi %81, %c0_i32_41 : i32
        %83 = arith.addi %77, %82 : i32
        %84 = arith.index_cast %83 : i32 to index
        %85 = memref.load %arg2[%84] : memref<1024xi32, #tpu.memory_space<smem>>
        %c0_i32_42 = arith.constant 0 : i32
        %86 = tpu.memref_slice %arg3[%85, %c0_i32_42] : memref<1000x128xf32, #tpu.memory_space<any>> -> memref<1x128xf32, #tpu.memory_space<any>>
        %c0_i32_43 = arith.constant 0 : i32
        %87 = tpu.memref_slice %arg10[%9, %82, %c0_i32_43] : memref<2x256x128xf32, #tpu.memory_space<vmem>> -> memref<1x1x128xf32, #tpu.memory_space<vmem>>
        %88 = tpu.memref_squeeze %87 : memref<1x1x128xf32, #tpu.memory_space<vmem>> -> memref<1x128xf32, #tpu.memory_space<vmem>>
        %89 = tpu.memref_slice %arg11[%9] : memref<2x!tpu.dma_semaphore, #tpu.memory_space<semaphore_mem>> -> memref<1x!tpu.dma_semaphore, #tpu.memory_space<semaphore_mem>>
        %90 = tpu.memref_squeeze %89 : memref<1x!tpu.dma_semaphore, #tpu.memory_space<semaphore_mem>> -> memref<!tpu.dma_semaphore, #tpu.memory_space<semaphore_mem>>
        tpu.enqueue_dma source(%86 : memref<1x128xf32, #tpu.memory_space<any>>) target(%88 : memref<1x128xf32, #tpu.memory_space<vmem>>) target_semaphore(%90 : memref<!tpu.dma_semaphore, #tpu.memory_space<semaphore_mem>>)
        %c1_i32_44 = arith.constant 1 : i32
        %91 = arith.addi %81, %c1_i32_44 : i32
        %92 = arith.addi %77, %91 : i32
        %93 = arith.index_cast %92 : i32 to index
        %94 = memref.load %arg2[%93] : memref<1024xi32, #tpu.memory_space<smem>>
        %c0_i32_45 = arith.constant 0 : i32
        %95 = tpu.memref_slice %arg3[%94, %c0_i32_45] : memref<1000x128xf32, #tpu.memory_space<any>> -> memref<1x128xf32, #tpu.memory_space<any>>
        %c0_i32_46 = arith.constant 0 : i32
        %96 = tpu.memref_slice %arg10[%9, %91, %c0_i32_46] : memref<2x256x128xf32, #tpu.memory_space<vmem>> -> memref<1x1x128xf32, #tpu.memory_space<vmem>>
        %97 = tpu.memref_squeeze %96 : memref<1x1x128xf32, #tpu.memory_space<vmem>> -> memref<1x128xf32, #tpu.memory_space<vmem>>
        %98 = tpu.memref_slice %arg11[%9] : memref<2x!tpu.dma_semaphore, #tpu.memory_space<semaphore_mem>> -> memref<1x!tpu.dma_semaphore, #tpu.memory_space<semaphore_mem>>
        %99 = tpu.memref_squeeze %98 : memref<1x!tpu.dma_semaphore, #tpu.memory_space<semaphore_mem>> -> memref<!tpu.dma_semaphore, #tpu.memory_space<semaphore_mem>>
        tpu.enqueue_dma source(%95 : memref<1x128xf32, #tpu.memory_space<any>>) target(%97 : memref<1x128xf32, #tpu.memory_space<vmem>>) target_semaphore(%99 : memref<!tpu.dma_semaphore, #tpu.memory_space<semaphore_mem>>)
        %c2_i32_47 = arith.constant 2 : i32
        %100 = arith.addi %81, %c2_i32_47 : i32
        %101 = arith.addi %77, %100 : i32
        %102 = arith.index_cast %101 : i32 to index
        %103 = memref.load %arg2[%102] : memref<1024xi32, #tpu.memory_space<smem>>
        %c0_i32_48 = arith.constant 0 : i32
        %104 = tpu.memref_slice %arg3[%103, %c0_i32_48] : memref<1000x128xf32, #tpu.memory_space<any>> -> memref<1x128xf32, #tpu.memory_space<any>>
        %c0_i32_49 = arith.constant 0 : i32
        %105 = tpu.memref_slice %arg10[%9, %100, %c0_i32_49] : memref<2x256x128xf32, #tpu.memory_space<vmem>> -> memref<1x1x128xf32, #tpu.memory_space<vmem>>
        %106 = tpu.memref_squeeze %105 : memref<1x1x128xf32, #tpu.memory_space<vmem>> -> memref<1x128xf32, #tpu.memory_space<vmem>>
        %107 = tpu.memref_slice %arg11[%9] : memref<2x!tpu.dma_semaphore, #tpu.memory_space<semaphore_mem>> -> memref<1x!tpu.dma_semaphore, #tpu.memory_space<semaphore_mem>>
        %108 = tpu.memref_squeeze %107 : memref<1x!tpu.dma_semaphore, #tpu.memory_space<semaphore_mem>> -> memref<!tpu.dma_semaphore, #tpu.memory_space<semaphore_mem>>
        tpu.enqueue_dma source(%104 : memref<1x128xf32, #tpu.memory_space<any>>) target(%106 : memref<1x128xf32, #tpu.memory_space<vmem>>) target_semaphore(%108 : memref<!tpu.dma_semaphore, #tpu.memory_space<semaphore_mem>>)
        %c3_i32 = arith.constant 3 : i32
        %109 = arith.addi %81, %c3_i32 : i32
        %110 = arith.addi %77, %109 : i32
        %111 = arith.index_cast %110 : i32 to index
        %112 = memref.load %arg2[%111] : memref<1024xi32, #tpu.memory_space<smem>>
        %c0_i32_50 = arith.constant 0 : i32
        %113 = tpu.memref_slice %arg3[%112, %c0_i32_50] : memref<1000x128xf32, #tpu.memory_space<any>> -> memref<1x128xf32, #tpu.memory_space<any>>
        %c0_i32_51 = arith.constant 0 : i32
        %114 = tpu.memref_slice %arg10[%9, %109, %c0_i32_51] : memref<2x256x128xf32, #tpu.memory_space<vmem>> -> memref<1x1x128xf32, #tpu.memory_space<vmem>>
        %115 = tpu.memref_squeeze %114 : memref<1x1x128xf32, #tpu.memory_space<vmem>> -> memref<1x128xf32, #tpu.memory_space<vmem>>
        %116 = tpu.memref_slice %arg11[%9] : memref<2x!tpu.dma_semaphore, #tpu.memory_space<semaphore_mem>> -> memref<1x!tpu.dma_semaphore, #tpu.memory_space<semaphore_mem>>
        %117 = tpu.memref_squeeze %116 : memref<1x!tpu.dma_semaphore, #tpu.memory_space<semaphore_mem>> -> memref<!tpu.dma_semaphore, #tpu.memory_space<semaphore_mem>>
        tpu.enqueue_dma source(%113 : memref<1x128xf32, #tpu.memory_space<any>>) target(%115 : memref<1x128xf32, #tpu.memory_space<vmem>>) target_semaphore(%117 : memref<!tpu.dma_semaphore, #tpu.memory_space<semaphore_mem>>)
        %c4_i32 = arith.constant 4 : i32
        %118 = arith.addi %81, %c4_i32 : i32
        %119 = arith.addi %77, %118 : i32
        %120 = arith.index_cast %119 : i32 to index
        %121 = memref.load %arg2[%120] : memref<1024xi32, #tpu.memory_space<smem>>
        %c0_i32_52 = arith.constant 0 : i32
        %122 = tpu.memref_slice %arg3[%121, %c0_i32_52] : memref<1000x128xf32, #tpu.memory_space<any>> -> memref<1x128xf32, #tpu.memory_space<any>>
        %c0_i32_53 = arith.constant 0 : i32
        %123 = tpu.memref_slice %arg10[%9, %118, %c0_i32_53] : memref<2x256x128xf32, #tpu.memory_space<vmem>> -> memref<1x1x128xf32, #tpu.memory_space<vmem>>
        %124 = tpu.memref_squeeze %123 : memref<1x1x128xf32, #tpu.memory_space<vmem>> -> memref<1x128xf32, #tpu.memory_space<vmem>>
        %125 = tpu.memref_slice %arg11[%9] : memref<2x!tpu.dma_semaphore, #tpu.memory_space<semaphore_mem>> -> memref<1x!tpu.dma_semaphore, #tpu.memory_space<semaphore_mem>>
        %126 = tpu.memref_squeeze %125 : memref<1x!tpu.dma_semaphore, #tpu.memory_space<semaphore_mem>> -> memref<!tpu.dma_semaphore, #tpu.memory_space<semaphore_mem>>
        tpu.enqueue_dma source(%122 : memref<1x128xf32, #tpu.memory_space<any>>) target(%124 : memref<1x128xf32, #tpu.memory_space<vmem>>) target_semaphore(%126 : memref<!tpu.dma_semaphore, #tpu.memory_space<semaphore_mem>>)
        %c5_i32 = arith.constant 5 : i32
        %127 = arith.addi %81, %c5_i32 : i32
        %128 = arith.addi %77, %127 : i32
        %129 = arith.index_cast %128 : i32 to index
        %130 = memref.load %arg2[%129] : memref<1024xi32, #tpu.memory_space<smem>>
        %c0_i32_54 = arith.constant 0 : i32
        %131 = tpu.memref_slice %arg3[%130, %c0_i32_54] : memref<1000x128xf32, #tpu.memory_space<any>> -> memref<1x128xf32, #tpu.memory_space<any>>
        %c0_i32_55 = arith.constant 0 : i32
        %132 = tpu.memref_slice %arg10[%9, %127, %c0_i32_55] : memref<2x256x128xf32, #tpu.memory_space<vmem>> -> memref<1x1x128xf32, #tpu.memory_space<vmem>>
        %133 = tpu.memref_squeeze %132 : memref<1x1x128xf32, #tpu.memory_space<vmem>> -> memref<1x128xf32, #tpu.memory_space<vmem>>
        %134 = tpu.memref_slice %arg11[%9] : memref<2x!tpu.dma_semaphore, #tpu.memory_space<semaphore_mem>> -> memref<1x!tpu.dma_semaphore, #tpu.memory_space<semaphore_mem>>
        %135 = tpu.memref_squeeze %134 : memref<1x!tpu.dma_semaphore, #tpu.memory_space<semaphore_mem>> -> memref<!tpu.dma_semaphore, #tpu.memory_space<semaphore_mem>>
        tpu.enqueue_dma source(%131 : memref<1x128xf32, #tpu.memory_space<any>>) target(%133 : memref<1x128xf32, #tpu.memory_space<vmem>>) target_semaphore(%135 : memref<!tpu.dma_semaphore, #tpu.memory_space<semaphore_mem>>)
        %c6_i32 = arith.constant 6 : i32
        %136 = arith.addi %81, %c6_i32 : i32
        %137 = arith.addi %77, %136 : i32
        %138 = arith.index_cast %137 : i32 to index
        %139 = memref.load %arg2[%138] : memref<1024xi32, #tpu.memory_space<smem>>
        %c0_i32_56 = arith.constant 0 : i32
        %140 = tpu.memref_slice %arg3[%139, %c0_i32_56] : memref<1000x128xf32, #tpu.memory_space<any>> -> memref<1x128xf32, #tpu.memory_space<any>>
        %c0_i32_57 = arith.constant 0 : i32
        %141 = tpu.memref_slice %arg10[%9, %136, %c0_i32_57] : memref<2x256x128xf32, #tpu.memory_space<vmem>> -> memref<1x1x128xf32, #tpu.memory_space<vmem>>
        %142 = tpu.memref_squeeze %141 : memref<1x1x128xf32, #tpu.memory_space<vmem>> -> memref<1x128xf32, #tpu.memory_space<vmem>>
        %143 = tpu.memref_slice %arg11[%9] : memref<2x!tpu.dma_semaphore, #tpu.memory_space<semaphore_mem>> -> memref<1x!tpu.dma_semaphore, #tpu.memory_space<semaphore_mem>>
        %144 = tpu.memref_squeeze %143 : memref<1x!tpu.dma_semaphore, #tpu.memory_space<semaphore_mem>> -> memref<!tpu.dma_semaphore, #tpu.memory_space<semaphore_mem>>
        tpu.enqueue_dma source(%140 : memref<1x128xf32, #tpu.memory_space<any>>) target(%142 : memref<1x128xf32, #tpu.memory_space<vmem>>) target_semaphore(%144 : memref<!tpu.dma_semaphore, #tpu.memory_space<semaphore_mem>>)
        %c7_i32 = arith.constant 7 : i32
        %145 = arith.addi %81, %c7_i32 : i32
        %146 = arith.addi %77, %145 : i32
        %147 = arith.index_cast %146 : i32 to index
        %148 = memref.load %arg2[%147] : memref<1024xi32, #tpu.memory_space<smem>>
        %c0_i32_58 = arith.constant 0 : i32
        %149 = tpu.memref_slice %arg3[%148, %c0_i32_58] : memref<1000x128xf32, #tpu.memory_space<any>> -> memref<1x128xf32, #tpu.memory_space<any>>
        %c0_i32_59 = arith.constant 0 : i32
        %150 = tpu.memref_slice %arg10[%9, %145, %c0_i32_59] : memref<2x256x128xf32, #tpu.memory_space<vmem>> -> memref<1x1x128xf32, #tpu.memory_space<vmem>>
        %151 = tpu.memref_squeeze %150 : memref<1x1x128xf32, #tpu.memory_space<vmem>> -> memref<1x128xf32, #tpu.memory_space<vmem>>
        %152 = tpu.memref_slice %arg11[%9] : memref<2x!tpu.dma_semaphore, #tpu.memory_space<semaphore_mem>> -> memref<1x!tpu.dma_semaphore, #tpu.memory_space<semaphore_mem>>
        %153 = tpu.memref_squeeze %152 : memref<1x!tpu.dma_semaphore, #tpu.memory_space<semaphore_mem>> -> memref<!tpu.dma_semaphore, #tpu.memory_space<semaphore_mem>>
        tpu.enqueue_dma source(%149 : memref<1x128xf32, #tpu.memory_space<any>>) target(%151 : memref<1x128xf32, #tpu.memory_space<vmem>>) target_semaphore(%153 : memref<!tpu.dma_semaphore, #tpu.memory_space<semaphore_mem>>)
      }
      %c32_i32_38 = arith.constant 32 : i32
    } else {
    }
    %c1_i32_6 = arith.constant 1 : i32
    %14 = arith.addi %arg1, %c1_i32_6 : i32
    %c2_i32_7 = arith.constant 2 : i32
    %15 = arith.cmpi slt, %14, %c2_i32_7 : i32
    %16 = arith.extui %15 : i1 to i32
    %c0_i32_8 = arith.constant 0 : i32
    %17 = arith.cmpi ne, %16, %c0_i32_8 : i32
    scf.if %17 {
      %c1_i32_33 = arith.constant 1 : i32
      %75 = arith.addi %arg1, %c1_i32_33 : i32
      %c2_i32_34 = arith.constant 2 : i32
      %76 = arith.muli %arg0, %c2_i32_34 : i32
      %77 = arith.addi %76, %75 : i32
      %c256_i32_35 = arith.constant 256 : i32
      %78 = arith.muli %77, %c256_i32_35 : i32
      %c0_i32_36 = arith.constant 0 : i32
      %c32_i32 = arith.constant 32 : i32
      %79 = arith.addi %c0_i32_36, %c32_i32 : i32
      %c1_i32_37 = arith.constant 1 : i32
      scf.for %arg12 = %c0_i32_36 to %79 step %c1_i32_37  : i32 {
        %c1_i32_39 = arith.constant 1 : i32
        %80 = arith.muli %arg12, %c1_i32_39 : i32
        %c0_i32_40 = arith.constant 0 : i32
        %81 = arith.addi %c0_i32_40, %80 : i32
        %c8_i32 = arith.constant 8 : i32
        %82 = arith.muli %81, %c8_i32 : i32
        %c0_i32_41 = arith.constant 0 : i32
        %83 = arith.addi %82, %c0_i32_41 : i32
        %84 = arith.addi %78, %83 : i32
        %85 = arith.index_cast %84 : i32 to index
        %86 = memref.load %arg2[%85] : memref<1024xi32, #tpu.memory_space<smem>>
        %c0_i32_42 = arith.constant 0 : i32
        %87 = tpu.memref_slice %arg3[%86, %c0_i32_42] : memref<1000x128xf32, #tpu.memory_space<any>> -> memref<1x128xf32, #tpu.memory_space<any>>
        %c0_i32_43 = arith.constant 0 : i32
        %88 = tpu.memref_slice %arg10[%10, %83, %c0_i32_43] : memref<2x256x128xf32, #tpu.memory_space<vmem>> -> memref<1x1x128xf32, #tpu.memory_space<vmem>>
        %89 = tpu.memref_squeeze %88 : memref<1x1x128xf32, #tpu.memory_space<vmem>> -> memref<1x128xf32, #tpu.memory_space<vmem>>
        %90 = tpu.memref_slice %arg11[%10] : memref<2x!tpu.dma_semaphore, #tpu.memory_space<semaphore_mem>> -> memref<1x!tpu.dma_semaphore, #tpu.memory_space<semaphore_mem>>
        %91 = tpu.memref_squeeze %90 : memref<1x!tpu.dma_semaphore, #tpu.memory_space<semaphore_mem>> -> memref<!tpu.dma_semaphore, #tpu.memory_space<semaphore_mem>>
        tpu.enqueue_dma source(%87 : memref<1x128xf32, #tpu.memory_space<any>>) target(%89 : memref<1x128xf32, #tpu.memory_space<vmem>>) target_semaphore(%91 : memref<!tpu.dma_semaphore, #tpu.memory_space<semaphore_mem>>)
        %c1_i32_44 = arith.constant 1 : i32
        %92 = arith.addi %82, %c1_i32_44 : i32
        %93 = arith.addi %78, %92 : i32
        %94 = arith.index_cast %93 : i32 to index
        %95 = memref.load %arg2[%94] : memref<1024xi32, #tpu.memory_space<smem>>
        %c0_i32_45 = arith.constant 0 : i32
        %96 = tpu.memref_slice %arg3[%95, %c0_i32_45] : memref<1000x128xf32, #tpu.memory_space<any>> -> memref<1x128xf32, #tpu.memory_space<any>>
        %c0_i32_46 = arith.constant 0 : i32
        %97 = tpu.memref_slice %arg10[%10, %92, %c0_i32_46] : memref<2x256x128xf32, #tpu.memory_space<vmem>> -> memref<1x1x128xf32, #tpu.memory_space<vmem>>
        %98 = tpu.memref_squeeze %97 : memref<1x1x128xf32, #tpu.memory_space<vmem>> -> memref<1x128xf32, #tpu.memory_space<vmem>>
        %99 = tpu.memref_slice %arg11[%10] : memref<2x!tpu.dma_semaphore, #tpu.memory_space<semaphore_mem>> -> memref<1x!tpu.dma_semaphore, #tpu.memory_space<semaphore_mem>>
        %100 = tpu.memref_squeeze %99 : memref<1x!tpu.dma_semaphore, #tpu.memory_space<semaphore_mem>> -> memref<!tpu.dma_semaphore, #tpu.memory_space<semaphore_mem>>
        tpu.enqueue_dma source(%96 : memref<1x128xf32, #tpu.memory_space<any>>) target(%98 : memref<1x128xf32, #tpu.memory_space<vmem>>) target_semaphore(%100 : memref<!tpu.dma_semaphore, #tpu.memory_space<semaphore_mem>>)
        %c2_i32_47 = arith.constant 2 : i32
        %101 = arith.addi %82, %c2_i32_47 : i32
        %102 = arith.addi %78, %101 : i32
        %103 = arith.index_cast %102 : i32 to index
        %104 = memref.load %arg2[%103] : memref<1024xi32, #tpu.memory_space<smem>>
        %c0_i32_48 = arith.constant 0 : i32
        %105 = tpu.memref_slice %arg3[%104, %c0_i32_48] : memref<1000x128xf32, #tpu.memory_space<any>> -> memref<1x128xf32, #tpu.memory_space<any>>
        %c0_i32_49 = arith.constant 0 : i32
        %106 = tpu.memref_slice %arg10[%10, %101, %c0_i32_49] : memref<2x256x128xf32, #tpu.memory_space<vmem>> -> memref<1x1x128xf32, #tpu.memory_space<vmem>>
        %107 = tpu.memref_squeeze %106 : memref<1x1x128xf32, #tpu.memory_space<vmem>> -> memref<1x128xf32, #tpu.memory_space<vmem>>
        %108 = tpu.memref_slice %arg11[%10] : memref<2x!tpu.dma_semaphore, #tpu.memory_space<semaphore_mem>> -> memref<1x!tpu.dma_semaphore, #tpu.memory_space<semaphore_mem>>
        %109 = tpu.memref_squeeze %108 : memref<1x!tpu.dma_semaphore, #tpu.memory_space<semaphore_mem>> -> memref<!tpu.dma_semaphore, #tpu.memory_space<semaphore_mem>>
        tpu.enqueue_dma source(%105 : memref<1x128xf32, #tpu.memory_space<any>>) target(%107 : memref<1x128xf32, #tpu.memory_space<vmem>>) target_semaphore(%109 : memref<!tpu.dma_semaphore, #tpu.memory_space<semaphore_mem>>)
        %c3_i32 = arith.constant 3 : i32
        %110 = arith.addi %82, %c3_i32 : i32
        %111 = arith.addi %78, %110 : i32
        %112 = arith.index_cast %111 : i32 to index
        %113 = memref.load %arg2[%112] : memref<1024xi32, #tpu.memory_space<smem>>
        %c0_i32_50 = arith.constant 0 : i32
        %114 = tpu.memref_slice %arg3[%113, %c0_i32_50] : memref<1000x128xf32, #tpu.memory_space<any>> -> memref<1x128xf32, #tpu.memory_space<any>>
        %c0_i32_51 = arith.constant 0 : i32
        %115 = tpu.memref_slice %arg10[%10, %110, %c0_i32_51] : memref<2x256x128xf32, #tpu.memory_space<vmem>> -> memref<1x1x128xf32, #tpu.memory_space<vmem>>
        %116 = tpu.memref_squeeze %115 : memref<1x1x128xf32, #tpu.memory_space<vmem>> -> memref<1x128xf32, #tpu.memory_space<vmem>>
        %117 = tpu.memref_slice %arg11[%10] : memref<2x!tpu.dma_semaphore, #tpu.memory_space<semaphore_mem>> -> memref<1x!tpu.dma_semaphore, #tpu.memory_space<semaphore_mem>>
        %118 = tpu.memref_squeeze %117 : memref<1x!tpu.dma_semaphore, #tpu.memory_space<semaphore_mem>> -> memref<!tpu.dma_semaphore, #tpu.memory_space<semaphore_mem>>
        tpu.enqueue_dma source(%114 : memref<1x128xf32, #tpu.memory_space<any>>) target(%116 : memref<1x128xf32, #tpu.memory_space<vmem>>) target_semaphore(%118 : memref<!tpu.dma_semaphore, #tpu.memory_space<semaphore_mem>>)
        %c4_i32 = arith.constant 4 : i32
        %119 = arith.addi %82, %c4_i32 : i32
        %120 = arith.addi %78, %119 : i32
        %121 = arith.index_cast %120 : i32 to index
        %122 = memref.load %arg2[%121] : memref<1024xi32, #tpu.memory_space<smem>>
        %c0_i32_52 = arith.constant 0 : i32
        %123 = tpu.memref_slice %arg3[%122, %c0_i32_52] : memref<1000x128xf32, #tpu.memory_space<any>> -> memref<1x128xf32, #tpu.memory_space<any>>
        %c0_i32_53 = arith.constant 0 : i32
        %124 = tpu.memref_slice %arg10[%10, %119, %c0_i32_53] : memref<2x256x128xf32, #tpu.memory_space<vmem>> -> memref<1x1x128xf32, #tpu.memory_space<vmem>>
        %125 = tpu.memref_squeeze %124 : memref<1x1x128xf32, #tpu.memory_space<vmem>> -> memref<1x128xf32, #tpu.memory_space<vmem>>
        %126 = tpu.memref_slice %arg11[%10] : memref<2x!tpu.dma_semaphore, #tpu.memory_space<semaphore_mem>> -> memref<1x!tpu.dma_semaphore, #tpu.memory_space<semaphore_mem>>
        %127 = tpu.memref_squeeze %126 : memref<1x!tpu.dma_semaphore, #tpu.memory_space<semaphore_mem>> -> memref<!tpu.dma_semaphore, #tpu.memory_space<semaphore_mem>>
        tpu.enqueue_dma source(%123 : memref<1x128xf32, #tpu.memory_space<any>>) target(%125 : memref<1x128xf32, #tpu.memory_space<vmem>>) target_semaphore(%127 : memref<!tpu.dma_semaphore, #tpu.memory_space<semaphore_mem>>)
        %c5_i32 = arith.constant 5 : i32
        %128 = arith.addi %82, %c5_i32 : i32
        %129 = arith.addi %78, %128 : i32
        %130 = arith.index_cast %129 : i32 to index
        %131 = memref.load %arg2[%130] : memref<1024xi32, #tpu.memory_space<smem>>
        %c0_i32_54 = arith.constant 0 : i32
        %132 = tpu.memref_slice %arg3[%131, %c0_i32_54] : memref<1000x128xf32, #tpu.memory_space<any>> -> memref<1x128xf32, #tpu.memory_space<any>>
        %c0_i32_55 = arith.constant 0 : i32
        %133 = tpu.memref_slice %arg10[%10, %128, %c0_i32_55] : memref<2x256x128xf32, #tpu.memory_space<vmem>> -> memref<1x1x128xf32, #tpu.memory_space<vmem>>
        %134 = tpu.memref_squeeze %133 : memref<1x1x128xf32, #tpu.memory_space<vmem>> -> memref<1x128xf32, #tpu.memory_space<vmem>>
        %135 = tpu.memref_slice %arg11[%10] : memref<2x!tpu.dma_semaphore, #tpu.memory_space<semaphore_mem>> -> memref<1x!tpu.dma_semaphore, #tpu.memory_space<semaphore_mem>>
        %136 = tpu.memref_squeeze %135 : memref<1x!tpu.dma_semaphore, #tpu.memory_space<semaphore_mem>> -> memref<!tpu.dma_semaphore, #tpu.memory_space<semaphore_mem>>
        tpu.enqueue_dma source(%132 : memref<1x128xf32, #tpu.memory_space<any>>) target(%134 : memref<1x128xf32, #tpu.memory_space<vmem>>) target_semaphore(%136 : memref<!tpu.dma_semaphore, #tpu.memory_space<semaphore_mem>>)
        %c6_i32 = arith.constant 6 : i32
        %137 = arith.addi %82, %c6_i32 : i32
        %138 = arith.addi %78, %137 : i32
        %139 = arith.index_cast %138 : i32 to index
        %140 = memref.load %arg2[%139] : memref<1024xi32, #tpu.memory_space<smem>>
        %c0_i32_56 = arith.constant 0 : i32
        %141 = tpu.memref_slice %arg3[%140, %c0_i32_56] : memref<1000x128xf32, #tpu.memory_space<any>> -> memref<1x128xf32, #tpu.memory_space<any>>
        %c0_i32_57 = arith.constant 0 : i32
        %142 = tpu.memref_slice %arg10[%10, %137, %c0_i32_57] : memref<2x256x128xf32, #tpu.memory_space<vmem>> -> memref<1x1x128xf32, #tpu.memory_space<vmem>>
        %143 = tpu.memref_squeeze %142 : memref<1x1x128xf32, #tpu.memory_space<vmem>> -> memref<1x128xf32, #tpu.memory_space<vmem>>
        %144 = tpu.memref_slice %arg11[%10] : memref<2x!tpu.dma_semaphore, #tpu.memory_space<semaphore_mem>> -> memref<1x!tpu.dma_semaphore, #tpu.memory_space<semaphore_mem>>
        %145 = tpu.memref_squeeze %144 : memref<1x!tpu.dma_semaphore, #tpu.memory_space<semaphore_mem>> -> memref<!tpu.dma_semaphore, #tpu.memory_space<semaphore_mem>>
        tpu.enqueue_dma source(%141 : memref<1x128xf32, #tpu.memory_space<any>>) target(%143 : memref<1x128xf32, #tpu.memory_space<vmem>>) target_semaphore(%145 : memref<!tpu.dma_semaphore, #tpu.memory_space<semaphore_mem>>)
        %c7_i32 = arith.constant 7 : i32
        %146 = arith.addi %82, %c7_i32 : i32
        %147 = arith.addi %78, %146 : i32
        %148 = arith.index_cast %147 : i32 to index
        %149 = memref.load %arg2[%148] : memref<1024xi32, #tpu.memory_space<smem>>
        %c0_i32_58 = arith.constant 0 : i32
        %150 = tpu.memref_slice %arg3[%149, %c0_i32_58] : memref<1000x128xf32, #tpu.memory_space<any>> -> memref<1x128xf32, #tpu.memory_space<any>>
        %c0_i32_59 = arith.constant 0 : i32
        %151 = tpu.memref_slice %arg10[%10, %146, %c0_i32_59] : memref<2x256x128xf32, #tpu.memory_space<vmem>> -> memref<1x1x128xf32, #tpu.memory_space<vmem>>
        %152 = tpu.memref_squeeze %151 : memref<1x1x128xf32, #tpu.memory_space<vmem>> -> memref<1x128xf32, #tpu.memory_space<vmem>>
        %153 = tpu.memref_slice %arg11[%10] : memref<2x!tpu.dma_semaphore, #tpu.memory_space<semaphore_mem>> -> memref<1x!tpu.dma_semaphore, #tpu.memory_space<semaphore_mem>>
        %154 = tpu.memref_squeeze %153 : memref<1x!tpu.dma_semaphore, #tpu.memory_space<semaphore_mem>> -> memref<!tpu.dma_semaphore, #tpu.memory_space<semaphore_mem>>
        tpu.enqueue_dma source(%150 : memref<1x128xf32, #tpu.memory_space<any>>) target(%152 : memref<1x128xf32, #tpu.memory_space<vmem>>) target_semaphore(%154 : memref<!tpu.dma_semaphore, #tpu.memory_space<semaphore_mem>>)
      }
      %c32_i32_38 = arith.constant 32 : i32
    } else {
    }
    %c0 = arith.constant 0 : index
    %c0_9 = arith.constant 0 : index
    %18 = vector.load %arg4[%c0, %c0_9] : memref<256x1xi32, #tpu.memory_space<vmem>>, vector<256x1xi32>
    %c0_10 = arith.constant 0 : index
    %c0_11 = arith.constant 0 : index
    %19 = vector.load %arg6[%c0_10, %c0_11] : memref<8x128xf32, #tpu.memory_space<vmem>>, vector<1x128xf32>
    %c1 = arith.constant 1 : index
    %c0_12 = arith.constant 0 : index
    %20 = vector.load %arg6[%c1, %c0_12] : memref<8x128xf32, #tpu.memory_space<vmem>>, vector<1x128xf32>
    %c2 = arith.constant 2 : index
    %c0_13 = arith.constant 0 : index
    %21 = vector.load %arg6[%c2, %c0_13] : memref<8x128xf32, #tpu.memory_space<vmem>>, vector<1x128xf32>
    %c1_i32_14 = arith.constant 1 : i32
    %22 = vector.broadcast %c1_i32_14 : i32 to vector<256x1xi32>
    %23 = arith.cmpi eq, %18, %22 : vector<256x1xi32>
    %c2_i32_15 = arith.constant 2 : i32
    %24 = vector.broadcast %c2_i32_15 : i32 to vector<256x1xi32>
    %25 = arith.cmpi eq, %18, %24 : vector<256x1xi32>
    %26 = vector.shape_cast %25 : vector<256x1xi1> to vector<256x1xi1>
    %27 = vector.broadcast %26 : vector<256x1xi1> to vector<256x128xi1>
    %28 = vector.shape_cast %21 : vector<1x128xf32> to vector<1x128xf32>
    %29 = vector.broadcast %28 : vector<1x128xf32> to vector<256x128xf32>
    %30 = vector.shape_cast %19 : vector<1x128xf32> to vector<1x128xf32>
    %31 = vector.broadcast %30 : vector<1x128xf32> to vector<256x128xf32>
    %32 = arith.select %27, %29, %31 : vector<256x128xi1>, vector<256x128xf32>
    %33 = vector.shape_cast %23 : vector<256x1xi1> to vector<256x1xi1>
    %34 = vector.broadcast %33 : vector<256x1xi1> to vector<256x128xi1>
    %35 = vector.shape_cast %20 : vector<1x128xf32> to vector<1x128xf32>
    %36 = vector.broadcast %35 : vector<1x128xf32> to vector<256x128xf32>
    %37 = arith.select %34, %36, %32 : vector<256x128xi1>, vector<256x128xf32>
    %c256_i32 = arith.constant 256 : i32
    %38 = arith.muli %arg1, %c256_i32 : i32
    %39 = tpu.assume_multiple %38, 256 : i32
    %40 = arith.index_cast %39 : i32 to index
    %c0_16 = arith.constant 0 : index
    %41 = vector.load %arg5[%40, %c0_16] : memref<512x128xf32, #tpu.memory_space<vmem>>, vector<256x128xf32>
    %42 = arith.addf %37, %41 : vector<256x128xf32>
    %c0_i32_17 = arith.constant 0 : i32
    %c0_i32_18 = arith.constant 0 : i32
    %43 = tpu.memref_slice %arg3[%c0_i32_17, %c0_i32_18] : memref<1000x128xf32, #tpu.memory_space<any>> -> memref<256x128xf32, #tpu.memory_space<any>>
    %c0_i32_19 = arith.constant 0 : i32
    %c0_i32_20 = arith.constant 0 : i32
    %44 = tpu.memref_slice %arg10[%9, %c0_i32_19, %c0_i32_20] : memref<2x256x128xf32, #tpu.memory_space<vmem>> -> memref<1x256x128xf32, #tpu.memory_space<vmem>>
    %45 = tpu.memref_squeeze %44 : memref<1x256x128xf32, #tpu.memory_space<vmem>> -> memref<256x128xf32, #tpu.memory_space<vmem>>
    %46 = tpu.memref_slice %arg11[%9] : memref<2x!tpu.dma_semaphore, #tpu.memory_space<semaphore_mem>> -> memref<1x!tpu.dma_semaphore, #tpu.memory_space<semaphore_mem>>
    %47 = tpu.memref_squeeze %46 : memref<1x!tpu.dma_semaphore, #tpu.memory_space<semaphore_mem>> -> memref<!tpu.dma_semaphore, #tpu.memory_space<semaphore_mem>>
    tpu.wait_dma2 semaphore(%47 : memref<!tpu.dma_semaphore, #tpu.memory_space<semaphore_mem>>) src(%43 : memref<256x128xf32, #tpu.memory_space<any>>) dst(%45 : memref<256x128xf32, #tpu.memory_space<vmem>>)
    %48 = arith.index_cast %9 : i32 to index
    %c0_21 = arith.constant 0 : index
    %c0_22 = arith.constant 0 : index
    %49 = vector.load %arg10[%48, %c0_21, %c0_22] : memref<2x256x128xf32, #tpu.memory_space<vmem>>, vector<1x256x128xf32>
    %50 = vector.shape_cast %49 : vector<1x256x128xf32> to vector<256x128xf32>
    %51 = arith.addf %50, %42 : vector<256x128xf32>
    %cst = arith.constant dense<0.000000e+00> : vector<256xf32>
    %52 = vector.multi_reduction <add>, %51, %cst [1] : vector<256x128xf32> to vector<256xf32>
    %53 = vector.shape_cast %52 : vector<256xf32> to vector<256x1xf32>
    %cst_23 = arith.constant 1.280000e+02 : f32
    %54 = vector.broadcast %cst_23 : f32 to vector<256x1xf32>
    %55 = arith.divf %53, %54 : vector<256x1xf32>
    %56 = vector.broadcast %55 : vector<256x1xf32> to vector<256x128xf32>
    %57 = arith.subf %51, %56 : vector<256x128xf32>
    %58 = arith.mulf %57, %57 : vector<256x128xf32>
    %cst_24 = arith.constant dense<0.000000e+00> : vector<256xf32>
    %59 = vector.multi_reduction <add>, %58, %cst_24 [1] : vector<256x128xf32> to vector<256xf32>
    %60 = vector.shape_cast %59 : vector<256xf32> to vector<256x1xf32>
    %cst_25 = arith.constant 1.280000e+02 : f32
    %61 = vector.broadcast %cst_25 : f32 to vector<256x1xf32>
    %62 = arith.divf %60, %61 : vector<256x1xf32>
    %cst_26 = arith.constant 9.99999996E-13 : f32
    %63 = vector.broadcast %cst_26 : f32 to vector<256x1xf32>
    %64 = arith.addf %62, %63 : vector<256x1xf32>
    %65 = math.rsqrt %64 : vector<256x1xf32>
    %66 = vector.broadcast %65 : vector<256x1xf32> to vector<256x128xf32>
    %67 = arith.mulf %57, %66 : vector<256x128xf32>
    %c0_27 = arith.constant 0 : index
    %c0_28 = arith.constant 0 : index
    %68 = vector.load %arg7[%c0_27, %c0_28] : memref<1x128xf32, #tpu.memory_space<vmem>>, vector<1x128xf32>
    %69 = vector.broadcast %68 : vector<1x128xf32> to vector<256x128xf32>
    %70 = arith.mulf %67, %69 : vector<256x128xf32>
    %c0_29 = arith.constant 0 : index
    %c0_30 = arith.constant 0 : index
    %71 = vector.load %arg8[%c0_29, %c0_30] : memref<1x128xf32, #tpu.memory_space<vmem>>, vector<1x128xf32>
    %72 = vector.broadcast %71 : vector<1x128xf32> to vector<256x128xf32>
    %73 = arith.addf %70, %72 : vector<256x128xf32>
    %c0_31 = arith.constant 0 : index
    %c0_32 = arith.constant 0 : index
    %74 = vector.load %arg9[%c0_31, %c0_32] : memref<256x128xf32, #tpu.memory_space<vmem>>, vector<256x128xf32>
    tpu.vector_store %arg9[%c0_31, %c0_32], %73 {strides = array<i32>} : memref<256x128xf32, #tpu.memory_space<vmem>>, vector<256x128xf32>,
    return
  }
  func.func @transform_1(%arg0: i32, %arg1: i32, %arg2: memref<1024xi32, #tpu.memory_space<smem>>) -> (i32, i32) {
    %c2_i32 = arith.constant 2 : i32
    %0 = arith.muli %arg0, %c2_i32 : i32
    %1 = arith.addi %0, %arg1 : i32
    %c0_i32 = arith.constant 0 : i32
    %c0_i32_0 = arith.constant 0 : i32
    return %1, %c0_i32 : i32, i32
  }
  func.func @transform_2(%arg0: i32, %arg1: i32, %arg2: memref<1024xi32, #tpu.memory_space<smem>>) -> (i32, i32) {
    %c0_i32 = arith.constant 0 : i32
    %c0_i32_0 = arith.constant 0 : i32
    %c0_i32_1 = arith.constant 0 : i32
    return %c0_i32, %c0_i32_0 : i32, i32
  }
  func.func @transform_3(%arg0: i32, %arg1: i32, %arg2: memref<1024xi32, #tpu.memory_space<smem>>) -> (i32, i32) {
    %c0_i32 = arith.constant 0 : i32
    %c0_i32_0 = arith.constant 0 : i32
    %c0_i32_1 = arith.constant 0 : i32
    return %c0_i32, %c0_i32_0 : i32, i32
  }
  func.func @transform_4(%arg0: i32, %arg1: i32, %arg2: memref<1024xi32, #tpu.memory_space<smem>>) -> (i32, i32) {
    %c0_i32 = arith.constant 0 : i32
    %c0_i32_0 = arith.constant 0 : i32
    %c0_i32_1 = arith.constant 0 : i32
    return %c0_i32, %c0_i32_0 : i32, i32
  }
  func.func @transform_5(%arg0: i32, %arg1: i32, %arg2: memref<1024xi32, #tpu.memory_space<smem>>) -> (i32, i32) {
    %c0_i32 = arith.constant 0 : i32
    %c0_i32_0 = arith.constant 0 : i32
    %c0_i32_1 = arith.constant 0 : i32
    return %c0_i32, %c0_i32_0 : i32, i32
  }
  func.func @transform_6(%arg0: i32, %arg1: i32, %arg2: memref<1024xi32, #tpu.memory_space<smem>>) -> (i32, i32) {
    %c2_i32 = arith.constant 2 : i32
    %0 = arith.muli %arg0, %c2_i32 : i32
    %1 = arith.addi %0, %arg1 : i32
    %c0_i32 = arith.constant 0 : i32
    %c0_i32_0 = arith.constant 0 : i32
    return %1, %c0_i32 : i32, i32
  }
}

</mosaic_0001>

<llo_original>
// kernel: tpu_custom_call.1
$region0: #{tpu_custom_call.1}
  #allocation0 [shape = 'u32[]', space=smem, size = 0x4, offset = 0x4, fixed_abs, tag = 'smem constant byte address 0x4 - core index']
  #allocation1 [shape = 'u32[144,128]{1,0:T(1,128)}', space=vmem, size = 0x12000, scoped, tag = 'internal scratch']
  #allocation2 [shape = 'f32[2,256,128]{2,1,0:T(8,128)}', space=vmem, size = 0x40000, scoped, tag = 'scratch operand']
  #allocation3 [shape = 's32[2]{0}', space=sflag, size = 0x8, scoped, tag = 'scratch operand']
  #allocation4 [shape = 's32[1]{0}', space=sflag, size = 0x4, scoped, tag = 'scoped memory for tpu_custom_call.1']
  #allocation5 [shape = 'u8[4096]{0}', space=smem, size = 0x1000, scoped, tag = 'prefetched SMEM operand 0']
  #allocation10 [shape = 's32[]', space=sflag, size = 0x4, offset = 0, fixed_abs, tag = 'sflag constant byte address 0x0 - dummy sync flag']
  #allocation11 [shape = 's32[]', space=sflag, size = 0x4, offset = 0, fixed_abs, tag = 'sflag constant byte address 0x0 - dummy sync flag']
  #allocation12 [shape = 's32[]', space=sflag, size = 0x4, offset = 0, fixed_abs, tag = 'sflag constant byte address 0x0 - dummy sync flag']
  #allocation13 [shape = 's32[]', space=sflag, size = 0x4, offset = 0, fixed_abs, tag = 'sflag constant byte address 0x0 - dummy sync flag']
  #allocation14 [shape = 's32[]', space=sflag, size = 0x4, offset = 0, fixed_abs, tag = 'sflag constant byte address 0x0 - dummy sync flag']
  #allocation15 [shape = 's32[]', space=sflag, size = 0x4, offset = 0, fixed_abs, tag = 'sflag constant byte address 0x0 - dummy sync flag']
  #allocation16 [shape = 's32[]', space=sflag, size = 0x4, offset = 0, fixed_abs, tag = 'sflag constant byte address 0x0 - dummy sync flag']
  #allocation17 [shape = 's32[]', space=sflag, size = 0x4, offset = 0, fixed_abs, tag = 'sflag constant byte address 0x0 - dummy sync flag']
  #allocation18 [shape = 's32[]', space=sflag, size = 0x4, offset = 0, fixed_abs, tag = 'sflag constant byte address 0x0 - dummy sync flag']
  #allocation19 [shape = 's32[]', space=sflag, size = 0x4, offset = 0, fixed_abs, tag = 'sflag constant byte address 0x0 - dummy sync flag']
  #allocation20 [shape = 's32[]', space=sflag, size = 0x4, offset = 0, fixed_abs, tag = 'sflag constant byte address 0x0 - dummy sync flag']
  #allocation21 [shape = 's32[]', space=sflag, size = 0x4, offset = 0, fixed_abs, tag = 'sflag constant byte address 0x0 - dummy sync flag']
  #allocation22 [shape = 's32[]', space=sflag, size = 0x4, offset = 0, fixed_abs, tag = 'sflag constant byte address 0x0 - dummy sync flag']
  #allocation23 [shape = 's32[]', space=sflag, size = 0x4, offset = 0, fixed_abs, tag = 'sflag constant byte address 0x0 - dummy sync flag']
  #allocation24 [shape = 's32[]', space=sflag, size = 0x4, offset = 0, fixed_abs, tag = 'sflag constant byte address 0x0 - dummy sync flag']
  #allocation25 [shape = 's32[]', space=sflag, size = 0x4, offset = 0, fixed_abs, tag = 'sflag constant byte address 0x0 - dummy sync flag']
  %s0 = inlined_call_operand.vmem [shape: s32[1024], index: 0, kind: input, shape index: {}]
  %s1 = inlined_call_operand.vmem [shape: f32[1000,128], index: 1, kind: input, shape index: {}]
  %s2 = inlined_call_operand.vmem [shape: s32[1024,1], index: 2, kind: input, shape index: {}]
  %s3 = inlined_call_operand.hbm [shape: f32[512,128], index: 3, kind: input, shape index: {}]
  %s4 = inlined_call_operand.vmem [shape: f32[8,128], index: 4, kind: input, shape index: {}]
  %s5 = inlined_call_operand.vmem [shape: f32[1,128], index: 5, kind: input, shape index: {}]
  %s6 = inlined_call_operand.vmem [shape: f32[1,128], index: 6, kind: input, shape index: {}]
  %s7 = inlined_call_operand.hbm [shape: f32[1024,128], index: 7, kind: output, shape index: {}]
  %s8 = sld [smem:[#allocation0]]
  $region559: #{tpu_custom_call.1} parent=0
    _
  %s10 = ssub.s32 1, %s8
  %s11 = scalar_select 0, %s10, %s8
  %s12 = sshll.u32 %s0, 4
  %s13 = int_to_ptr.vmem [resolvable:$true] %s12
  %15 = dma.vmem_to_smem %s13, 128, [#allocation5], [#allocation4]
  %16 = dma.done [#allocation4], 128
  %17 = sfence
  $region1: #{tpu_custom_call.1} parent=0
    #allocation6 [shape = 'u8[262144]{0}', space=vmem, size = 0x40000, scoped, tag = 'input window, operand 3, single buffered']
    #allocation7 [shape = 's32[2]{0}', space=sflag, size = 0x8, scoped, tag = 'scoped memory for tpu_custom_call.1']
    #allocation8 [shape = 's32[2]{0}', space=sflag, size = 0x8, scoped, tag = 'scoped memory for tpu_custom_call.1']
    #allocation9 [shape = 'u8[262144]{0}', space=vmem, size = 0x40000, scoped, tag = 'output window, operand 0']
    %18 = vsyncpa [#allocation7], 0
    %19 = vsyncpa [#allocation8], 0
    %s20 = scalar_lea.sflag [#allocation8], 1
    %21 = vsyncpa %s20, 0
    loop: start=0, step=1, limit=6
    $region2: #{tpu_custom_call.1} parent=1 // loop_pre_header
      _
    $region3: #{tpu_custom_call.1} parent=1 // loop_header
      %s23 = sphi 0, %s27
      %p24 = scmp.ge.s32.totalorder %s23, 6
      %s30 = sphi 0, %s42
      %s31 = sphi 0, %s38
      %s32 = sphi 0, %s30
      %s33 = sphi 0, %s31
      %s34 = sphi 0, %s32
      %s35 = sphi 0, %s33
      %s49 = sphi 0, %s51
      %s52 = sphi 0, %s49
      %s53 = sphi 0, %s52
      %s69 = sphi 0, %s53
      %s73 = sphi 0, %s73
      %s75 = sphi 0, %s73
      %s76 = sphi 0, %s75
      %s90 = sphi 0, %s76
      %s94 = sphi 0, %s94
      %s96 = sphi 0, %s94
      %s97 = sphi 0, %s96
      %s111 = sphi 0, %s97
      %s115 = sphi 0, %s115
      %s117 = sphi 0, %s115
      %s118 = sphi 0, %s117
      %s132 = sphi 0, %s118
      %s136 = sphi 0, %s136
      %s138 = sphi 0, %s136
      %s139 = sphi 0, %s138
      %s153 = sphi 0, %s139
      %s163 = sphi 0, %s165
      %s166 = sphi 0, %s163
      %s167 = sphi 0, %s166
      %s183 = sphi 0, %s167
    $region4: #{tpu_custom_call.1} parent=1 // loop_header_branch
      %26 = sbr.rel (%p24) target = $region8
    $region5: #{tpu_custom_call.1} parent=1 // loop_body
      %s28 = ssub.s32 %s23, 1
      %s29 = ssub.s32 %s23, 2
      %s36 = sadd.s32 1, %s31
      %p37 = scmp.ge.s32.totalorder %s36, 2
      %s38 = scalar_select %p37, 0, %s36
      %s39 = sadd.s32 1, %s30
      %s40 = scalar_select %p37, %s39, %s30
      %p41 = scmp.ge.s32.totalorder %s40, 2
      %s42 = scalar_select %p41, 0, %s40
      %s43 = smul.u32 %s30, 2
      %s44 = sadd.s32 %s43, %s31
      %s45 = smul.u32 %s42, 2
      %s46 = sadd.s32 %s45, %s38
      %s47 = ssub.s32 %s44, %s46
      %p48 = scmp.eq.s32.totalorder %s47, 0
      %s50 = sadd.s32 %s49, 1
      %s51 = scalar_select %p48, %s49, %s50
      %p54 = pneg %p48
      %p55 = scmp.eq.s32.totalorder %s23, 3
      %p56 = por %p54, %p55
      %p57 = scmp.ne.s32.totalorder %s49, %s52
      %p58 = scmp.eq.s32.totalorder %s23, 0
      %p59 = por %p57, %p58
      %p60 = scmp.ne.s32.totalorder %s49, %s52
      %p61 = scmp.eq.s32.totalorder %s28, 3
      %p62 = por %p60, %p61
      %p63 = scmp.ne.s32.totalorder %s52, %s53
      %p64 = scmp.eq.s32.totalorder %s28, 0
      %p65 = por %p63, %p64
      %p66 = scmp.ne.s32.totalorder %s52, %s53
      %p67 = scmp.eq.s32.totalorder %s29, 3
      %p68 = por %p66, %p67
      %p70 = scmp.ne.s32.totalorder %s53, %s69
      %p71 = scmp.eq.s32.totalorder %s29, 0
      %p72 = por %p70, %p71
      %s74 = sadd.s32 %s73, 1
      %p77 = scmp.eq.s32.totalorder %s23, 3
      %p78 = scmp.ne.s32.totalorder %s73, %s75
      %p79 = scmp.eq.s32.totalorder %s23, 0
      %p80 = por %p78, %p79
      %p81 = scmp.ne.s32.totalorder %s73, %s75
      %p82 = scmp.eq.s32.totalorder %s28, 3
      %p83 = por %p81, %p82
      %p84 = scmp.ne.s32.totalorder %s75, %s76
      %p85 = scmp.eq.s32.totalorder %s28, 0
      %p86 = por %p84, %p85
      %p87 = scmp.ne.s32.totalorder %s75, %s76
      %p88 = scmp.eq.s32.totalorder %s29, 3
      %p89 = por %p87, %p88
      %p91 = scmp.ne.s32.totalorder %s76, %s90
      %p92 = scmp.eq.s32.totalorder %s29, 0
      %p93 = por %p91, %p92
      %s95 = sadd.s32 %s94, 1
      %p98 = scmp.eq.s32.totalorder %s23, 3
      %p99 = scmp.ne.s32.totalorder %s94, %s96
      %p100 = scmp.eq.s32.totalorder %s23, 0
      %p101 = por %p99, %p100
      %p102 = scmp.ne.s32.totalorder %s94, %s96
      %p103 = scmp.eq.s32.totalorder %s28, 3
      %p104 = por %p102, %p103
      %p105 = scmp.ne.s32.totalorder %s96, %s97
      %p106 = scmp.eq.s32.totalorder %s28, 0
      %p107 = por %p105, %p106
      %p108 = scmp.ne.s32.totalorder %s96, %s97
      %p109 = scmp.eq.s32.totalorder %s29, 3
      %p110 = por %p108, %p109
      %p112 = scmp.ne.s32.totalorder %s97, %s111
      %p113 = scmp.eq.s32.totalorder %s29, 0
      %p114 = por %p112, %p113
      %s116 = sadd.s32 %s115, 1
      %p119 = scmp.eq.s32.totalorder %s23, 3
      %p120 = scmp.ne.s32.totalorder %s115, %s117
      %p121 = scmp.eq.s32.totalorder %s23, 0
      %p122 = por %p120, %p121
      %p123 = scmp.ne.s32.totalorder %s115, %s117
      %p124 = scmp.eq.s32.totalorder %s28, 3
      %p125 = por %p123, %p124
      %p126 = scmp.ne.s32.totalorder %s117, %s118
      %p127 = scmp.eq.s32.totalorder %s28, 0
      %p128 = por %p126, %p127
      %p129 = scmp.ne.s32.totalorder %s117, %s118
      %p130 = scmp.eq.s32.totalorder %s29, 3
      %p131 = por %p129, %p130
      %p133 = scmp.ne.s32.totalorder %s118, %s132
      %p134 = scmp.eq.s32.totalorder %s29, 0
      %p135 = por %p133, %p134
      %s137 = sadd.s32 %s136, 1
      %p140 = scmp.eq.s32.totalorder %s23, 3
      %p141 = scmp.ne.s32.totalorder %s136, %s138
      %p142 = scmp.eq.s32.totalorder %s23, 0
      %p143 = por %p141, %p142
      %p144 = scmp.ne.s32.totalorder %s136, %s138
      %p145 = scmp.eq.s32.totalorder %s28, 3
      %p146 = por %p144, %p145
      %p147 = scmp.ne.s32.totalorder %s138, %s139
      %p148 = scmp.eq.s32.totalorder %s28, 0
      %p149 = por %p147, %p148
      %p150 = scmp.ne.s32.totalorder %s138, %s139
      %p151 = scmp.eq.s32.totalorder %s29, 3
      %p152 = por %p150, %p151
      %p154 = scmp.ne.s32.totalorder %s139, %s153
      %p155 = scmp.eq.s32.totalorder %s29, 0
      %p156 = por %p154, %p155
      %s157 = smul.u32 %s30, 2
      %s158 = sadd.s32 %s157, %s31
      %s159 = smul.u32 %s42, 2
      %s160 = sadd.s32 %s159, %s38
      %s161 = ssub.s32 %s158, %s160
      %p162 = scmp.eq.s32.totalorder %s161, 0
      %s164 = sadd.s32 %s163, 1
      %s165 = scalar_select %p162, %s163, %s164
      %p168 = pneg %p162
      %p169 = scmp.eq.s32.totalorder %s23, 3
      %p170 = por %p168, %p169
      %p171 = scmp.ne.s32.totalorder %s163, %s166
      %p172 = scmp.eq.s32.totalorder %s23, 0
      %p173 = por %p171, %p172
      %p174 = scmp.ne.s32.totalorder %s163, %s166
      %p175 = scmp.eq.s32.totalorder %s28, 3
      %p176 = por %p174, %p175
      %p177 = scmp.ne.s32.totalorder %s166, %s167
      %p178 = scmp.eq.s32.totalorder %s28, 0
      %p179 = por %p177, %p178
      %p180 = scmp.ne.s32.totalorder %s166, %s167
      %p181 = scmp.eq.s32.totalorder %s29, 3
      %p182 = por %p180, %p181
      %p184 = scmp.ne.s32.totalorder %s167, %s183
      %p185 = scmp.eq.s32.totalorder %s29, 0
      %p186 = por %p184, %p185
      %p187 = scmp.le.s32.totalorder 1, %s23
      %p188 = scmp.lt.s32.totalorder %s23, 5
      %p189 = pnand %p187, %p188
      %p190 = pneg %p189
      // Predicated region
      $region9: #{tpu_custom_call.1} parent=5 // pred_check
        _
      $region10: #{tpu_custom_call.1} parent=5 // pred_check_branch
        %192 = sbr.rel (%p189) target = $region12
      $region11: #{tpu_custom_call.1} parent=5 // pred_region
        %s193 = ssub.s32 %s23, 1
        // Predicated region
        $region13: #{tpu_custom_call.1} parent=11 // pred_check
          %p194 = pneg %p86
        $region14: #{tpu_custom_call.1} parent=11 // pred_check_branch
          %196 = sbr.rel (%p194) target = $region16
        $region15: #{tpu_custom_call.1} parent=11 // pred_region
          %s198 = ssub.s32 8192, 8192
          %199 = vsyncadd [#allocation7], %s198
          %s200 = sshll.u32 [#allocation6], 4
          %s201 = int_to_ptr.vmem [resolvable:$true] %s200
          %206 = dma.hbm_to_vmem [thread:$0]  %s3, 8192, %s201, [#allocation7], 128, 128, 8
        $region16: #{tpu_custom_call.1} parent=11 // pred_fallthru
          _
        // Predicated region
        $region17: #{tpu_custom_call.1} parent=11 // pred_check
          %p207 = pneg %p107
        $region18: #{tpu_custom_call.1} parent=11 // pred_check_branch
          %209 = sbr.rel (%p207) target = $region20
        $region19: #{tpu_custom_call.1} parent=11 // pred_region
          _
        $region20: #{tpu_custom_call.1} parent=11 // pred_fallthru
          _
        // Predicated region
        $region21: #{tpu_custom_call.1} parent=11 // pred_check
          %p210 = pneg %p128
        $region22: #{tpu_custom_call.1} parent=11 // pred_check_branch
          %212 = sbr.rel (%p210) target = $region24
        $region23: #{tpu_custom_call.1} parent=11 // pred_region
          _
        $region24: #{tpu_custom_call.1} parent=11 // pred_fallthru
          _
        // Predicated region
        $region25: #{tpu_custom_call.1} parent=11 // pred_check
          %p213 = pneg %p149
        $region26: #{tpu_custom_call.1} parent=11 // pred_check_branch
          %215 = sbr.rel (%p213) target = $region28
        $region27: #{tpu_custom_call.1} parent=11 // pred_region
          _
        $region28: #{tpu_custom_call.1} parent=11 // pred_fallthru
          _
      $region12: #{tpu_custom_call.1} parent=5 // pred_fallthru
        _
      %p216 = scmp.lt.s32.totalorder %s23, 4
      // Predicated region
      $region29: #{tpu_custom_call.1} parent=5 // pred_check
        %p217 = pneg %p216
      $region30: #{tpu_custom_call.1} parent=5 // pred_check_branch
        %219 = sbr.rel (%p217) target = $region32
      $region31: #{tpu_custom_call.1} parent=5 // pred_region
        // Predicated region
        $region33: #{tpu_custom_call.1} parent=31 // pred_check
          %p220 = pneg %p59
        $region34: #{tpu_custom_call.1} parent=31 // pred_check_branch
          %222 = sbr.rel (%p220) target = $region36
        $region35: #{tpu_custom_call.1} parent=31 // pred_region
          %s223 = smul.u32 %s30, 2
          %s224 = sadd.s32 %s223, %s31
          %s225 = smul.u32 32, %s224
          %p226 = scmp.lt.s32.totalorder %s225, 127
          %s227 = scalar_select %p226, %s225, 127
          %s228 = smul.addr %s227, 8
          %s229 = scalar_lea.vmem %s2, %s228
          %s230 = smul.u32 %s30, 2
          %s231 = sadd.s32 %s230, %s31
          %s232 = smul.u32 32, %s231
        $region36: #{tpu_custom_call.1} parent=31 // pred_fallthru
          _
      $region32: #{tpu_custom_call.1} parent=5 // pred_fallthru
        _
      %p233 = scmp.le.s32.totalorder 1, %s23
      %p234 = scmp.lt.s32.totalorder %s23, 5
      %p235 = pnand %p233, %p234
      %p236 = pneg %p235
      // Predicated region
      $region37: #{tpu_custom_call.1} parent=5 // pred_check
        _
      $region38: #{tpu_custom_call.1} parent=5 // pred_check_branch
        %238 = sbr.rel (%p235) target = $region40
      $region39: #{tpu_custom_call.1} parent=5 // pred_region
        %s239 = ssub.s32 %s23, 1
        // Predicated region
        $region41: #{tpu_custom_call.1} parent=39 // pred_check
          %p240 = pneg %p86
        $region42: #{tpu_custom_call.1} parent=39 // pred_check_branch
          %242 = sbr.rel (%p240) target = $region44
        $region43: #{tpu_custom_call.1} parent=39 // pred_region
          %243 = dma.done [#allocation7], 8192
        $region44: #{tpu_custom_call.1} parent=39 // pred_fallthru
          _
        %s244 = smul.u32 %s32, 2
        %s245 = sadd.s32 %s244, %s33
        %s246 = smul.u32 32, %s245
        %p247 = scmp.lt.s32.totalorder %s246, 127
        %s248 = scalar_select %p247, %s246, 127
        %s249 = smul.addr %s248, 8
        %s250 = scalar_lea.vmem %s2, %s249
        %p251 = pneg %p65
        %p252 = pneg %p62
        %p253 = pneg %p86
        %p254 = pneg %p83
        %p255 = pneg %p107
        %p256 = pneg %p104
        %p257 = pneg %p128
        %p258 = pneg %p125
        %p259 = pneg %p149
        %p260 = pneg %p146
        %p261 = pneg %p179
        %p262 = pneg %p176
        %s263 = sand.u32 %s166, 1
        %s264 = scalar_lea.sflag [#allocation8], %s263
        %s265 = sand.u32 %s166, 1
        %s266 = smul.addr %s265, 256
        %s267 = scalar_lea.vmem [#allocation9], %s266
        %s268 = smul.u32 %s32, 2
        %s269 = sadd.s32 %s268, %s33
        %s270 = smul.u32 32, %s269
        %p271 = scmp.lt.s32.totalorder %s270, 127
        %s272 = scalar_select %p271, %s270, 127
        %s273 = smul.addr %s272, 8
        %s274 = scalar_lea.vmem %s2, %s273
        %s275 = smul.u32 %s32, 2
        %s276 = sadd.s32 %s275, %s33
        %s277 = smul.u32 32, %s276
        %s278 = smul.u32 %s32, 2
        %s279 = sadd.s32 %s278, %s33
        %s280 = smul.u32 32, %s279
        %p281 = scmp.lt.s32.totalorder %s33, 0
        %s282 = ssub.s32 0, %s33
        %s283 = scalar_select %p281, %s282, %s33
        %s284 = sand.u32 %s283, 1
        %s285 = ssub.s32 0, %s284
        %s286 = scalar_select %p281, %s285, %s284
        %p287 = scmp.ne.s32.totalorder %s286, 0
        %p288 = scmp.lt.s32.totalorder %s286, 0
        %p289 = pnand %p288, %p287
        %p290 = pneg %p289
        %s291 = sadd.s32 %s286, 2
        %s292 = scalar_select %p290, %s291, %s286
        %s293 = ssub.s32 1, %s292
        %p294 = scmp.eq.s32.totalorder %s33, 0
        // Predicated region
        $region45: #{tpu_custom_call.1} parent=39 // pred_check
          %p295 = pneg %p294
        $region46: #{tpu_custom_call.1} parent=39 // pred_check_branch
          %297 = sbr.rel (%p295) target = $region48
        $region47: #{tpu_custom_call.1} parent=39 // pred_region
          %s298 = smul.u32 %s32, 512
          loop: start=0, step=1, limit=32
          $region49: #{tpu_custom_call.1} parent=47 // loop_pre_header
            _
          $region50: #{tpu_custom_call.1} parent=47 // loop_header
            %s300 = sphi 0, %s304
            %p301 = scmp.ge.s32.totalorder %s300, 32
          $region51: #{tpu_custom_call.1} parent=47 // loop_header_branch
            %303 = sbr.rel (%p301) target = $region55
          $region52: #{tpu_custom_call.1} parent=47 // loop_body
            %s305 = smul.u32 %s300, 8
            %s306 = sadd.s32 %s298, %s305
            %s307 = sld [smem:[#allocation5 + %s306]]
            %s308 = scalar_lea.vmem %s1, %s307
            %s309 = smul.u32 %s292, 256
            %s310 = sadd.s32 %s305, %s309
            %s311 = scalar_lea.vmem [#allocation2], %s310
            %s312 = scalar_lea.sflag [#allocation3], %s292
            %p314 = scmp.lt.u32.totalorder 1, 8
            %p315 = pneg %p314
            // Predicated region
            $region56: #{tpu_custom_call.1} parent=52 // pred_check
              _
            $region57: #{tpu_custom_call.1} parent=52 // pred_check_branch
              %317 = sbr.rel (%p314) target = $region59
            $region58: #{tpu_custom_call.1} parent=52 // pred_region
              %s332 = sand.u32 1, 7
              %p333 = scmp.eq.s32.totalorder %s332, 0
              %p334 = pneg %p333
              // Predicated region
              $region71: #{tpu_custom_call.1} parent=58 // pred_check
                _
              $region72: #{tpu_custom_call.1} parent=58 // pred_check_branch
                %336 = sbr.rel (%p333) target = $region74
              $region73: #{tpu_custom_call.1} parent=58 // pred_region
                %s337 = sand.u32 1, 7
                %s338 = ssub.s32 1, %s337
                %s339 = scalar_lea.vmem %s308, %s338
                %s340 = ssub.s32 1, %s337
                %s341 = scalar_lea.vmem %s311, %s340 [#allocation2]
                %s342 = sshllo.u32 0, %s337
                loop: start=0, step=1, limit=1
                $region75: #{tpu_custom_call.1} parent=73 // loop_pre_header
                  _
                $region76: #{tpu_custom_call.1} parent=73 // loop_header
                  %s344 = sphi 0, %s348
                  %p345 = scmp.ge.s32.totalorder %s344, 1
                  %s349 = sphi %s339, %s339
                  %s350 = sphi %s341, %s341
                $region77: #{tpu_custom_call.1} parent=73 // loop_header_branch
                  %347 = sbr.rel (%p345) target = $region81
                $region78: #{tpu_custom_call.1} parent=73 // loop_body
                  %v351 = vld [vmem:[%s349] sm:%s342]
                  %352 = vst [vmem:[%s350] sm:%s342] %v351
                $region79: #{tpu_custom_call.1} parent=73 // loop_footer
                  %s348 = sadd.s32 1, %s344
                $region80: #{tpu_custom_call.1} parent=73 // loop_footer_branch
                  %343 = sbr.rel target = $region76
                $region81: #{tpu_custom_call.1} parent=73 // loop_exit
                  _
              $region74: #{tpu_custom_call.1} parent=58 // pred_fallthru
                _
            $region59: #{tpu_custom_call.1} parent=52 // pred_fallthru
              _
            // Predicated region
            $region60: #{tpu_custom_call.1} parent=52 // pred_check
              %p318 = pneg %p314
            $region61: #{tpu_custom_call.1} parent=52 // pred_check_branch
              %320 = sbr.rel (%p318) target = $region63
            $region62: #{tpu_custom_call.1} parent=52 // pred_region
              %s321 = sshllo.u32 0, 1
              loop: start=0, step=1, limit=1
              $region64: #{tpu_custom_call.1} parent=62 // loop_pre_header
                _
              $region65: #{tpu_custom_call.1} parent=62 // loop_header
                %s323 = sphi 0, %s327
                %p324 = scmp.ge.s32.totalorder %s323, 1
                %s328 = sphi %s308, %s308
                %s329 = sphi %s311, %s311
              $region66: #{tpu_custom_call.1} parent=62 // loop_header_branch
                %326 = sbr.rel (%p324) target = $region70
              $region67: #{tpu_custom_call.1} parent=62 // loop_body
                %v330 = vld [vmem:[%s328] sm:%s321]
                %331 = vst [vmem:[%s329] sm:%s321] %v330
              $region68: #{tpu_custom_call.1} parent=62 // loop_footer
                %s327 = sadd.s32 1, %s323
              $region69: #{tpu_custom_call.1} parent=62 // loop_footer_branch
                %322 = sbr.rel target = $region65
              $region70: #{tpu_custom_call.1} parent=62 // loop_exit
                _
            $region63: #{tpu_custom_call.1} parent=52 // pred_fallthru
              _
            // Predicated region
            $region82: #{tpu_custom_call.1} parent=52 // pred_check
              _
            $region83: #{tpu_custom_call.1} parent=52 // pred_check_branch
              %355 = sbr.rel (0) target = $region85
            $region84: #{tpu_custom_call.1} parent=52 // pred_region
              %356 = vsyncadd %s312, 16
            $region85: #{tpu_custom_call.1} parent=52 // pred_fallthru
              _
            %s357 = sadd.s32 %s305, 1
            %s358 = sadd.s32 %s298, %s357
            %s359 = sld [smem:[#allocation5 + %s358]]
            %s360 = scalar_lea.vmem %s1, %s359
            %s361 = sadd.s32 %s357, %s309
            %s362 = scalar_lea.vmem [#allocation2], %s361
            %p364 = scmp.lt.u32.totalorder 1, 8
            %p365 = pneg %p364
            // Predicated region
            $region86: #{tpu_custom_call.1} parent=52 // pred_check
              _
            $region87: #{tpu_custom_call.1} parent=52 // pred_check_branch
              %367 = sbr.rel (%p364) target = $region89
            $region88: #{tpu_custom_call.1} parent=52 // pred_region
              %s382 = sand.u32 1, 7
              %p383 = scmp.eq.s32.totalorder %s382, 0
              %p384 = pneg %p383
              // Predicated region
              $region101: #{tpu_custom_call.1} parent=88 // pred_check
                _
              $region102: #{tpu_custom_call.1} parent=88 // pred_check_branch
                %386 = sbr.rel (%p383) target = $region104
              $region103: #{tpu_custom_call.1} parent=88 // pred_region
                %s387 = sand.u32 1, 7
                %s388 = ssub.s32 1, %s387
                %s389 = scalar_lea.vmem %s360, %s388
                %s390 = ssub.s32 1, %s387
                %s391 = scalar_lea.vmem %s362, %s390 [#allocation2]
                %s392 = sshllo.u32 0, %s387
                loop: start=0, step=1, limit=1
                $region105: #{tpu_custom_call.1} parent=103 // loop_pre_header
                  _
                $region106: #{tpu_custom_call.1} parent=103 // loop_header
                  %s394 = sphi 0, %s398
                  %p395 = scmp.ge.s32.totalorder %s394, 1
                  %s399 = sphi %s389, %s389
                  %s400 = sphi %s391, %s391
                $region107: #{tpu_custom_call.1} parent=103 // loop_header_branch
                  %397 = sbr.rel (%p395) target = $region111
                $region108: #{tpu_custom_call.1} parent=103 // loop_body
                  %v401 = vld [vmem:[%s399] sm:%s392]
                  %402 = vst [vmem:[%s400] sm:%s392] %v401
                $region109: #{tpu_custom_call.1} parent=103 // loop_footer
                  %s398 = sadd.s32 1, %s394
                $region110: #{tpu_custom_call.1} parent=103 // loop_footer_branch
                  %393 = sbr.rel target = $region106
                $region111: #{tpu_custom_call.1} parent=103 // loop_exit
                  _
              $region104: #{tpu_custom_call.1} parent=88 // pred_fallthru
                _
            $region89: #{tpu_custom_call.1} parent=52 // pred_fallthru
              _
            // Predicated region
            $region90: #{tpu_custom_call.1} parent=52 // pred_check
              %p368 = pneg %p364
            $region91: #{tpu_custom_call.1} parent=52 // pred_check_branch
              %370 = sbr.rel (%p368) target = $region93
            $region92: #{tpu_custom_call.1} parent=52 // pred_region
              %s371 = sshllo.u32 0, 1
              loop: start=0, step=1, limit=1
              $region94: #{tpu_custom_call.1} parent=92 // loop_pre_header
                _
              $region95: #{tpu_custom_call.1} parent=92 // loop_header
                %s373 = sphi 0, %s377
                %p374 = scmp.ge.s32.totalorder %s373, 1
                %s378 = sphi %s360, %s360
                %s379 = sphi %s362, %s362
              $region96: #{tpu_custom_call.1} parent=92 // loop_header_branch
                %376 = sbr.rel (%p374) target = $region100
              $region97: #{tpu_custom_call.1} parent=92 // loop_body
                %v380 = vld [vmem:[%s378] sm:%s371]
                %381 = vst [vmem:[%s379] sm:%s371] %v380
              $region98: #{tpu_custom_call.1} parent=92 // loop_footer
                %s377 = sadd.s32 1, %s373
              $region99: #{tpu_custom_call.1} parent=92 // loop_footer_branch
                %372 = sbr.rel target = $region95
              $region100: #{tpu_custom_call.1} parent=92 // loop_exit
                _
            $region93: #{tpu_custom_call.1} parent=52 // pred_fallthru
              _
            // Predicated region
            $region112: #{tpu_custom_call.1} parent=52 // pred_check
              _
            $region113: #{tpu_custom_call.1} parent=52 // pred_check_branch
              %405 = sbr.rel (0) target = $region115
            $region114: #{tpu_custom_call.1} parent=52 // pred_region
              %406 = vsyncadd %s312, 16
            $region115: #{tpu_custom_call.1} parent=52 // pred_fallthru
              _
            %s407 = sadd.s32 %s305, 2
            %s408 = sadd.s32 %s298, %s407
            %s409 = sld [smem:[#allocation5 + %s408]]
            %s410 = scalar_lea.vmem %s1, %s409
            %s411 = sadd.s32 %s407, %s309
            %s412 = scalar_lea.vmem [#allocation2], %s411
            %p414 = scmp.lt.u32.totalorder 1, 8
            %p415 = pneg %p414
            // Predicated region
            $region116: #{tpu_custom_call.1} parent=52 // pred_check
              _
            $region117: #{tpu_custom_call.1} parent=52 // pred_check_branch
              %417 = sbr.rel (%p414) target = $region119
            $region118: #{tpu_custom_call.1} parent=52 // pred_region
              %s432 = sand.u32 1, 7
              %p433 = scmp.eq.s32.totalorder %s432, 0
              %p434 = pneg %p433
              // Predicated region
              $region131: #{tpu_custom_call.1} parent=118 // pred_check
                _
              $region132: #{tpu_custom_call.1} parent=118 // pred_check_branch
                %436 = sbr.rel (%p433) target = $region134
              $region133: #{tpu_custom_call.1} parent=118 // pred_region
                %s437 = sand.u32 1, 7
                %s438 = ssub.s32 1, %s437
                %s439 = scalar_lea.vmem %s410, %s438
                %s440 = ssub.s32 1, %s437
                %s441 = scalar_lea.vmem %s412, %s440 [#allocation2]
                %s442 = sshllo.u32 0, %s437
                loop: start=0, step=1, limit=1
                $region135: #{tpu_custom_call.1} parent=133 // loop_pre_header
                  _
                $region136: #{tpu_custom_call.1} parent=133 // loop_header
                  %s444 = sphi 0, %s448
                  %p445 = scmp.ge.s32.totalorder %s444, 1
                  %s449 = sphi %s439, %s439
                  %s450 = sphi %s441, %s441
                $region137: #{tpu_custom_call.1} parent=133 // loop_header_branch
                  %447 = sbr.rel (%p445) target = $region141
                $region138: #{tpu_custom_call.1} parent=133 // loop_body
                  %v451 = vld [vmem:[%s449] sm:%s442]
                  %452 = vst [vmem:[%s450] sm:%s442] %v451
                $region139: #{tpu_custom_call.1} parent=133 // loop_footer
                  %s448 = sadd.s32 1, %s444
                $region140: #{tpu_custom_call.1} parent=133 // loop_footer_branch
                  %443 = sbr.rel target = $region136
                $region141: #{tpu_custom_call.1} parent=133 // loop_exit
                  _
              $region134: #{tpu_custom_call.1} parent=118 // pred_fallthru
                _
            $region119: #{tpu_custom_call.1} parent=52 // pred_fallthru
              _
            // Predicated region
            $region120: #{tpu_custom_call.1} parent=52 // pred_check
              %p418 = pneg %p414
            $region121: #{tpu_custom_call.1} parent=52 // pred_check_branch
              %420 = sbr.rel (%p418) target = $region123
            $region122: #{tpu_custom_call.1} parent=52 // pred_region
              %s421 = sshllo.u32 0, 1
              loop: start=0, step=1, limit=1
              $region124: #{tpu_custom_call.1} parent=122 // loop_pre_header
                _
              $region125: #{tpu_custom_call.1} parent=122 // loop_header
                %s423 = sphi 0, %s427
                %p424 = scmp.ge.s32.totalorder %s423, 1
                %s428 = sphi %s410, %s410
                %s429 = sphi %s412, %s412
              $region126: #{tpu_custom_call.1} parent=122 // loop_header_branch
                %426 = sbr.rel (%p424) target = $region130
              $region127: #{tpu_custom_call.1} parent=122 // loop_body
                %v430 = vld [vmem:[%s428] sm:%s421]
                %431 = vst [vmem:[%s429] sm:%s421] %v430
              $region128: #{tpu_custom_call.1} parent=122 // loop_footer
                %s427 = sadd.s32 1, %s423
              $region129: #{tpu_custom_call.1} parent=122 // loop_footer_branch
                %422 = sbr.rel target = $region125
              $region130: #{tpu_custom_call.1} parent=122 // loop_exit
                _
            $region123: #{tpu_custom_call.1} parent=52 // pred_fallthru
              _
            // Predicated region
            $region142: #{tpu_custom_call.1} parent=52 // pred_check
              _
            $region143: #{tpu_custom_call.1} parent=52 // pred_check_branch
              %455 = sbr.rel (0) target = $region145
            $region144: #{tpu_custom_call.1} parent=52 // pred_region
              %456 = vsyncadd %s312, 16
            $region145: #{tpu_custom_call.1} parent=52 // pred_fallthru
              _
            %s457 = sadd.s32 %s305, 3
            %s458 = sadd.s32 %s298, %s457
            %s459 = sld [smem:[#allocation5 + %s458]]
            %s460 = scalar_lea.vmem %s1, %s459
            %s461 = sadd.s32 %s457, %s309
            %s462 = scalar_lea.vmem [#allocation2], %s461
            %p464 = scmp.lt.u32.totalorder 1, 8
            %p465 = pneg %p464
            // Predicated region
            $region146: #{tpu_custom_call.1} parent=52 // pred_check
              _
            $region147: #{tpu_custom_call.1} parent=52 // pred_check_branch
              %467 = sbr.rel (%p464) target = $region149
            $region148: #{tpu_custom_call.1} parent=52 // pred_region
              %s482 = sand.u32 1, 7
              %p483 = scmp.eq.s32.totalorder %s482, 0
              %p484 = pneg %p483
              // Predicated region
              $region161: #{tpu_custom_call.1} parent=148 // pred_check
                _
              $region162: #{tpu_custom_call.1} parent=148 // pred_check_branch
                %486 = sbr.rel (%p483) target = $region164
              $region163: #{tpu_custom_call.1} parent=148 // pred_region
                %s487 = sand.u32 1, 7
                %s488 = ssub.s32 1, %s487
                %s489 = scalar_lea.vmem %s460, %s488
                %s490 = ssub.s32 1, %s487
                %s491 = scalar_lea.vmem %s462, %s490 [#allocation2]
                %s492 = sshllo.u32 0, %s487
                loop: start=0, step=1, limit=1
                $region165: #{tpu_custom_call.1} parent=163 // loop_pre_header
                  _
                $region166: #{tpu_custom_call.1} parent=163 // loop_header
                  %s494 = sphi 0, %s498
                  %p495 = scmp.ge.s32.totalorder %s494, 1
                  %s499 = sphi %s489, %s489
                  %s500 = sphi %s491, %s491
                $region167: #{tpu_custom_call.1} parent=163 // loop_header_branch
                  %497 = sbr.rel (%p495) target = $region171
                $region168: #{tpu_custom_call.1} parent=163 // loop_body
                  %v501 = vld [vmem:[%s499] sm:%s492]
                  %502 = vst [vmem:[%s500] sm:%s492] %v501
                $region169: #{tpu_custom_call.1} parent=163 // loop_footer
                  %s498 = sadd.s32 1, %s494
                $region170: #{tpu_custom_call.1} parent=163 // loop_footer_branch
                  %493 = sbr.rel target = $region166
                $region171: #{tpu_custom_call.1} parent=163 // loop_exit
                  _
              $region164: #{tpu_custom_call.1} parent=148 // pred_fallthru
                _
            $region149: #{tpu_custom_call.1} parent=52 // pred_fallthru
              _
            // Predicated region
            $region150: #{tpu_custom_call.1} parent=52 // pred_check
              %p468 = pneg %p464
            $region151: #{tpu_custom_call.1} parent=52 // pred_check_branch
              %470 = sbr.rel (%p468) target = $region153
            $region152: #{tpu_custom_call.1} parent=52 // pred_region
              %s471 = sshllo.u32 0, 1
              loop: start=0, step=1, limit=1
              $region154: #{tpu_custom_call.1} parent=152 // loop_pre_header
                _
              $region155: #{tpu_custom_call.1} parent=152 // loop_header
                %s473 = sphi 0, %s477
                %p474 = scmp.ge.s32.totalorder %s473, 1
                %s478 = sphi %s460, %s460
                %s479 = sphi %s462, %s462
              $region156: #{tpu_custom_call.1} parent=152 // loop_header_branch
                %476 = sbr.rel (%p474) target = $region160
              $region157: #{tpu_custom_call.1} parent=152 // loop_body
                %v480 = vld [vmem:[%s478] sm:%s471]
                %481 = vst [vmem:[%s479] sm:%s471] %v480
              $region158: #{tpu_custom_call.1} parent=152 // loop_footer
                %s477 = sadd.s32 1, %s473
              $region159: #{tpu_custom_call.1} parent=152 // loop_footer_branch
                %472 = sbr.rel target = $region155
              $region160: #{tpu_custom_call.1} parent=152 // loop_exit
                _
            $region153: #{tpu_custom_call.1} parent=52 // pred_fallthru
              _
            // Predicated region
            $region172: #{tpu_custom_call.1} parent=52 // pred_check
              _
            $region173: #{tpu_custom_call.1} parent=52 // pred_check_branch
              %505 = sbr.rel (0) target = $region175
            $region174: #{tpu_custom_call.1} parent=52 // pred_region
              %506 = vsyncadd %s312, 16
            $region175: #{tpu_custom_call.1} parent=52 // pred_fallthru
              _
            %s507 = sadd.s32 %s305, 4
            %s508 = sadd.s32 %s298, %s507
            %s509 = sld [smem:[#allocation5 + %s508]]
            %s510 = scalar_lea.vmem %s1, %s509
            %s511 = sadd.s32 %s507, %s309
            %s512 = scalar_lea.vmem [#allocation2], %s511
            %p514 = scmp.lt.u32.totalorder 1, 8
            %p515 = pneg %p514
            // Predicated region
            $region176: #{tpu_custom_call.1} parent=52 // pred_check
              _
            $region177: #{tpu_custom_call.1} parent=52 // pred_check_branch
              %517 = sbr.rel (%p514) target = $region179
            $region178: #{tpu_custom_call.1} parent=52 // pred_region
              %s532 = sand.u32 1, 7
              %p533 = scmp.eq.s32.totalorder %s532, 0
              %p534 = pneg %p533
              // Predicated region
              $region191: #{tpu_custom_call.1} parent=178 // pred_check
                _
              $region192: #{tpu_custom_call.1} parent=178 // pred_check_branch
                %536 = sbr.rel (%p533) target = $region194
              $region193: #{tpu_custom_call.1} parent=178 // pred_region
                %s537 = sand.u32 1, 7
                %s538 = ssub.s32 1, %s537
                %s539 = scalar_lea.vmem %s510, %s538
                %s540 = ssub.s32 1, %s537
                %s541 = scalar_lea.vmem %s512, %s540 [#allocation2]
                %s542 = sshllo.u32 0, %s537
                loop: start=0, step=1, limit=1
                $region195: #{tpu_custom_call.1} parent=193 // loop_pre_header
                  _
                $region196: #{tpu_custom_call.1} parent=193 // loop_header
                  %s544 = sphi 0, %s548
                  %p545 = scmp.ge.s32.totalorder %s544, 1
                  %s549 = sphi %s539, %s539
                  %s550 = sphi %s541, %s541
                $region197: #{tpu_custom_call.1} parent=193 // loop_header_branch
                  %547 = sbr.rel (%p545) target = $region201
                $region198: #{tpu_custom_call.1} parent=193 // loop_body
                  %v551 = vld [vmem:[%s549] sm:%s542]
                  %552 = vst [vmem:[%s550] sm:%s542] %v551
                $region199: #{tpu_custom_call.1} parent=193 // loop_footer
                  %s548 = sadd.s32 1, %s544
                $region200: #{tpu_custom_call.1} parent=193 // loop_footer_branch
                  %543 = sbr.rel target = $region196
                $region201: #{tpu_custom_call.1} parent=193 // loop_exit
                  _
              $region194: #{tpu_custom_call.1} parent=178 // pred_fallthru
                _
            $region179: #{tpu_custom_call.1} parent=52 // pred_fallthru
              _
            // Predicated region
            $region180: #{tpu_custom_call.1} parent=52 // pred_check
              %p518 = pneg %p514
            $region181: #{tpu_custom_call.1} parent=52 // pred_check_branch
              %520 = sbr.rel (%p518) target = $region183
            $region182: #{tpu_custom_call.1} parent=52 // pred_region
              %s521 = sshllo.u32 0, 1
              loop: start=0, step=1, limit=1
              $region184: #{tpu_custom_call.1} parent=182 // loop_pre_header
                _
              $region185: #{tpu_custom_call.1} parent=182 // loop_header
                %s523 = sphi 0, %s527
                %p524 = scmp.ge.s32.totalorder %s523, 1
                %s528 = sphi %s510, %s510
                %s529 = sphi %s512, %s512
              $region186: #{tpu_custom_call.1} parent=182 // loop_header_branch
                %526 = sbr.rel (%p524) target = $region190
              $region187: #{tpu_custom_call.1} parent=182 // loop_body
                %v530 = vld [vmem:[%s528] sm:%s521]
                %531 = vst [vmem:[%s529] sm:%s521] %v530
              $region188: #{tpu_custom_call.1} parent=182 // loop_footer
                %s527 = sadd.s32 1, %s523
              $region189: #{tpu_custom_call.1} parent=182 // loop_footer_branch
                %522 = sbr.rel target = $region185
              $region190: #{tpu_custom_call.1} parent=182 // loop_exit
                _
            $region183: #{tpu_custom_call.1} parent=52 // pred_fallthru
              _
            // Predicated region
            $region202: #{tpu_custom_call.1} parent=52 // pred_check
              _
            $region203: #{tpu_custom_call.1} parent=52 // pred_check_branch
              %555 = sbr.rel (0) target = $region205
            $region204: #{tpu_custom_call.1} parent=52 // pred_region
              %556 = vsyncadd %s312, 16
            $region205: #{tpu_custom_call.1} parent=52 // pred_fallthru
              _
            %s557 = sadd.s32 %s305, 5
            %s558 = sadd.s32 %s298, %s557
            %s559 = sld [smem:[#allocation5 + %s558]]
            %s560 = scalar_lea.vmem %s1, %s559
            %s561 = sadd.s32 %s557, %s309
            %s562 = scalar_lea.vmem [#allocation2], %s561
            %p564 = scmp.lt.u32.totalorder 1, 8
            %p565 = pneg %p564
            // Predicated region
            $region206: #{tpu_custom_call.1} parent=52 // pred_check
              _
            $region207: #{tpu_custom_call.1} parent=52 // pred_check_branch
              %567 = sbr.rel (%p564) target = $region209
            $region208: #{tpu_custom_call.1} parent=52 // pred_region
              %s582 = sand.u32 1, 7
              %p583 = scmp.eq.s32.totalorder %s582, 0
              %p584 = pneg %p583
              // Predicated region
              $region221: #{tpu_custom_call.1} parent=208 // pred_check
                _
              $region222: #{tpu_custom_call.1} parent=208 // pred_check_branch
                %586 = sbr.rel (%p583) target = $region224
              $region223: #{tpu_custom_call.1} parent=208 // pred_region
                %s587 = sand.u32 1, 7
                %s588 = ssub.s32 1, %s587
                %s589 = scalar_lea.vmem %s560, %s588
                %s590 = ssub.s32 1, %s587
                %s591 = scalar_lea.vmem %s562, %s590 [#allocation2]
                %s592 = sshllo.u32 0, %s587
                loop: start=0, step=1, limit=1
                $region225: #{tpu_custom_call.1} parent=223 // loop_pre_header
                  _
                $region226: #{tpu_custom_call.1} parent=223 // loop_header
                  %s594 = sphi 0, %s598
                  %p595 = scmp.ge.s32.totalorder %s594, 1
                  %s599 = sphi %s589, %s589
                  %s600 = sphi %s591, %s591
                $region227: #{tpu_custom_call.1} parent=223 // loop_header_branch
                  %597 = sbr.rel (%p595) target = $region231
                $region228: #{tpu_custom_call.1} parent=223 // loop_body
                  %v601 = vld [vmem:[%s599] sm:%s592]
                  %602 = vst [vmem:[%s600] sm:%s592] %v601
                $region229: #{tpu_custom_call.1} parent=223 // loop_footer
                  %s598 = sadd.s32 1, %s594
                $region230: #{tpu_custom_call.1} parent=223 // loop_footer_branch
                  %593 = sbr.rel target = $region226
                $region231: #{tpu_custom_call.1} parent=223 // loop_exit
                  _
              $region224: #{tpu_custom_call.1} parent=208 // pred_fallthru
                _
            $region209: #{tpu_custom_call.1} parent=52 // pred_fallthru
              _
            // Predicated region
            $region210: #{tpu_custom_call.1} parent=52 // pred_check
              %p568 = pneg %p564
            $region211: #{tpu_custom_call.1} parent=52 // pred_check_branch
              %570 = sbr.rel (%p568) target = $region213
            $region212: #{tpu_custom_call.1} parent=52 // pred_region
              %s571 = sshllo.u32 0, 1
              loop: start=0, step=1, limit=1
              $region214: #{tpu_custom_call.1} parent=212 // loop_pre_header
                _
              $region215: #{tpu_custom_call.1} parent=212 // loop_header
                %s573 = sphi 0, %s577
                %p574 = scmp.ge.s32.totalorder %s573, 1
                %s578 = sphi %s560, %s560
                %s579 = sphi %s562, %s562
              $region216: #{tpu_custom_call.1} parent=212 // loop_header_branch
                %576 = sbr.rel (%p574) target = $region220
              $region217: #{tpu_custom_call.1} parent=212 // loop_body
                %v580 = vld [vmem:[%s578] sm:%s571]
                %581 = vst [vmem:[%s579] sm:%s571] %v580
              $region218: #{tpu_custom_call.1} parent=212 // loop_footer
                %s577 = sadd.s32 1, %s573
              $region219: #{tpu_custom_call.1} parent=212 // loop_footer_branch
                %572 = sbr.rel target = $region215
              $region220: #{tpu_custom_call.1} parent=212 // loop_exit
                _
            $region213: #{tpu_custom_call.1} parent=52 // pred_fallthru
              _
            // Predicated region
            $region232: #{tpu_custom_call.1} parent=52 // pred_check
              _
            $region233: #{tpu_custom_call.1} parent=52 // pred_check_branch
              %605 = sbr.rel (0) target = $region235
            $region234: #{tpu_custom_call.1} parent=52 // pred_region
              %606 = vsyncadd %s312, 16
            $region235: #{tpu_custom_call.1} parent=52 // pred_fallthru
              _
            %s607 = sadd.s32 %s305, 6
            %s608 = sadd.s32 %s298, %s607
            %s609 = sld [smem:[#allocation5 + %s608]]
            %s610 = scalar_lea.vmem %s1, %s609
            %s611 = sadd.s32 %s607, %s309
            %s612 = scalar_lea.vmem [#allocation2], %s611
            %p614 = scmp.lt.u32.totalorder 1, 8
            %p615 = pneg %p614
            // Predicated region
            $region236: #{tpu_custom_call.1} parent=52 // pred_check
              _
            $region237: #{tpu_custom_call.1} parent=52 // pred_check_branch
              %617 = sbr.rel (%p614) target = $region239
            $region238: #{tpu_custom_call.1} parent=52 // pred_region
              %s632 = sand.u32 1, 7
              %p633 = scmp.eq.s32.totalorder %s632, 0
              %p634 = pneg %p633
              // Predicated region
              $region251: #{tpu_custom_call.1} parent=238 // pred_check
                _
              $region252: #{tpu_custom_call.1} parent=238 // pred_check_branch
                %636 = sbr.rel (%p633) target = $region254
              $region253: #{tpu_custom_call.1} parent=238 // pred_region
                %s637 = sand.u32 1, 7
                %s638 = ssub.s32 1, %s637
                %s639 = scalar_lea.vmem %s610, %s638
                %s640 = ssub.s32 1, %s637
                %s641 = scalar_lea.vmem %s612, %s640 [#allocation2]
                %s642 = sshllo.u32 0, %s637
                loop: start=0, step=1, limit=1
                $region255: #{tpu_custom_call.1} parent=253 // loop_pre_header
                  _
                $region256: #{tpu_custom_call.1} parent=253 // loop_header
                  %s644 = sphi 0, %s648
                  %p645 = scmp.ge.s32.totalorder %s644, 1
                  %s649 = sphi %s639, %s639
                  %s650 = sphi %s641, %s641
                $region257: #{tpu_custom_call.1} parent=253 // loop_header_branch
                  %647 = sbr.rel (%p645) target = $region261
                $region258: #{tpu_custom_call.1} parent=253 // loop_body
                  %v651 = vld [vmem:[%s649] sm:%s642]
                  %652 = vst [vmem:[%s650] sm:%s642] %v651
                $region259: #{tpu_custom_call.1} parent=253 // loop_footer
                  %s648 = sadd.s32 1, %s644
                $region260: #{tpu_custom_call.1} parent=253 // loop_footer_branch
                  %643 = sbr.rel target = $region256
                $region261: #{tpu_custom_call.1} parent=253 // loop_exit
                  _
              $region254: #{tpu_custom_call.1} parent=238 // pred_fallthru
                _
            $region239: #{tpu_custom_call.1} parent=52 // pred_fallthru
              _
            // Predicated region
            $region240: #{tpu_custom_call.1} parent=52 // pred_check
              %p618 = pneg %p614
            $region241: #{tpu_custom_call.1} parent=52 // pred_check_branch
              %620 = sbr.rel (%p618) target = $region243
            $region242: #{tpu_custom_call.1} parent=52 // pred_region
              %s621 = sshllo.u32 0, 1
              loop: start=0, step=1, limit=1
              $region244: #{tpu_custom_call.1} parent=242 // loop_pre_header
                _
              $region245: #{tpu_custom_call.1} parent=242 // loop_header
                %s623 = sphi 0, %s627
                %p624 = scmp.ge.s32.totalorder %s623, 1
                %s628 = sphi %s610, %s610
                %s629 = sphi %s612, %s612
              $region246: #{tpu_custom_call.1} parent=242 // loop_header_branch
                %626 = sbr.rel (%p624) target = $region250
              $region247: #{tpu_custom_call.1} parent=242 // loop_body
                %v630 = vld [vmem:[%s628] sm:%s621]
                %631 = vst [vmem:[%s629] sm:%s621] %v630
              $region248: #{tpu_custom_call.1} parent=242 // loop_footer
                %s627 = sadd.s32 1, %s623
              $region249: #{tpu_custom_call.1} parent=242 // loop_footer_branch
                %622 = sbr.rel target = $region245
              $region250: #{tpu_custom_call.1} parent=242 // loop_exit
                _
            $region243: #{tpu_custom_call.1} parent=52 // pred_fallthru
              _
            // Predicated region
            $region262: #{tpu_custom_call.1} parent=52 // pred_check
              _
            $region263: #{tpu_custom_call.1} parent=52 // pred_check_branch
              %655 = sbr.rel (0) target = $region265
            $region264: #{tpu_custom_call.1} parent=52 // pred_region
              %656 = vsyncadd %s312, 16
            $region265: #{tpu_custom_call.1} parent=52 // pred_fallthru
              _
            %s657 = sadd.s32 %s305, 7
            %s658 = sadd.s32 %s298, %s657
            %s659 = sld [smem:[#allocation5 + %s658]]
            %s660 = scalar_lea.vmem %s1, %s659
            %s661 = sadd.s32 %s657, %s309
            %s662 = scalar_lea.vmem [#allocation2], %s661
            %p664 = scmp.lt.u32.totalorder 1, 8
            %p665 = pneg %p664
            // Predicated region
            $region266: #{tpu_custom_call.1} parent=52 // pred_check
              _
            $region267: #{tpu_custom_call.1} parent=52 // pred_check_branch
              %667 = sbr.rel (%p664) target = $region269
            $region268: #{tpu_custom_call.1} parent=52 // pred_region
              %s682 = sand.u32 1, 7
              %p683 = scmp.eq.s32.totalorder %s682, 0
              %p684 = pneg %p683
              // Predicated region
              $region281: #{tpu_custom_call.1} parent=268 // pred_check
                _
              $region282: #{tpu_custom_call.1} parent=268 // pred_check_branch
                %686 = sbr.rel (%p683) target = $region284
              $region283: #{tpu_custom_call.1} parent=268 // pred_region
                %s687 = sand.u32 1, 7
                %s688 = ssub.s32 1, %s687
                %s689 = scalar_lea.vmem %s660, %s688
                %s690 = ssub.s32 1, %s687
                %s691 = scalar_lea.vmem %s662, %s690 [#allocation2]
                %s692 = sshllo.u32 0, %s687
                loop: start=0, step=1, limit=1
                $region285: #{tpu_custom_call.1} parent=283 // loop_pre_header
                  _
                $region286: #{tpu_custom_call.1} parent=283 // loop_header
                  %s694 = sphi 0, %s698
                  %p695 = scmp.ge.s32.totalorder %s694, 1
                  %s699 = sphi %s689, %s689
                  %s700 = sphi %s691, %s691
                $region287: #{tpu_custom_call.1} parent=283 // loop_header_branch
                  %697 = sbr.rel (%p695) target = $region291
                $region288: #{tpu_custom_call.1} parent=283 // loop_body
                  %v701 = vld [vmem:[%s699] sm:%s692]
                  %702 = vst [vmem:[%s700] sm:%s692] %v701
                $region289: #{tpu_custom_call.1} parent=283 // loop_footer
                  %s698 = sadd.s32 1, %s694
                $region290: #{tpu_custom_call.1} parent=283 // loop_footer_branch
                  %693 = sbr.rel target = $region286
                $region291: #{tpu_custom_call.1} parent=283 // loop_exit
                  _
              $region284: #{tpu_custom_call.1} parent=268 // pred_fallthru
                _
            $region269: #{tpu_custom_call.1} parent=52 // pred_fallthru
              _
            // Predicated region
            $region270: #{tpu_custom_call.1} parent=52 // pred_check
              %p668 = pneg %p664
            $region271: #{tpu_custom_call.1} parent=52 // pred_check_branch
              %670 = sbr.rel (%p668) target = $region273
            $region272: #{tpu_custom_call.1} parent=52 // pred_region
              %s671 = sshllo.u32 0, 1
              loop: start=0, step=1, limit=1
              $region274: #{tpu_custom_call.1} parent=272 // loop_pre_header
                _
              $region275: #{tpu_custom_call.1} parent=272 // loop_header
                %s673 = sphi 0, %s677
                %p674 = scmp.ge.s32.totalorder %s673, 1
                %s678 = sphi %s660, %s660
                %s679 = sphi %s662, %s662
              $region276: #{tpu_custom_call.1} parent=272 // loop_header_branch
                %676 = sbr.rel (%p674) target = $region280
              $region277: #{tpu_custom_call.1} parent=272 // loop_body
                %v680 = vld [vmem:[%s678] sm:%s671]
                %681 = vst [vmem:[%s679] sm:%s671] %v680
              $region278: #{tpu_custom_call.1} parent=272 // loop_footer
                %s677 = sadd.s32 1, %s673
              $region279: #{tpu_custom_call.1} parent=272 // loop_footer_branch
                %672 = sbr.rel target = $region275
              $region280: #{tpu_custom_call.1} parent=272 // loop_exit
                _
            $region273: #{tpu_custom_call.1} parent=52 // pred_fallthru
              _
            // Predicated region
            $region292: #{tpu_custom_call.1} parent=52 // pred_check
              _
            $region293: #{tpu_custom_call.1} parent=52 // pred_check_branch
              %705 = sbr.rel (0) target = $region295
            $region294: #{tpu_custom_call.1} parent=52 // pred_region
              %706 = vsyncadd %s312, 16
            $region295: #{tpu_custom_call.1} parent=52 // pred_fallthru
              _
          $region53: #{tpu_custom_call.1} parent=47 // loop_footer
            %s304 = sadd.s32 1, %s300
          $region54: #{tpu_custom_call.1} parent=47 // loop_footer_branch
            %299 = sbr.rel target = $region50
          $region55: #{tpu_custom_call.1} parent=47 // loop_exit
            _
        $region48: #{tpu_custom_call.1} parent=39 // pred_fallthru
          _
        %s707 = sadd.s32 %s33, 1
        %p708 = scmp.lt.s32.totalorder %s707, 2
        // Predicated region
        $region296: #{tpu_custom_call.1} parent=39 // pred_check
          %p709 = pneg %p708
        $region297: #{tpu_custom_call.1} parent=39 // pred_check_branch
          %711 = sbr.rel (%p709) target = $region299
        $region298: #{tpu_custom_call.1} parent=39 // pred_region
          %s712 = smul.u32 %s32, 2
          %s713 = sadd.s32 %s712, %s707
          %s714 = smul.u32 %s713, 256
          loop: start=0, step=1, limit=32
          $region300: #{tpu_custom_call.1} parent=298 // loop_pre_header
            _
          $region301: #{tpu_custom_call.1} parent=298 // loop_header
            %s716 = sphi 0, %s720
            %p717 = scmp.ge.s32.totalorder %s716, 32
          $region302: #{tpu_custom_call.1} parent=298 // loop_header_branch
            %719 = sbr.rel (%p717) target = $region306
          $region303: #{tpu_custom_call.1} parent=298 // loop_body
            %s721 = smul.u32 %s716, 8
            %s722 = sadd.s32 %s714, %s721
            %s723 = sld [smem:[#allocation5 + %s722]]
            %s724 = scalar_lea.vmem %s1, %s723
            %s725 = smul.u32 %s293, 256
            %s726 = sadd.s32 %s721, %s725
            %s727 = scalar_lea.vmem [#allocation2], %s726
            %s728 = scalar_lea.sflag [#allocation3], %s293
            %p730 = scmp.lt.u32.totalorder 1, 8
            %p731 = pneg %p730
            // Predicated region
            $region307: #{tpu_custom_call.1} parent=303 // pred_check
              _
            $region308: #{tpu_custom_call.1} parent=303 // pred_check_branch
              %733 = sbr.rel (%p730) target = $region310
            $region309: #{tpu_custom_call.1} parent=303 // pred_region
              %s748 = sand.u32 1, 7
              %p749 = scmp.eq.s32.totalorder %s748, 0
              %p750 = pneg %p749
              // Predicated region
              $region322: #{tpu_custom_call.1} parent=309 // pred_check
                _
              $region323: #{tpu_custom_call.1} parent=309 // pred_check_branch
                %752 = sbr.rel (%p749) target = $region325
              $region324: #{tpu_custom_call.1} parent=309 // pred_region
                %s753 = sand.u32 1, 7
                %s754 = ssub.s32 1, %s753
                %s755 = scalar_lea.vmem %s724, %s754
                %s756 = ssub.s32 1, %s753
                %s757 = scalar_lea.vmem %s727, %s756 [#allocation2]
                %s758 = sshllo.u32 0, %s753
                loop: start=0, step=1, limit=1
                $region326: #{tpu_custom_call.1} parent=324 // loop_pre_header
                  _
                $region327: #{tpu_custom_call.1} parent=324 // loop_header
                  %s760 = sphi 0, %s764
                  %p761 = scmp.ge.s32.totalorder %s760, 1
                  %s765 = sphi %s755, %s755
                  %s766 = sphi %s757, %s757
                $region328: #{tpu_custom_call.1} parent=324 // loop_header_branch
                  %763 = sbr.rel (%p761) target = $region332
                $region329: #{tpu_custom_call.1} parent=324 // loop_body
                  %v767 = vld [vmem:[%s765] sm:%s758]
                  %768 = vst [vmem:[%s766] sm:%s758] %v767
                $region330: #{tpu_custom_call.1} parent=324 // loop_footer
                  %s764 = sadd.s32 1, %s760
                $region331: #{tpu_custom_call.1} parent=324 // loop_footer_branch
                  %759 = sbr.rel target = $region327
                $region332: #{tpu_custom_call.1} parent=324 // loop_exit
                  _
              $region325: #{tpu_custom_call.1} parent=309 // pred_fallthru
                _
            $region310: #{tpu_custom_call.1} parent=303 // pred_fallthru
              _
            // Predicated region
            $region311: #{tpu_custom_call.1} parent=303 // pred_check
              %p734 = pneg %p730
            $region312: #{tpu_custom_call.1} parent=303 // pred_check_branch
              %736 = sbr.rel (%p734) target = $region314
            $region313: #{tpu_custom_call.1} parent=303 // pred_region
              %s737 = sshllo.u32 0, 1
              loop: start=0, step=1, limit=1
              $region315: #{tpu_custom_call.1} parent=313 // loop_pre_header
                _
              $region316: #{tpu_custom_call.1} parent=313 // loop_header
                %s739 = sphi 0, %s743
                %p740 = scmp.ge.s32.totalorder %s739, 1
                %s744 = sphi %s724, %s724
                %s745 = sphi %s727, %s727
              $region317: #{tpu_custom_call.1} parent=313 // loop_header_branch
                %742 = sbr.rel (%p740) target = $region321
              $region318: #{tpu_custom_call.1} parent=313 // loop_body
                %v746 = vld [vmem:[%s744] sm:%s737]
                %747 = vst [vmem:[%s745] sm:%s737] %v746
              $region319: #{tpu_custom_call.1} parent=313 // loop_footer
                %s743 = sadd.s32 1, %s739
              $region320: #{tpu_custom_call.1} parent=313 // loop_footer_branch
                %738 = sbr.rel target = $region316
              $region321: #{tpu_custom_call.1} parent=313 // loop_exit
                _
            $region314: #{tpu_custom_call.1} parent=303 // pred_fallthru
              _
            // Predicated region
            $region333: #{tpu_custom_call.1} parent=303 // pred_check
              _
            $region334: #{tpu_custom_call.1} parent=303 // pred_check_branch
              %771 = sbr.rel (0) target = $region336
            $region335: #{tpu_custom_call.1} parent=303 // pred_region
              %772 = vsyncadd %s728, 16
            $region336: #{tpu_custom_call.1} parent=303 // pred_fallthru
              _
            %s773 = sadd.s32 %s721, 1
            %s774 = sadd.s32 %s714, %s773
            %s775 = sld [smem:[#allocation5 + %s774]]
            %s776 = scalar_lea.vmem %s1, %s775
            %s777 = sadd.s32 %s773, %s725
            %s778 = scalar_lea.vmem [#allocation2], %s777
            %p780 = scmp.lt.u32.totalorder 1, 8
            %p781 = pneg %p780
            // Predicated region
            $region337: #{tpu_custom_call.1} parent=303 // pred_check
              _
            $region338: #{tpu_custom_call.1} parent=303 // pred_check_branch
              %783 = sbr.rel (%p780) target = $region340
            $region339: #{tpu_custom_call.1} parent=303 // pred_region
              %s798 = sand.u32 1, 7
              %p799 = scmp.eq.s32.totalorder %s798, 0
              %p800 = pneg %p799
              // Predicated region
              $region352: #{tpu_custom_call.1} parent=339 // pred_check
                _
              $region353: #{tpu_custom_call.1} parent=339 // pred_check_branch
                %802 = sbr.rel (%p799) target = $region355
              $region354: #{tpu_custom_call.1} parent=339 // pred_region
                %s803 = sand.u32 1, 7
                %s804 = ssub.s32 1, %s803
                %s805 = scalar_lea.vmem %s776, %s804
                %s806 = ssub.s32 1, %s803
                %s807 = scalar_lea.vmem %s778, %s806 [#allocation2]
                %s808 = sshllo.u32 0, %s803
                loop: start=0, step=1, limit=1
                $region356: #{tpu_custom_call.1} parent=354 // loop_pre_header
                  _
                $region357: #{tpu_custom_call.1} parent=354 // loop_header
                  %s810 = sphi 0, %s814
                  %p811 = scmp.ge.s32.totalorder %s810, 1
                  %s815 = sphi %s805, %s805
                  %s816 = sphi %s807, %s807
                $region358: #{tpu_custom_call.1} parent=354 // loop_header_branch
                  %813 = sbr.rel (%p811) target = $region362
                $region359: #{tpu_custom_call.1} parent=354 // loop_body
                  %v817 = vld [vmem:[%s815] sm:%s808]
                  %818 = vst [vmem:[%s816] sm:%s808] %v817
                $region360: #{tpu_custom_call.1} parent=354 // loop_footer
                  %s814 = sadd.s32 1, %s810
                $region361: #{tpu_custom_call.1} parent=354 // loop_footer_branch
                  %809 = sbr.rel target = $region357
                $region362: #{tpu_custom_call.1} parent=354 // loop_exit
                  _
              $region355: #{tpu_custom_call.1} parent=339 // pred_fallthru
                _
            $region340: #{tpu_custom_call.1} parent=303 // pred_fallthru
              _
            // Predicated region
            $region341: #{tpu_custom_call.1} parent=303 // pred_check
              %p784 = pneg %p780
            $region342: #{tpu_custom_call.1} parent=303 // pred_check_branch
              %786 = sbr.rel (%p784) target = $region344
            $region343: #{tpu_custom_call.1} parent=303 // pred_region
              %s787 = sshllo.u32 0, 1
              loop: start=0, step=1, limit=1
              $region345: #{tpu_custom_call.1} parent=343 // loop_pre_header
                _
              $region346: #{tpu_custom_call.1} parent=343 // loop_header
                %s789 = sphi 0, %s793
                %p790 = scmp.ge.s32.totalorder %s789, 1
                %s794 = sphi %s776, %s776
                %s795 = sphi %s778, %s778
              $region347: #{tpu_custom_call.1} parent=343 // loop_header_branch
                %792 = sbr.rel (%p790) target = $region351
              $region348: #{tpu_custom_call.1} parent=343 // loop_body
                %v796 = vld [vmem:[%s794] sm:%s787]
                %797 = vst [vmem:[%s795] sm:%s787] %v796
              $region349: #{tpu_custom_call.1} parent=343 // loop_footer
                %s793 = sadd.s32 1, %s789
              $region350: #{tpu_custom_call.1} parent=343 // loop_footer_branch
                %788 = sbr.rel target = $region346
              $region351: #{tpu_custom_call.1} parent=343 // loop_exit
                _
            $region344: #{tpu_custom_call.1} parent=303 // pred_fallthru
              _
            // Predicated region
            $region363: #{tpu_custom_call.1} parent=303 // pred_check
              _
            $region364: #{tpu_custom_call.1} parent=303 // pred_check_branch
              %821 = sbr.rel (0) target = $region366
            $region365: #{tpu_custom_call.1} parent=303 // pred_region
              %822 = vsyncadd %s728, 16
            $region366: #{tpu_custom_call.1} parent=303 // pred_fallthru
              _
            %s823 = sadd.s32 %s721, 2
            %s824 = sadd.s32 %s714, %s823
            %s825 = sld [smem:[#allocation5 + %s824]]
            %s826 = scalar_lea.vmem %s1, %s825
            %s827 = sadd.s32 %s823, %s725
            %s828 = scalar_lea.vmem [#allocation2], %s827
            %p830 = scmp.lt.u32.totalorder 1, 8
            %p831 = pneg %p830
            // Predicated region
            $region367: #{tpu_custom_call.1} parent=303 // pred_check
              _
            $region368: #{tpu_custom_call.1} parent=303 // pred_check_branch
              %833 = sbr.rel (%p830) target = $region370
            $region369: #{tpu_custom_call.1} parent=303 // pred_region
              %s848 = sand.u32 1, 7
              %p849 = scmp.eq.s32.totalorder %s848, 0
              %p850 = pneg %p849
              // Predicated region
              $region382: #{tpu_custom_call.1} parent=369 // pred_check
                _
              $region383: #{tpu_custom_call.1} parent=369 // pred_check_branch
                %852 = sbr.rel (%p849) target = $region385
              $region384: #{tpu_custom_call.1} parent=369 // pred_region
                %s853 = sand.u32 1, 7
                %s854 = ssub.s32 1, %s853
                %s855 = scalar_lea.vmem %s826, %s854
                %s856 = ssub.s32 1, %s853
                %s857 = scalar_lea.vmem %s828, %s856 [#allocation2]
                %s858 = sshllo.u32 0, %s853
                loop: start=0, step=1, limit=1
                $region386: #{tpu_custom_call.1} parent=384 // loop_pre_header
                  _
                $region387: #{tpu_custom_call.1} parent=384 // loop_header
                  %s860 = sphi 0, %s864
                  %p861 = scmp.ge.s32.totalorder %s860, 1
                  %s865 = sphi %s855, %s855
                  %s866 = sphi %s857, %s857
                $region388: #{tpu_custom_call.1} parent=384 // loop_header_branch
                  %863 = sbr.rel (%p861) target = $region392
                $region389: #{tpu_custom_call.1} parent=384 // loop_body
                  %v867 = vld [vmem:[%s865] sm:%s858]
                  %868 = vst [vmem:[%s866] sm:%s858] %v867
                $region390: #{tpu_custom_call.1} parent=384 // loop_footer
                  %s864 = sadd.s32 1, %s860
                $region391: #{tpu_custom_call.1} parent=384 // loop_footer_branch
                  %859 = sbr.rel target = $region387
                $region392: #{tpu_custom_call.1} parent=384 // loop_exit
                  _
              $region385: #{tpu_custom_call.1} parent=369 // pred_fallthru
                _
            $region370: #{tpu_custom_call.1} parent=303 // pred_fallthru
              _
            // Predicated region
            $region371: #{tpu_custom_call.1} parent=303 // pred_check
              %p834 = pneg %p830
            $region372: #{tpu_custom_call.1} parent=303 // pred_check_branch
              %836 = sbr.rel (%p834) target = $region374
            $region373: #{tpu_custom_call.1} parent=303 // pred_region
              %s837 = sshllo.u32 0, 1
              loop: start=0, step=1, limit=1
              $region375: #{tpu_custom_call.1} parent=373 // loop_pre_header
                _
              $region376: #{tpu_custom_call.1} parent=373 // loop_header
                %s839 = sphi 0, %s843
                %p840 = scmp.ge.s32.totalorder %s839, 1
                %s844 = sphi %s826, %s826
                %s845 = sphi %s828, %s828
              $region377: #{tpu_custom_call.1} parent=373 // loop_header_branch
                %842 = sbr.rel (%p840) target = $region381
              $region378: #{tpu_custom_call.1} parent=373 // loop_body
                %v846 = vld [vmem:[%s844] sm:%s837]
                %847 = vst [vmem:[%s845] sm:%s837] %v846
              $region379: #{tpu_custom_call.1} parent=373 // loop_footer
                %s843 = sadd.s32 1, %s839
              $region380: #{tpu_custom_call.1} parent=373 // loop_footer_branch
                %838 = sbr.rel target = $region376
              $region381: #{tpu_custom_call.1} parent=373 // loop_exit
                _
            $region374: #{tpu_custom_call.1} parent=303 // pred_fallthru
              _
            // Predicated region
            $region393: #{tpu_custom_call.1} parent=303 // pred_check
              _
            $region394: #{tpu_custom_call.1} parent=303 // pred_check_branch
              %871 = sbr.rel (0) target = $region396
            $region395: #{tpu_custom_call.1} parent=303 // pred_region
              %872 = vsyncadd %s728, 16
            $region396: #{tpu_custom_call.1} parent=303 // pred_fallthru
              _
            %s873 = sadd.s32 %s721, 3
            %s874 = sadd.s32 %s714, %s873
            %s875 = sld [smem:[#allocation5 + %s874]]
            %s876 = scalar_lea.vmem %s1, %s875
            %s877 = sadd.s32 %s873, %s725
            %s878 = scalar_lea.vmem [#allocation2], %s877
            %p880 = scmp.lt.u32.totalorder 1, 8
            %p881 = pneg %p880
            // Predicated region
            $region397: #{tpu_custom_call.1} parent=303 // pred_check
              _
            $region398: #{tpu_custom_call.1} parent=303 // pred_check_branch
              %883 = sbr.rel (%p880) target = $region400
            $region399: #{tpu_custom_call.1} parent=303 // pred_region
              %s898 = sand.u32 1, 7
              %p899 = scmp.eq.s32.totalorder %s898, 0
              %p900 = pneg %p899
              // Predicated region
              $region412: #{tpu_custom_call.1} parent=399 // pred_check
                _
              $region413: #{tpu_custom_call.1} parent=399 // pred_check_branch
                %902 = sbr.rel (%p899) target = $region415
              $region414: #{tpu_custom_call.1} parent=399 // pred_region
                %s903 = sand.u32 1, 7
                %s904 = ssub.s32 1, %s903
                %s905 = scalar_lea.vmem %s876, %s904
                %s906 = ssub.s32 1, %s903
                %s907 = scalar_lea.vmem %s878, %s906 [#allocation2]
                %s908 = sshllo.u32 0, %s903
                loop: start=0, step=1, limit=1
                $region416: #{tpu_custom_call.1} parent=414 // loop_pre_header
                  _
                $region417: #{tpu_custom_call.1} parent=414 // loop_header
                  %s910 = sphi 0, %s914
                  %p911 = scmp.ge.s32.totalorder %s910, 1
                  %s915 = sphi %s905, %s905
                  %s916 = sphi %s907, %s907
                $region418: #{tpu_custom_call.1} parent=414 // loop_header_branch
                  %913 = sbr.rel (%p911) target = $region422
                $region419: #{tpu_custom_call.1} parent=414 // loop_body
                  %v917 = vld [vmem:[%s915] sm:%s908]
                  %918 = vst [vmem:[%s916] sm:%s908] %v917
                $region420: #{tpu_custom_call.1} parent=414 // loop_footer
                  %s914 = sadd.s32 1, %s910
                $region421: #{tpu_custom_call.1} parent=414 // loop_footer_branch
                  %909 = sbr.rel target = $region417
                $region422: #{tpu_custom_call.1} parent=414 // loop_exit
                  _
              $region415: #{tpu_custom_call.1} parent=399 // pred_fallthru
                _
            $region400: #{tpu_custom_call.1} parent=303 // pred_fallthru
              _
            // Predicated region
            $region401: #{tpu_custom_call.1} parent=303 // pred_check
              %p884 = pneg %p880
            $region402: #{tpu_custom_call.1} parent=303 // pred_check_branch
              %886 = sbr.rel (%p884) target = $region404
            $region403: #{tpu_custom_call.1} parent=303 // pred_region
              %s887 = sshllo.u32 0, 1
              loop: start=0, step=1, limit=1
              $region405: #{tpu_custom_call.1} parent=403 // loop_pre_header
                _
              $region406: #{tpu_custom_call.1} parent=403 // loop_header
                %s889 = sphi 0, %s893
                %p890 = scmp.ge.s32.totalorder %s889, 1
                %s894 = sphi %s876, %s876
                %s895 = sphi %s878, %s878
              $region407: #{tpu_custom_call.1} parent=403 // loop_header_branch
                %892 = sbr.rel (%p890) target = $region411
              $region408: #{tpu_custom_call.1} parent=403 // loop_body
                %v896 = vld [vmem:[%s894] sm:%s887]
                %897 = vst [vmem:[%s895] sm:%s887] %v896
              $region409: #{tpu_custom_call.1} parent=403 // loop_footer
                %s893 = sadd.s32 1, %s889
              $region410: #{tpu_custom_call.1} parent=403 // loop_footer_branch
                %888 = sbr.rel target = $region406
              $region411: #{tpu_custom_call.1} parent=403 // loop_exit
                _
            $region404: #{tpu_custom_call.1} parent=303 // pred_fallthru
              _
            // Predicated region
            $region423: #{tpu_custom_call.1} parent=303 // pred_check
              _
            $region424: #{tpu_custom_call.1} parent=303 // pred_check_branch
              %921 = sbr.rel (0) target = $region426
            $region425: #{tpu_custom_call.1} parent=303 // pred_region
              %922 = vsyncadd %s728, 16
            $region426: #{tpu_custom_call.1} parent=303 // pred_fallthru
              _
            %s923 = sadd.s32 %s721, 4
            %s924 = sadd.s32 %s714, %s923
            %s925 = sld [smem:[#allocation5 + %s924]]
            %s926 = scalar_lea.vmem %s1, %s925
            %s927 = sadd.s32 %s923, %s725
            %s928 = scalar_lea.vmem [#allocation2], %s927
            %p930 = scmp.lt.u32.totalorder 1, 8
            %p931 = pneg %p930
            // Predicated region
            $region427: #{tpu_custom_call.1} parent=303 // pred_check
              _
            $region428: #{tpu_custom_call.1} parent=303 // pred_check_branch
              %933 = sbr.rel (%p930) target = $region430
            $region429: #{tpu_custom_call.1} parent=303 // pred_region
              %s948 = sand.u32 1, 7
              %p949 = scmp.eq.s32.totalorder %s948, 0
              %p950 = pneg %p949
              // Predicated region
              $region442: #{tpu_custom_call.1} parent=429 // pred_check
                _
              $region443: #{tpu_custom_call.1} parent=429 // pred_check_branch
                %952 = sbr.rel (%p949) target = $region445
              $region444: #{tpu_custom_call.1} parent=429 // pred_region
                %s953 = sand.u32 1, 7
                %s954 = ssub.s32 1, %s953
                %s955 = scalar_lea.vmem %s926, %s954
                %s956 = ssub.s32 1, %s953
                %s957 = scalar_lea.vmem %s928, %s956 [#allocation2]
                %s958 = sshllo.u32 0, %s953
                loop: start=0, step=1, limit=1
                $region446: #{tpu_custom_call.1} parent=444 // loop_pre_header
                  _
                $region447: #{tpu_custom_call.1} parent=444 // loop_header
                  %s960 = sphi 0, %s964
                  %p961 = scmp.ge.s32.totalorder %s960, 1
                  %s965 = sphi %s955, %s955
                  %s966 = sphi %s957, %s957
                $region448: #{tpu_custom_call.1} parent=444 // loop_header_branch
                  %963 = sbr.rel (%p961) target = $region452
                $region449: #{tpu_custom_call.1} parent=444 // loop_body
                  %v967 = vld [vmem:[%s965] sm:%s958]
                  %968 = vst [vmem:[%s966] sm:%s958] %v967
                $region450: #{tpu_custom_call.1} parent=444 // loop_footer
                  %s964 = sadd.s32 1, %s960
                $region451: #{tpu_custom_call.1} parent=444 // loop_footer_branch
                  %959 = sbr.rel target = $region447
                $region452: #{tpu_custom_call.1} parent=444 // loop_exit
                  _
              $region445: #{tpu_custom_call.1} parent=429 // pred_fallthru
                _
            $region430: #{tpu_custom_call.1} parent=303 // pred_fallthru
              _
            // Predicated region
            $region431: #{tpu_custom_call.1} parent=303 // pred_check
              %p934 = pneg %p930
            $region432: #{tpu_custom_call.1} parent=303 // pred_check_branch
              %936 = sbr.rel (%p934) target = $region434
            $region433: #{tpu_custom_call.1} parent=303 // pred_region
              %s937 = sshllo.u32 0, 1
              loop: start=0, step=1, limit=1
              $region435: #{tpu_custom_call.1} parent=433 // loop_pre_header
                _
              $region436: #{tpu_custom_call.1} parent=433 // loop_header
                %s939 = sphi 0, %s943
                %p940 = scmp.ge.s32.totalorder %s939, 1
                %s944 = sphi %s926, %s926
                %s945 = sphi %s928, %s928
              $region437: #{tpu_custom_call.1} parent=433 // loop_header_branch
                %942 = sbr.rel (%p940) target = $region441
              $region438: #{tpu_custom_call.1} parent=433 // loop_body
                %v946 = vld [vmem:[%s944] sm:%s937]
                %947 = vst [vmem:[%s945] sm:%s937] %v946
              $region439: #{tpu_custom_call.1} parent=433 // loop_footer
                %s943 = sadd.s32 1, %s939
              $region440: #{tpu_custom_call.1} parent=433 // loop_footer_branch
                %938 = sbr.rel target = $region436
              $region441: #{tpu_custom_call.1} parent=433 // loop_exit
                _
            $region434: #{tpu_custom_call.1} parent=303 // pred_fallthru
              _
            // Predicated region
            $region453: #{tpu_custom_call.1} parent=303 // pred_check
              _
            $region454: #{tpu_custom_call.1} parent=303 // pred_check_branch
              %971 = sbr.rel (0) target = $region456
            $region455: #{tpu_custom_call.1} parent=303 // pred_region
              %972 = vsyncadd %s728, 16
            $region456: #{tpu_custom_call.1} parent=303 // pred_fallthru
              _
            %s973 = sadd.s32 %s721, 5
            %s974 = sadd.s32 %s714, %s973
            %s975 = sld [smem:[#allocation5 + %s974]]
            %s976 = scalar_lea.vmem %s1, %s975
            %s977 = sadd.s32 %s973, %s725
            %s978 = scalar_lea.vmem [#allocation2], %s977
            %p980 = scmp.lt.u32.totalorder 1, 8
            %p981 = pneg %p980
            // Predicated region
            $region457: #{tpu_custom_call.1} parent=303 // pred_check
              _
            $region458: #{tpu_custom_call.1} parent=303 // pred_check_branch
              %983 = sbr.rel (%p980) target = $region460
            $region459: #{tpu_custom_call.1} parent=303 // pred_region
              %s998 = sand.u32 1, 7
              %p999 = scmp.eq.s32.totalorder %s998, 0
              %p1000 = pneg %p999
              // Predicated region
              $region472: #{tpu_custom_call.1} parent=459 // pred_check
                _
              $region473: #{tpu_custom_call.1} parent=459 // pred_check_branch
                %1002 = sbr.rel (%p999) target = $region475
              $region474: #{tpu_custom_call.1} parent=459 // pred_region
                %s1003 = sand.u32 1, 7
                %s1004 = ssub.s32 1, %s1003
                %s1005 = scalar_lea.vmem %s976, %s1004
                %s1006 = ssub.s32 1, %s1003
                %s1007 = scalar_lea.vmem %s978, %s1006 [#allocation2]
                %s1008 = sshllo.u32 0, %s1003
                loop: start=0, step=1, limit=1
                $region476: #{tpu_custom_call.1} parent=474 // loop_pre_header
                  _
                $region477: #{tpu_custom_call.1} parent=474 // loop_header
                  %s1010 = sphi 0, %s1014
                  %p1011 = scmp.ge.s32.totalorder %s1010, 1
                  %s1015 = sphi %s1005, %s1005
                  %s1016 = sphi %s1007, %s1007
                $region478: #{tpu_custom_call.1} parent=474 // loop_header_branch
                  %1013 = sbr.rel (%p1011) target = $region482
                $region479: #{tpu_custom_call.1} parent=474 // loop_body
                  %v1017 = vld [vmem:[%s1015] sm:%s1008]
                  %1018 = vst [vmem:[%s1016] sm:%s1008] %v1017
                $region480: #{tpu_custom_call.1} parent=474 // loop_footer
                  %s1014 = sadd.s32 1, %s1010
                $region481: #{tpu_custom_call.1} parent=474 // loop_footer_branch
                  %1009 = sbr.rel target = $region477
                $region482: #{tpu_custom_call.1} parent=474 // loop_exit
                  _
              $region475: #{tpu_custom_call.1} parent=459 // pred_fallthru
                _
            $region460: #{tpu_custom_call.1} parent=303 // pred_fallthru
              _
            // Predicated region
            $region461: #{tpu_custom_call.1} parent=303 // pred_check
              %p984 = pneg %p980
            $region462: #{tpu_custom_call.1} parent=303 // pred_check_branch
              %986 = sbr.rel (%p984) target = $region464
            $region463: #{tpu_custom_call.1} parent=303 // pred_region
              %s987 = sshllo.u32 0, 1
              loop: start=0, step=1, limit=1
              $region465: #{tpu_custom_call.1} parent=463 // loop_pre_header
                _
              $region466: #{tpu_custom_call.1} parent=463 // loop_header
                %s989 = sphi 0, %s993
                %p990 = scmp.ge.s32.totalorder %s989, 1
                %s994 = sphi %s976, %s976
                %s995 = sphi %s978, %s978
              $region467: #{tpu_custom_call.1} parent=463 // loop_header_branch
                %992 = sbr.rel (%p990) target = $region471
              $region468: #{tpu_custom_call.1} parent=463 // loop_body
                %v996 = vld [vmem:[%s994] sm:%s987]
                %997 = vst [vmem:[%s995] sm:%s987] %v996
              $region469: #{tpu_custom_call.1} parent=463 // loop_footer
                %s993 = sadd.s32 1, %s989
              $region470: #{tpu_custom_call.1} parent=463 // loop_footer_branch
                %988 = sbr.rel target = $region466
              $region471: #{tpu_custom_call.1} parent=463 // loop_exit
                _
            $region464: #{tpu_custom_call.1} parent=303 // pred_fallthru
              _
            // Predicated region
            $region483: #{tpu_custom_call.1} parent=303 // pred_check
              _
            $region484: #{tpu_custom_call.1} parent=303 // pred_check_branch
              %1021 = sbr.rel (0) target = $region486
            $region485: #{tpu_custom_call.1} parent=303 // pred_region
              %1022 = vsyncadd %s728, 16
            $region486: #{tpu_custom_call.1} parent=303 // pred_fallthru
              _
            %s1023 = sadd.s32 %s721, 6
            %s1024 = sadd.s32 %s714, %s1023
            %s1025 = sld [smem:[#allocation5 + %s1024]]
            %s1026 = scalar_lea.vmem %s1, %s1025
            %s1027 = sadd.s32 %s1023, %s725
            %s1028 = scalar_lea.vmem [#allocation2], %s1027
            %p1030 = scmp.lt.u32.totalorder 1, 8
            %p1031 = pneg %p1030
            // Predicated region
            $region487: #{tpu_custom_call.1} parent=303 // pred_check
              _
            $region488: #{tpu_custom_call.1} parent=303 // pred_check_branch
              %1033 = sbr.rel (%p1030) target = $region490
            $region489: #{tpu_custom_call.1} parent=303 // pred_region
              %s1048 = sand.u32 1, 7
              %p1049 = scmp.eq.s32.totalorder %s1048, 0
              %p1050 = pneg %p1049
              // Predicated region
              $region502: #{tpu_custom_call.1} parent=489 // pred_check
                _
              $region503: #{tpu_custom_call.1} parent=489 // pred_check_branch
                %1052 = sbr.rel (%p1049) target = $region505
              $region504: #{tpu_custom_call.1} parent=489 // pred_region
                %s1053 = sand.u32 1, 7
                %s1054 = ssub.s32 1, %s1053
                %s1055 = scalar_lea.vmem %s1026, %s1054
                %s1056 = ssub.s32 1, %s1053
                %s1057 = scalar_lea.vmem %s1028, %s1056 [#allocation2]
                %s1058 = sshllo.u32 0, %s1053
                loop: start=0, step=1, limit=1
                $region506: #{tpu_custom_call.1} parent=504 // loop_pre_header
                  _
                $region507: #{tpu_custom_call.1} parent=504 // loop_header
                  %s1060 = sphi 0, %s1064
                  %p1061 = scmp.ge.s32.totalorder %s1060, 1
                  %s1065 = sphi %s1055, %s1055
                  %s1066 = sphi %s1057, %s1057
                $region508: #{tpu_custom_call.1} parent=504 // loop_header_branch
                  %1063 = sbr.rel (%p1061) target = $region512
                $region509: #{tpu_custom_call.1} parent=504 // loop_body
                  %v1067 = vld [vmem:[%s1065] sm:%s1058]
                  %1068 = vst [vmem:[%s1066] sm:%s1058] %v1067
                $region510: #{tpu_custom_call.1} parent=504 // loop_footer
                  %s1064 = sadd.s32 1, %s1060
                $region511: #{tpu_custom_call.1} parent=504 // loop_footer_branch
                  %1059 = sbr.rel target = $region507
                $region512: #{tpu_custom_call.1} parent=504 // loop_exit
                  _
              $region505: #{tpu_custom_call.1} parent=489 // pred_fallthru
                _
            $region490: #{tpu_custom_call.1} parent=303 // pred_fallthru
              _
            // Predicated region
            $region491: #{tpu_custom_call.1} parent=303 // pred_check
              %p1034 = pneg %p1030
            $region492: #{tpu_custom_call.1} parent=303 // pred_check_branch
              %1036 = sbr.rel (%p1034) target = $region494
            $region493: #{tpu_custom_call.1} parent=303 // pred_region
              %s1037 = sshllo.u32 0, 1
              loop: start=0, step=1, limit=1
              $region495: #{tpu_custom_call.1} parent=493 // loop_pre_header
                _
              $region496: #{tpu_custom_call.1} parent=493 // loop_header
                %s1039 = sphi 0, %s1043
                %p1040 = scmp.ge.s32.totalorder %s1039, 1
                %s1044 = sphi %s1026, %s1026
                %s1045 = sphi %s1028, %s1028
              $region497: #{tpu_custom_call.1} parent=493 // loop_header_branch
                %1042 = sbr.rel (%p1040) target = $region501
              $region498: #{tpu_custom_call.1} parent=493 // loop_body
                %v1046 = vld [vmem:[%s1044] sm:%s1037]
                %1047 = vst [vmem:[%s1045] sm:%s1037] %v1046
              $region499: #{tpu_custom_call.1} parent=493 // loop_footer
                %s1043 = sadd.s32 1, %s1039
              $region500: #{tpu_custom_call.1} parent=493 // loop_footer_branch
                %1038 = sbr.rel target = $region496
              $region501: #{tpu_custom_call.1} parent=493 // loop_exit
                _
            $region494: #{tpu_custom_call.1} parent=303 // pred_fallthru
              _
            // Predicated region
            $region513: #{tpu_custom_call.1} parent=303 // pred_check
              _
            $region514: #{tpu_custom_call.1} parent=303 // pred_check_branch
              %1071 = sbr.rel (0) target = $region516
            $region515: #{tpu_custom_call.1} parent=303 // pred_region
              %1072 = vsyncadd %s728, 16
            $region516: #{tpu_custom_call.1} parent=303 // pred_fallthru
              _
            %s1073 = sadd.s32 %s721, 7
            %s1074 = sadd.s32 %s714, %s1073
            %s1075 = sld [smem:[#allocation5 + %s1074]]
            %s1076 = scalar_lea.vmem %s1, %s1075
            %s1077 = sadd.s32 %s1073, %s725
            %s1078 = scalar_lea.vmem [#allocation2], %s1077
            %p1080 = scmp.lt.u32.totalorder 1, 8
            %p1081 = pneg %p1080
            // Predicated region
            $region517: #{tpu_custom_call.1} parent=303 // pred_check
              _
            $region518: #{tpu_custom_call.1} parent=303 // pred_check_branch
              %1083 = sbr.rel (%p1080) target = $region520
            $region519: #{tpu_custom_call.1} parent=303 // pred_region
              %s1098 = sand.u32 1, 7
              %p1099 = scmp.eq.s32.totalorder %s1098, 0
              %p1100 = pneg %p1099
              // Predicated region
              $region532: #{tpu_custom_call.1} parent=519 // pred_check
                _
              $region533: #{tpu_custom_call.1} parent=519 // pred_check_branch
                %1102 = sbr.rel (%p1099) target = $region535
              $region534: #{tpu_custom_call.1} parent=519 // pred_region
                %s1103 = sand.u32 1, 7
                %s1104 = ssub.s32 1, %s1103
                %s1105 = scalar_lea.vmem %s1076, %s1104
                %s1106 = ssub.s32 1, %s1103
                %s1107 = scalar_lea.vmem %s1078, %s1106 [#allocation2]
                %s1108 = sshllo.u32 0, %s1103
                loop: start=0, step=1, limit=1
                $region536: #{tpu_custom_call.1} parent=534 // loop_pre_header
                  _
                $region537: #{tpu_custom_call.1} parent=534 // loop_header
                  %s1110 = sphi 0, %s1114
                  %p1111 = scmp.ge.s32.totalorder %s1110, 1
                  %s1115 = sphi %s1105, %s1105
                  %s1116 = sphi %s1107, %s1107
                $region538: #{tpu_custom_call.1} parent=534 // loop_header_branch
                  %1113 = sbr.rel (%p1111) target = $region542
                $region539: #{tpu_custom_call.1} parent=534 // loop_body
                  %v1117 = vld [vmem:[%s1115] sm:%s1108]
                  %1118 = vst [vmem:[%s1116] sm:%s1108] %v1117
                $region540: #{tpu_custom_call.1} parent=534 // loop_footer
                  %s1114 = sadd.s32 1, %s1110
                $region541: #{tpu_custom_call.1} parent=534 // loop_footer_branch
                  %1109 = sbr.rel target = $region537
                $region542: #{tpu_custom_call.1} parent=534 // loop_exit
                  _
              $region535: #{tpu_custom_call.1} parent=519 // pred_fallthru
                _
            $region520: #{tpu_custom_call.1} parent=303 // pred_fallthru
              _
            // Predicated region
            $region521: #{tpu_custom_call.1} parent=303 // pred_check
              %p1084 = pneg %p1080
            $region522: #{tpu_custom_call.1} parent=303 // pred_check_branch
              %1086 = sbr.rel (%p1084) target = $region524
            $region523: #{tpu_custom_call.1} parent=303 // pred_region
              %s1087 = sshllo.u32 0, 1
              loop: start=0, step=1, limit=1
              $region525: #{tpu_custom_call.1} parent=523 // loop_pre_header
                _
              $region526: #{tpu_custom_call.1} parent=523 // loop_header
                %s1089 = sphi 0, %s1093
                %p1090 = scmp.ge.s32.totalorder %s1089, 1
                %s1094 = sphi %s1076, %s1076
                %s1095 = sphi %s1078, %s1078
              $region527: #{tpu_custom_call.1} parent=523 // loop_header_branch
                %1092 = sbr.rel (%p1090) target = $region531
              $region528: #{tpu_custom_call.1} parent=523 // loop_body
                %v1096 = vld [vmem:[%s1094] sm:%s1087]
                %1097 = vst [vmem:[%s1095] sm:%s1087] %v1096
              $region529: #{tpu_custom_call.1} parent=523 // loop_footer
                %s1093 = sadd.s32 1, %s1089
              $region530: #{tpu_custom_call.1} parent=523 // loop_footer_branch
                %1088 = sbr.rel target = $region526
              $region531: #{tpu_custom_call.1} parent=523 // loop_exit
                _
            $region524: #{tpu_custom_call.1} parent=303 // pred_fallthru
              _
            // Predicated region
            $region543: #{tpu_custom_call.1} parent=303 // pred_check
              _
            $region544: #{tpu_custom_call.1} parent=303 // pred_check_branch
              %1121 = sbr.rel (0) target = $region546
            $region545: #{tpu_custom_call.1} parent=303 // pred_region
              %1122 = vsyncadd %s728, 16
            $region546: #{tpu_custom_call.1} parent=303 // pred_fallthru
              _
          $region304: #{tpu_custom_call.1} parent=298 // loop_footer
            %s720 = sadd.s32 1, %s716
          $region305: #{tpu_custom_call.1} parent=298 // loop_footer_branch
            %715 = sbr.rel target = $region301
          $region306: #{tpu_custom_call.1} parent=298 // loop_exit
            _
        $region299: #{tpu_custom_call.1} parent=39 // pred_fallthru
          _
        %v1123 = vld [vmem:[%s274] sm:$0xff]
        %v1124 = vld [vmem:[%s274 + $0x8] sm:$0xff]
        %v1125 = vld [vmem:[%s274 + $0x10] sm:$0xff]
        %v1126 = vld [vmem:[%s274 + $0x18] sm:$0xff]
        %v1127 = vld [vmem:[%s274 + $0x20] sm:$0xff]
        %v1128 = vld [vmem:[%s274 + $0x28] sm:$0xff]
        %v1129 = vld [vmem:[%s274 + $0x30] sm:$0xff]
        %v1130 = vld [vmem:[%s274 + $0x38] sm:$0xff]
        %v1131 = vld [vmem:[%s274 + $0x40] sm:$0xff]
        %v1132 = vld [vmem:[%s274 + $0x48] sm:$0xff]
        %v1133 = vld [vmem:[%s274 + $0x50] sm:$0xff]
        %v1134 = vld [vmem:[%s274 + $0x58] sm:$0xff]
        %v1135 = vld [vmem:[%s274 + $0x60] sm:$0xff]
        %v1136 = vld [vmem:[%s274 + $0x68] sm:$0xff]
        %v1137 = vld [vmem:[%s274 + $0x70] sm:$0xff]
        %v1138 = vld [vmem:[%s274 + $0x78] sm:$0xff]
        %v1139 = vld [vmem:[%s274 + $0x80] sm:$0xff]
        %v1140 = vld [vmem:[%s274 + $0x88] sm:$0xff]
        %v1141 = vld [vmem:[%s274 + $0x90] sm:$0xff]
        %v1142 = vld [vmem:[%s274 + $0x98] sm:$0xff]
        %v1143 = vld [vmem:[%s274 + $0xa0] sm:$0xff]
        %v1144 = vld [vmem:[%s274 + $0xa8] sm:$0xff]
        %v1145 = vld [vmem:[%s274 + $0xb0] sm:$0xff]
        %v1146 = vld [vmem:[%s274 + $0xb8] sm:$0xff]
        %v1147 = vld [vmem:[%s274 + $0xc0] sm:$0xff]
        %v1148 = vld [vmem:[%s274 + $0xc8] sm:$0xff]
        %v1149 = vld [vmem:[%s274 + $0xd0] sm:$0xff]
        %v1150 = vld [vmem:[%s274 + $0xd8] sm:$0xff]
        %v1151 = vld [vmem:[%s274 + $0xe0] sm:$0xff]
        %v1152 = vld [vmem:[%s274 + $0xe8] sm:$0xff]
        %v1153 = vld [vmem:[%s274 + $0xf0] sm:$0xff]
        %v1154 = vld [vmem:[%s274 + $0xf8] sm:$0xff]
        %v1155 = vld [vmem:[%s4] sm:$0x1]
        %v1156 = vld [vmem:[%s4 + $0x1] sm:$0x1]
        %v1157 = vld [vmem:[%s4 + $0x2] sm:$0x1]
        %vm1158 = vcmp.eq.s32.totalorder %v1123, 1
        %vm1159 = vcmp.eq.s32.totalorder %v1124, 1
        %vm1160 = vcmp.eq.s32.totalorder %v1125, 1
        %vm1161 = vcmp.eq.s32.totalorder %v1126, 1
        %vm1162 = vcmp.eq.s32.totalorder %v1127, 1
        %vm1163 = vcmp.eq.s32.totalorder %v1128, 1
        %vm1164 = vcmp.eq.s32.totalorder %v1129, 1
        %vm1165 = vcmp.eq.s32.totalorder %v1130, 1
        %vm1166 = vcmp.eq.s32.totalorder %v1131, 1
        %vm1167 = vcmp.eq.s32.totalorder %v1132, 1
        %vm1168 = vcmp.eq.s32.totalorder %v1133, 1
        %vm1169 = vcmp.eq.s32.totalorder %v1134, 1
        %vm1170 = vcmp.eq.s32.totalorder %v1135, 1
        %vm1171 = vcmp.eq.s32.totalorder %v1136, 1
        %vm1172 = vcmp.eq.s32.totalorder %v1137, 1
        %vm1173 = vcmp.eq.s32.totalorder %v1138, 1
        %vm1174 = vcmp.eq.s32.totalorder %v1139, 1
        %vm1175 = vcmp.eq.s32.totalorder %v1140, 1
        %vm1176 = vcmp.eq.s32.totalorder %v1141, 1
        %vm1177 = vcmp.eq.s32.totalorder %v1142, 1
        %vm1178 = vcmp.eq.s32.totalorder %v1143, 1
        %vm1179 = vcmp.eq.s32.totalorder %v1144, 1
        %vm1180 = vcmp.eq.s32.totalorder %v1145, 1
        %vm1181 = vcmp.eq.s32.totalorder %v1146, 1
        %vm1182 = vcmp.eq.s32.totalorder %v1147, 1
        %vm1183 = vcmp.eq.s32.totalorder %v1148, 1
        %vm1184 = vcmp.eq.s32.totalorder %v1149, 1
        %vm1185 = vcmp.eq.s32.totalorder %v1150, 1
        %vm1186 = vcmp.eq.s32.totalorder %v1151, 1
        %vm1187 = vcmp.eq.s32.totalorder %v1152, 1
        %vm1188 = vcmp.eq.s32.totalorder %v1153, 1
        %vm1189 = vcmp.eq.s32.totalorder %v1154, 1
        %vm1190 = vcmp.eq.s32.totalorder %v1123, 2
        %vm1191 = vcmp.eq.s32.totalorder %v1124, 2
        %vm1192 = vcmp.eq.s32.totalorder %v1125, 2
        %vm1193 = vcmp.eq.s32.totalorder %v1126, 2
        %vm1194 = vcmp.eq.s32.totalorder %v1127, 2
        %vm1195 = vcmp.eq.s32.totalorder %v1128, 2
        %vm1196 = vcmp.eq.s32.totalorder %v1129, 2
        %vm1197 = vcmp.eq.s32.totalorder %v1130, 2
        %vm1198 = vcmp.eq.s32.totalorder %v1131, 2
        %vm1199 = vcmp.eq.s32.totalorder %v1132, 2
        %vm1200 = vcmp.eq.s32.totalorder %v1133, 2
        %vm1201 = vcmp.eq.s32.totalorder %v1134, 2
        %vm1202 = vcmp.eq.s32.totalorder %v1135, 2
        %vm1203 = vcmp.eq.s32.totalorder %v1136, 2
        %vm1204 = vcmp.eq.s32.totalorder %v1137, 2
        %vm1205 = vcmp.eq.s32.totalorder %v1138, 2
        %vm1206 = vcmp.eq.s32.totalorder %v1139, 2
        %vm1207 = vcmp.eq.s32.totalorder %v1140, 2
        %vm1208 = vcmp.eq.s32.totalorder %v1141, 2
        %vm1209 = vcmp.eq.s32.totalorder %v1142, 2
        %vm1210 = vcmp.eq.s32.totalorder %v1143, 2
        %vm1211 = vcmp.eq.s32.totalorder %v1144, 2
        %vm1212 = vcmp.eq.s32.totalorder %v1145, 2
        %vm1213 = vcmp.eq.s32.totalorder %v1146, 2
        %vm1214 = vcmp.eq.s32.totalorder %v1147, 2
        %vm1215 = vcmp.eq.s32.totalorder %v1148, 2
        %vm1216 = vcmp.eq.s32.totalorder %v1149, 2
        %vm1217 = vcmp.eq.s32.totalorder %v1150, 2
        %vm1218 = vcmp.eq.s32.totalorder %v1151, 2
        %vm1219 = vcmp.eq.s32.totalorder %v1152, 2
        %vm1220 = vcmp.eq.s32.totalorder %v1153, 2
        %vm1221 = vcmp.eq.s32.totalorder %v1154, 2
        %v1222 = vsel %vm1190, 1, 0
        %v1223 = vsel %vm1191, 1, 0
        %v1224 = vsel %vm1192, 1, 0
        %v1225 = vsel %vm1193, 1, 0
        %v1226 = vsel %vm1194, 1, 0
        %v1227 = vsel %vm1195, 1, 0
        %v1228 = vsel %vm1196, 1, 0
        %v1229 = vsel %vm1197, 1, 0
        %v1230 = vsel %vm1198, 1, 0
        %v1231 = vsel %vm1199, 1, 0
        %v1232 = vsel %vm1200, 1, 0
        %v1233 = vsel %vm1201, 1, 0
        %v1234 = vsel %vm1202, 1, 0
        %v1235 = vsel %vm1203, 1, 0
        %v1236 = vsel %vm1204, 1, 0
        %v1237 = vsel %vm1205, 1, 0
        %v1238 = vsel %vm1206, 1, 0
        %v1239 = vsel %vm1207, 1, 0
        %v1240 = vsel %vm1208, 1, 0
        %v1241 = vsel %vm1209, 1, 0
        %v1242 = vsel %vm1210, 1, 0
        %v1243 = vsel %vm1211, 1, 0
        %v1244 = vsel %vm1212, 1, 0
        %v1245 = vsel %vm1213, 1, 0
        %v1246 = vsel %vm1214, 1, 0
        %v1247 = vsel %vm1215, 1, 0
        %v1248 = vsel %vm1216, 1, 0
        %v1249 = vsel %vm1217, 1, 0
        %v1250 = vsel %vm1218, 1, 0
        %v1251 = vsel %vm1219, 1, 0
        %v1252 = vsel %vm1220, 1, 0
        %v1253 = vsel %vm1221, 1, 0
        %1254 = vset.pattern.permute.xlu0 0
        %1255 = vperm.xlu0 %1254, %v1222
        %v1256 = vpop.permute.xlu0 %1255
        %1257 = vset.pattern.permute.xlu0 0
        %1258 = vperm.xlu0 %1257, %v1223
        %v1259 = vpop.permute.xlu0 %1258
        %1260 = vset.pattern.permute.xlu0 0
        %1261 = vperm.xlu0 %1260, %v1224
        %v1262 = vpop.permute.xlu0 %1261
        %1263 = vset.pattern.permute.xlu0 0
        %1264 = vperm.xlu0 %1263, %v1225
        %v1265 = vpop.permute.xlu0 %1264
        %1266 = vset.pattern.permute.xlu0 0
        %1267 = vperm.xlu0 %1266, %v1226
        %v1268 = vpop.permute.xlu0 %1267
        %1269 = vset.pattern.permute.xlu0 0
        %1270 = vperm.xlu0 %1269, %v1227
        %v1271 = vpop.permute.xlu0 %1270
        %1272 = vset.pattern.permute.xlu0 0
        %1273 = vperm.xlu0 %1272, %v1228
        %v1274 = vpop.permute.xlu0 %1273
        %1275 = vset.pattern.permute.xlu0 0
        %1276 = vperm.xlu0 %1275, %v1229
        %v1277 = vpop.permute.xlu0 %1276
        %1278 = vset.pattern.permute.xlu0 0
        %1279 = vperm.xlu0 %1278, %v1230
        %v1280 = vpop.permute.xlu0 %1279
        %1281 = vset.pattern.permute.xlu0 0
        %1282 = vperm.xlu0 %1281, %v1231
        %v1283 = vpop.permute.xlu0 %1282
        %1284 = vset.pattern.permute.xlu0 0
        %1285 = vperm.xlu0 %1284, %v1232
        %v1286 = vpop.permute.xlu0 %1285
        %1287 = vset.pattern.permute.xlu0 0
        %1288 = vperm.xlu0 %1287, %v1233
        %v1289 = vpop.permute.xlu0 %1288
        %1290 = vset.pattern.permute.xlu0 0
        %1291 = vperm.xlu0 %1290, %v1234
        %v1292 = vpop.permute.xlu0 %1291
        %1293 = vset.pattern.permute.xlu0 0
        %1294 = vperm.xlu0 %1293, %v1235
        %v1295 = vpop.permute.xlu0 %1294
        %1296 = vset.pattern.permute.xlu0 0
        %1297 = vperm.xlu0 %1296, %v1236
        %v1298 = vpop.permute.xlu0 %1297
        %1299 = vset.pattern.permute.xlu0 0
        %1300 = vperm.xlu0 %1299, %v1237
        %v1301 = vpop.permute.xlu0 %1300
        %1302 = vset.pattern.permute.xlu0 0
        %1303 = vperm.xlu0 %1302, %v1238
        %v1304 = vpop.permute.xlu0 %1303
        %1305 = vset.pattern.permute.xlu0 0
        %1306 = vperm.xlu0 %1305, %v1239
        %v1307 = vpop.permute.xlu0 %1306
        %1308 = vset.pattern.permute.xlu0 0
        %1309 = vperm.xlu0 %1308, %v1240
        %v1310 = vpop.permute.xlu0 %1309
        %1311 = vset.pattern.permute.xlu0 0
        %1312 = vperm.xlu0 %1311, %v1241
        %v1313 = vpop.permute.xlu0 %1312
        %1314 = vset.pattern.permute.xlu0 0
        %1315 = vperm.xlu0 %1314, %v1242
        %v1316 = vpop.permute.xlu0 %1315
        %1317 = vset.pattern.permute.xlu0 0
        %1318 = vperm.xlu0 %1317, %v1243
        %v1319 = vpop.permute.xlu0 %1318
        %1320 = vset.pattern.permute.xlu0 0
        %1321 = vperm.xlu0 %1320, %v1244
        %v1322 = vpop.permute.xlu0 %1321
        %1323 = vset.pattern.permute.xlu0 0
        %1324 = vperm.xlu0 %1323, %v1245
        %v1325 = vpop.permute.xlu0 %1324
        %1326 = vset.pattern.permute.xlu0 0
        %1327 = vperm.xlu0 %1326, %v1246
        %v1328 = vpop.permute.xlu0 %1327
        %1329 = vset.pattern.permute.xlu0 0
        %1330 = vperm.xlu0 %1329, %v1247
        %v1331 = vpop.permute.xlu0 %1330
        %1332 = vset.pattern.permute.xlu0 0
        %1333 = vperm.xlu0 %1332, %v1248
        %v1334 = vpop.permute.xlu0 %1333
        %1335 = vset.pattern.permute.xlu0 0
        %1336 = vperm.xlu0 %1335, %v1249
        %v1337 = vpop.permute.xlu0 %1336
        %1338 = vset.pattern.permute.xlu0 0
        %1339 = vperm.xlu0 %1338, %v1250
        %v1340 = vpop.permute.xlu0 %1339
        %1341 = vset.pattern.permute.xlu0 0
        %1342 = vperm.xlu0 %1341, %v1251
        %v1343 = vpop.permute.xlu0 %1342
        %1344 = vset.pattern.permute.xlu0 0
        %1345 = vperm.xlu0 %1344, %v1252
        %v1346 = vpop.permute.xlu0 %1345
        %1347 = vset.pattern.permute.xlu0 0
        %1348 = vperm.xlu0 %1347, %v1253
        %v1349 = vpop.permute.xlu0 %1348
        %vm1350 = vcmp.eq.s32.totalorder %v1256, 1
        %vm1351 = vcmp.eq.s32.totalorder %v1259, 1
        %vm1352 = vcmp.eq.s32.totalorder %v1262, 1
        %vm1353 = vcmp.eq.s32.totalorder %v1265, 1
        %vm1354 = vcmp.eq.s32.totalorder %v1268, 1
        %vm1355 = vcmp.eq.s32.totalorder %v1271, 1
        %vm1356 = vcmp.eq.s32.totalorder %v1274, 1
        %vm1357 = vcmp.eq.s32.totalorder %v1277, 1
        %vm1358 = vcmp.eq.s32.totalorder %v1280, 1
        %vm1359 = vcmp.eq.s32.totalorder %v1283, 1
        %vm1360 = vcmp.eq.s32.totalorder %v1286, 1
        %vm1361 = vcmp.eq.s32.totalorder %v1289, 1
        %vm1362 = vcmp.eq.s32.totalorder %v1292, 1
        %vm1363 = vcmp.eq.s32.totalorder %v1295, 1
        %vm1364 = vcmp.eq.s32.totalorder %v1298, 1
        %vm1365 = vcmp.eq.s32.totalorder %v1301, 1
        %vm1366 = vcmp.eq.s32.totalorder %v1304, 1
        %vm1367 = vcmp.eq.s32.totalorder %v1307, 1
        %vm1368 = vcmp.eq.s32.totalorder %v1310, 1
        %vm1369 = vcmp.eq.s32.totalorder %v1313, 1
        %vm1370 = vcmp.eq.s32.totalorder %v1316, 1
        %vm1371 = vcmp.eq.s32.totalorder %v1319, 1
        %vm1372 = vcmp.eq.s32.totalorder %v1322, 1
        %vm1373 = vcmp.eq.s32.totalorder %v1325, 1
        %vm1374 = vcmp.eq.s32.totalorder %v1328, 1
        %vm1375 = vcmp.eq.s32.totalorder %v1331, 1
        %vm1376 = vcmp.eq.s32.totalorder %v1334, 1
        %vm1377 = vcmp.eq.s32.totalorder %v1337, 1
        %vm1378 = vcmp.eq.s32.totalorder %v1340, 1
        %vm1379 = vcmp.eq.s32.totalorder %v1343, 1
        %vm1380 = vcmp.eq.s32.totalorder %v1346, 1
        %vm1381 = vcmp.eq.s32.totalorder %v1349, 1
        %v1382 = vlaneseq
        %v1383 = vshrl.u32 %v1382, 7
        %v1384 = vsub.s32 0, %v1383
        %v1385 = vrot.slane %v1157, %v1384
        %v1386 = vlaneseq
        %v1387 = vshrl.u32 %v1386, 7
        %v1388 = vsub.s32 0, %v1387
        %v1389 = vrot.slane %v1155, %v1388
        %v1390 = vsel %vm1350, %v1385, %v1389
        %v1391 = vsel %vm1351, %v1385, %v1389
        %v1392 = vsel %vm1352, %v1385, %v1389
        %v1393 = vsel %vm1353, %v1385, %v1389
        %v1394 = vsel %vm1354, %v1385, %v1389
        %v1395 = vsel %vm1355, %v1385, %v1389
        %v1396 = vsel %vm1356, %v1385, %v1389
        %v1397 = vsel %vm1357, %v1385, %v1389
        %v1398 = vsel %vm1358, %v1385, %v1389
        %v1399 = vsel %vm1359, %v1385, %v1389
        %v1400 = vsel %vm1360, %v1385, %v1389
        %v1401 = vsel %vm1361, %v1385, %v1389
        %v1402 = vsel %vm1362, %v1385, %v1389
        %v1403 = vsel %vm1363, %v1385, %v1389
        %v1404 = vsel %vm1364, %v1385, %v1389
        %v1405 = vsel %vm1365, %v1385, %v1389
        %v1406 = vsel %vm1366, %v1385, %v1389
        %v1407 = vsel %vm1367, %v1385, %v1389
        %v1408 = vsel %vm1368, %v1385, %v1389
        %v1409 = vsel %vm1369, %v1385, %v1389
        %v1410 = vsel %vm1370, %v1385, %v1389
        %v1411 = vsel %vm1371, %v1385, %v1389
        %v1412 = vsel %vm1372, %v1385, %v1389
        %v1413 = vsel %vm1373, %v1385, %v1389
        %v1414 = vsel %vm1374, %v1385, %v1389
        %v1415 = vsel %vm1375, %v1385, %v1389
        %v1416 = vsel %vm1376, %v1385, %v1389
        %v1417 = vsel %vm1377, %v1385, %v1389
        %v1418 = vsel %vm1378, %v1385, %v1389
        %v1419 = vsel %vm1379, %v1385, %v1389
        %v1420 = vsel %vm1380, %v1385, %v1389
        %v1421 = vsel %vm1381, %v1385, %v1389
        %v1422 = vsel %vm1158, 1, 0
        %v1423 = vsel %vm1159, 1, 0
        %v1424 = vsel %vm1160, 1, 0
        %v1425 = vsel %vm1161, 1, 0
        %v1426 = vsel %vm1162, 1, 0
        %v1427 = vsel %vm1163, 1, 0
        %v1428 = vsel %vm1164, 1, 0
        %v1429 = vsel %vm1165, 1, 0
        %v1430 = vsel %vm1166, 1, 0
        %v1431 = vsel %vm1167, 1, 0
        %v1432 = vsel %vm1168, 1, 0
        %v1433 = vsel %vm1169, 1, 0
        %v1434 = vsel %vm1170, 1, 0
        %v1435 = vsel %vm1171, 1, 0
        %v1436 = vsel %vm1172, 1, 0
        %v1437 = vsel %vm1173, 1, 0
        %v1438 = vsel %vm1174, 1, 0
        %v1439 = vsel %vm1175, 1, 0
        %v1440 = vsel %vm1176, 1, 0
        %v1441 = vsel %vm1177, 1, 0
        %v1442 = vsel %vm1178, 1, 0
        %v1443 = vsel %vm1179, 1, 0
        %v1444 = vsel %vm1180, 1, 0
        %v1445 = vsel %vm1181, 1, 0
        %v1446 = vsel %vm1182, 1, 0
        %v1447 = vsel %vm1183, 1, 0
        %v1448 = vsel %vm1184, 1, 0
        %v1449 = vsel %vm1185, 1, 0
        %v1450 = vsel %vm1186, 1, 0
        %v1451 = vsel %vm1187, 1, 0
        %v1452 = vsel %vm1188, 1, 0
        %v1453 = vsel %vm1189, 1, 0
        %1454 = vset.pattern.permute.xlu0 0
        %1455 = vperm.xlu0 %1454, %v1422
        %v1456 = vpop.permute.xlu0 %1455
        %1457 = vset.pattern.permute.xlu0 0
        %1458 = vperm.xlu0 %1457, %v1423
        %v1459 = vpop.permute.xlu0 %1458
        %1460 = vset.pattern.permute.xlu0 0
        %1461 = vperm.xlu0 %1460, %v1424
        %v1462 = vpop.permute.xlu0 %1461
        %1463 = vset.pattern.permute.xlu0 0
        %1464 = vperm.xlu0 %1463, %v1425
        %v1465 = vpop.permute.xlu0 %1464
        %1466 = vset.pattern.permute.xlu0 0
        %1467 = vperm.xlu0 %1466, %v1426
        %v1468 = vpop.permute.xlu0 %1467
        %1469 = vset.pattern.permute.xlu0 0
        %1470 = vperm.xlu0 %1469, %v1427
        %v1471 = vpop.permute.xlu0 %1470
        %1472 = vset.pattern.permute.xlu0 0
        %1473 = vperm.xlu0 %1472, %v1428
        %v1474 = vpop.permute.xlu0 %1473
        %1475 = vset.pattern.permute.xlu0 0
        %1476 = vperm.xlu0 %1475, %v1429
        %v1477 = vpop.permute.xlu0 %1476
        %1478 = vset.pattern.permute.xlu0 0
        %1479 = vperm.xlu0 %1478, %v1430
        %v1480 = vpop.permute.xlu0 %1479
        %1481 = vset.pattern.permute.xlu0 0
        %1482 = vperm.xlu0 %1481, %v1431
        %v1483 = vpop.permute.xlu0 %1482
        %1484 = vset.pattern.permute.xlu0 0
        %1485 = vperm.xlu0 %1484, %v1432
        %v1486 = vpop.permute.xlu0 %1485
        %1487 = vset.pattern.permute.xlu0 0
        %1488 = vperm.xlu0 %1487, %v1433
        %v1489 = vpop.permute.xlu0 %1488
        %1490 = vset.pattern.permute.xlu0 0
        %1491 = vperm.xlu0 %1490, %v1434
        %v1492 = vpop.permute.xlu0 %1491
        %1493 = vset.pattern.permute.xlu0 0
        %1494 = vperm.xlu0 %1493, %v1435
        %v1495 = vpop.permute.xlu0 %1494
        %1496 = vset.pattern.permute.xlu0 0
        %1497 = vperm.xlu0 %1496, %v1436
        %v1498 = vpop.permute.xlu0 %1497
        %1499 = vset.pattern.permute.xlu0 0
        %1500 = vperm.xlu0 %1499, %v1437
        %v1501 = vpop.permute.xlu0 %1500
        %1502 = vset.pattern.permute.xlu0 0
        %1503 = vperm.xlu0 %1502, %v1438
        %v1504 = vpop.permute.xlu0 %1503
        %1505 = vset.pattern.permute.xlu0 0
        %1506 = vperm.xlu0 %1505, %v1439
        %v1507 = vpop.permute.xlu0 %1506
        %1508 = vset.pattern.permute.xlu0 0
        %1509 = vperm.xlu0 %1508, %v1440
        %v1510 = vpop.permute.xlu0 %1509
        %1511 = vset.pattern.permute.xlu0 0
        %1512 = vperm.xlu0 %1511, %v1441
        %v1513 = vpop.permute.xlu0 %1512
        %1514 = vset.pattern.permute.xlu0 0
        %1515 = vperm.xlu0 %1514, %v1442
        %v1516 = vpop.permute.xlu0 %1515
        %1517 = vset.pattern.permute.xlu0 0
        %1518 = vperm.xlu0 %1517, %v1443
        %v1519 = vpop.permute.xlu0 %1518
        %1520 = vset.pattern.permute.xlu0 0
        %1521 = vperm.xlu0 %1520, %v1444
        %v1522 = vpop.permute.xlu0 %1521
        %1523 = vset.pattern.permute.xlu0 0
        %1524 = vperm.xlu0 %1523, %v1445
        %v1525 = vpop.permute.xlu0 %1524
        %1526 = vset.pattern.permute.xlu0 0
        %1527 = vperm.xlu0 %1526, %v1446
        %v1528 = vpop.permute.xlu0 %1527
        %1529 = vset.pattern.permute.xlu0 0
        %1530 = vperm.xlu0 %1529, %v1447
        %v1531 = vpop.permute.xlu0 %1530
        %1532 = vset.pattern.permute.xlu0 0
        %1533 = vperm.xlu0 %1532, %v1448
        %v1534 = vpop.permute.xlu0 %1533
        %1535 = vset.pattern.permute.xlu0 0
        %1536 = vperm.xlu0 %1535, %v1449
        %v1537 = vpop.permute.xlu0 %1536
        %1538 = vset.pattern.permute.xlu0 0
        %1539 = vperm.xlu0 %1538, %v1450
        %v1540 = vpop.permute.xlu0 %1539
        %1541 = vset.pattern.permute.xlu0 0
        %1542 = vperm.xlu0 %1541, %v1451
        %v1543 = vpop.permute.xlu0 %1542
        %1544 = vset.pattern.permute.xlu0 0
        %1545 = vperm.xlu0 %1544, %v1452
        %v1546 = vpop.permute.xlu0 %1545
        %1547 = vset.pattern.permute.xlu0 0
        %1548 = vperm.xlu0 %1547, %v1453
        %v1549 = vpop.permute.xlu0 %1548
        %vm1550 = vcmp.eq.s32.totalorder %v1456, 1
        %vm1551 = vcmp.eq.s32.totalorder %v1459, 1
        %vm1552 = vcmp.eq.s32.totalorder %v1462, 1
        %vm1553 = vcmp.eq.s32.totalorder %v1465, 1
        %vm1554 = vcmp.eq.s32.totalorder %v1468, 1
        %vm1555 = vcmp.eq.s32.totalorder %v1471, 1
        %vm1556 = vcmp.eq.s32.totalorder %v1474, 1
        %vm1557 = vcmp.eq.s32.totalorder %v1477, 1
        %vm1558 = vcmp.eq.s32.totalorder %v1480, 1
        %vm1559 = vcmp.eq.s32.totalorder %v1483, 1
        %vm1560 = vcmp.eq.s32.totalorder %v1486, 1
        %vm1561 = vcmp.eq.s32.totalorder %v1489, 1
        %vm1562 = vcmp.eq.s32.totalorder %v1492, 1
        %vm1563 = vcmp.eq.s32.totalorder %v1495, 1
        %vm1564 = vcmp.eq.s32.totalorder %v1498, 1
        %vm1565 = vcmp.eq.s32.totalorder %v1501, 1
        %vm1566 = vcmp.eq.s32.totalorder %v1504, 1
        %vm1567 = vcmp.eq.s32.totalorder %v1507, 1
        %vm1568 = vcmp.eq.s32.totalorder %v1510, 1
        %vm1569 = vcmp.eq.s32.totalorder %v1513, 1
        %vm1570 = vcmp.eq.s32.totalorder %v1516, 1
        %vm1571 = vcmp.eq.s32.totalorder %v1519, 1
        %vm1572 = vcmp.eq.s32.totalorder %v1522, 1
        %vm1573 = vcmp.eq.s32.totalorder %v1525, 1
        %vm1574 = vcmp.eq.s32.totalorder %v1528, 1
        %vm1575 = vcmp.eq.s32.totalorder %v1531, 1
        %vm1576 = vcmp.eq.s32.totalorder %v1534, 1
        %vm1577 = vcmp.eq.s32.totalorder %v1537, 1
        %vm1578 = vcmp.eq.s32.totalorder %v1540, 1
        %vm1579 = vcmp.eq.s32.totalorder %v1543, 1
        %vm1580 = vcmp.eq.s32.totalorder %v1546, 1
        %vm1581 = vcmp.eq.s32.totalorder %v1549, 1
        %v1582 = vlaneseq
        %v1583 = vshrl.u32 %v1582, 7
        %v1584 = vsub.s32 0, %v1583
        %v1585 = vrot.slane %v1156, %v1584
        %v1586 = vsel %vm1550, %v1585, %v1390
        %v1587 = vsel %vm1551, %v1585, %v1391
        %v1588 = vsel %vm1552, %v1585, %v1392
        %v1589 = vsel %vm1553, %v1585, %v1393
        %v1590 = vsel %vm1554, %v1585, %v1394
        %v1591 = vsel %vm1555, %v1585, %v1395
        %v1592 = vsel %vm1556, %v1585, %v1396
        %v1593 = vsel %vm1557, %v1585, %v1397
        %v1594 = vsel %vm1558, %v1585, %v1398
        %v1595 = vsel %vm1559, %v1585, %v1399
        %v1596 = vsel %vm1560, %v1585, %v1400
        %v1597 = vsel %vm1561, %v1585, %v1401
        %v1598 = vsel %vm1562, %v1585, %v1402
        %v1599 = vsel %vm1563, %v1585, %v1403
        %v1600 = vsel %vm1564, %v1585, %v1404
        %v1601 = vsel %vm1565, %v1585, %v1405
        %v1602 = vsel %vm1566, %v1585, %v1406
        %v1603 = vsel %vm1567, %v1585, %v1407
        %v1604 = vsel %vm1568, %v1585, %v1408
        %v1605 = vsel %vm1569, %v1585, %v1409
        %v1606 = vsel %vm1570, %v1585, %v1410
        %v1607 = vsel %vm1571, %v1585, %v1411
        %v1608 = vsel %vm1572, %v1585, %v1412
        %v1609 = vsel %vm1573, %v1585, %v1413
        %v1610 = vsel %vm1574, %v1585, %v1414
        %v1611 = vsel %vm1575, %v1585, %v1415
        %v1612 = vsel %vm1576, %v1585, %v1416
        %v1613 = vsel %vm1577, %v1585, %v1417
        %v1614 = vsel %vm1578, %v1585, %v1418
        %v1615 = vsel %vm1579, %v1585, %v1419
        %v1616 = vsel %vm1580, %v1585, %v1420
        %v1617 = vsel %vm1581, %v1585, %v1421
        %s1618 = smul.u32 %s33, 256
        %s1619 = scalar_lea.vmem [#allocation6], %s1618
        %v1620 = vld [vmem:[%s1619] sm:$0xff]
        %v1621 = vld [vmem:[%s1619 + $0x8] sm:$0xff]
        %v1622 = vld [vmem:[%s1619 + $0x10] sm:$0xff]
        %v1623 = vld [vmem:[%s1619 + $0x18] sm:$0xff]
        %v1624 = vld [vmem:[%s1619 + $0x20] sm:$0xff]
        %v1625 = vld [vmem:[%s1619 + $0x28] sm:$0xff]
        %v1626 = vld [vmem:[%s1619 + $0x30] sm:$0xff]
        %v1627 = vld [vmem:[%s1619 + $0x38] sm:$0xff]
        %v1628 = vld [vmem:[%s1619 + $0x40] sm:$0xff]
        %v1629 = vld [vmem:[%s1619 + $0x48] sm:$0xff]
        %v1630 = vld [vmem:[%s1619 + $0x50] sm:$0xff]
        %v1631 = vld [vmem:[%s1619 + $0x58] sm:$0xff]
        %v1632 = vld [vmem:[%s1619 + $0x60] sm:$0xff]
        %v1633 = vld [vmem:[%s1619 + $0x68] sm:$0xff]
        %v1634 = vld [vmem:[%s1619 + $0x70] sm:$0xff]
        %v1635 = vld [vmem:[%s1619 + $0x78] sm:$0xff]
        %v1636 = vld [vmem:[%s1619 + $0x80] sm:$0xff]
        %v1637 = vld [vmem:[%s1619 + $0x88] sm:$0xff]
        %v1638 = vld [vmem:[%s1619 + $0x90] sm:$0xff]
        %v1639 = vld [vmem:[%s1619 + $0x98] sm:$0xff]
        %v1640 = vld [vmem:[%s1619 + $0xa0] sm:$0xff]
        %v1641 = vld [vmem:[%s1619 + $0xa8] sm:$0xff]
        %v1642 = vld [vmem:[%s1619 + $0xb0] sm:$0xff]
        %v1643 = vld [vmem:[%s1619 + $0xb8] sm:$0xff]
        %v1644 = vld [vmem:[%s1619 + $0xc0] sm:$0xff]
        %v1645 = vld [vmem:[%s1619 + $0xc8] sm:$0xff]
        %v1646 = vld [vmem:[%s1619 + $0xd0] sm:$0xff]
        %v1647 = vld [vmem:[%s1619 + $0xd8] sm:$0xff]
        %v1648 = vld [vmem:[%s1619 + $0xe0] sm:$0xff]
        %v1649 = vld [vmem:[%s1619 + $0xe8] sm:$0xff]
        %v1650 = vld [vmem:[%s1619 + $0xf0] sm:$0xff]
        %v1651 = vld [vmem:[%s1619 + $0xf8] sm:$0xff]
        %v1652 = vadd.f32 %v1586, %v1620
        %v1653 = vadd.f32 %v1587, %v1621
        %v1654 = vadd.f32 %v1588, %v1622
        %v1655 = vadd.f32 %v1589, %v1623
        %v1656 = vadd.f32 %v1590, %v1624
        %v1657 = vadd.f32 %v1591, %v1625
        %v1658 = vadd.f32 %v1592, %v1626
        %v1659 = vadd.f32 %v1593, %v1627
        %v1660 = vadd.f32 %v1594, %v1628
        %v1661 = vadd.f32 %v1595, %v1629
        %v1662 = vadd.f32 %v1596, %v1630
        %v1663 = vadd.f32 %v1597, %v1631
        %v1664 = vadd.f32 %v1598, %v1632
        %v1665 = vadd.f32 %v1599, %v1633
        %v1666 = vadd.f32 %v1600, %v1634
        %v1667 = vadd.f32 %v1601, %v1635
        %v1668 = vadd.f32 %v1602, %v1636
        %v1669 = vadd.f32 %v1603, %v1637
        %v1670 = vadd.f32 %v1604, %v1638
        %v1671 = vadd.f32 %v1605, %v1639
        %v1672 = vadd.f32 %v1606, %v1640
        %v1673 = vadd.f32 %v1607, %v1641
        %v1674 = vadd.f32 %v1608, %v1642
        %v1675 = vadd.f32 %v1609, %v1643
        %v1676 = vadd.f32 %v1610, %v1644
        %v1677 = vadd.f32 %v1611, %v1645
        %v1678 = vadd.f32 %v1612, %v1646
        %v1679 = vadd.f32 %v1613, %v1647
        %v1680 = vadd.f32 %v1614, %v1648
        %v1681 = vadd.f32 %v1615, %v1649
        %v1682 = vadd.f32 %v1616, %v1650
        %v1683 = vadd.f32 %v1617, %v1651
        %s1684 = smul.u32 %s292, 256
        %s1685 = scalar_lea.vmem [#allocation2], %s1684
        %s1686 = scalar_lea.sflag [#allocation3], %s292
        %s1687 = smul.u32 256, 1
        %s1688 = sshll.u32 %s1687, 4
        %1689 = dma.done %s1686, %s1688
        %v1690 = vld [vmem:[%s1685] sm:$0xff]
        %v1691 = vld [vmem:[%s1685 + $0x8] sm:$0xff]
        %v1692 = vld [vmem:[%s1685 + $0x10] sm:$0xff]
        %v1693 = vld [vmem:[%s1685 + $0x18] sm:$0xff]
        %v1694 = vld [vmem:[%s1685 + $0x20] sm:$0xff]
        %v1695 = vld [vmem:[%s1685 + $0x28] sm:$0xff]
        %v1696 = vld [vmem:[%s1685 + $0x30] sm:$0xff]
        %v1697 = vld [vmem:[%s1685 + $0x38] sm:$0xff]
        %v1698 = vld [vmem:[%s1685 + $0x40] sm:$0xff]
        %v1699 = vld [vmem:[%s1685 + $0x48] sm:$0xff]
        %v1700 = vld [vmem:[%s1685 + $0x50] sm:$0xff]
        %v1701 = vld [vmem:[%s1685 + $0x58] sm:$0xff]
        %v1702 = vld [vmem:[%s1685 + $0x60] sm:$0xff]
        %v1703 = vld [vmem:[%s1685 + $0x68] sm:$0xff]
        %v1704 = vld [vmem:[%s1685 + $0x70] sm:$0xff]
        %v1705 = vld [vmem:[%s1685 + $0x78] sm:$0xff]
        %v1706 = vld [vmem:[%s1685 + $0x80] sm:$0xff]
        %v1707 = vld [vmem:[%s1685 + $0x88] sm:$0xff]
        %v1708 = vld [vmem:[%s1685 + $0x90] sm:$0xff]
        %v1709 = vld [vmem:[%s1685 + $0x98] sm:$0xff]
        %v1710 = vld [vmem:[%s1685 + $0xa0] sm:$0xff]
        %v1711 = vld [vmem:[%s1685 + $0xa8] sm:$0xff]
        %v1712 = vld [vmem:[%s1685 + $0xb0] sm:$0xff]
        %v1713 = vld [vmem:[%s1685 + $0xb8] sm:$0xff]
        %v1714 = vld [vmem:[%s1685 + $0xc0] sm:$0xff]
        %v1715 = vld [vmem:[%s1685 + $0xc8] sm:$0xff]
        %v1716 = vld [vmem:[%s1685 + $0xd0] sm:$0xff]
        %v1717 = vld [vmem:[%s1685 + $0xd8] sm:$0xff]
        %v1718 = vld [vmem:[%s1685 + $0xe0] sm:$0xff]
        %v1719 = vld [vmem:[%s1685 + $0xe8] sm:$0xff]
        %v1720 = vld [vmem:[%s1685 + $0xf0] sm:$0xff]
        %v1721 = vld [vmem:[%s1685 + $0xf8] sm:$0xff]
        %v1722 = vadd.f32 %v1690, %v1652
        %v1723 = vadd.f32 %v1691, %v1653
        %v1724 = vadd.f32 %v1692, %v1654
        %v1725 = vadd.f32 %v1693, %v1655
        %v1726 = vadd.f32 %v1694, %v1656
        %v1727 = vadd.f32 %v1695, %v1657
        %v1728 = vadd.f32 %v1696, %v1658
        %v1729 = vadd.f32 %v1697, %v1659
        %v1730 = vadd.f32 %v1698, %v1660
        %v1731 = vadd.f32 %v1699, %v1661
        %v1732 = vadd.f32 %v1700, %v1662
        %v1733 = vadd.f32 %v1701, %v1663
        %v1734 = vadd.f32 %v1702, %v1664
        %v1735 = vadd.f32 %v1703, %v1665
        %v1736 = vadd.f32 %v1704, %v1666
        %v1737 = vadd.f32 %v1705, %v1667
        %v1738 = vadd.f32 %v1706, %v1668
        %v1739 = vadd.f32 %v1707, %v1669
        %v1740 = vadd.f32 %v1708, %v1670
        %v1741 = vadd.f32 %v1709, %v1671
        %v1742 = vadd.f32 %v1710, %v1672
        %v1743 = vadd.f32 %v1711, %v1673
        %v1744 = vadd.f32 %v1712, %v1674
        %v1745 = vadd.f32 %v1713, %v1675
        %v1746 = vadd.f32 %v1714, %v1676
        %v1747 = vadd.f32 %v1715, %v1677
        %v1748 = vadd.f32 %v1716, %v1678
        %v1749 = vadd.f32 %v1717, %v1679
        %v1750 = vadd.f32 %v1718, %v1680
        %v1751 = vadd.f32 %v1719, %v1681
        %v1752 = vadd.f32 %v1720, %v1682
        %v1753 = vadd.f32 %v1721, %v1683
        %1754 = vadd.xlane.f32.xlu0 %v1722
        %v1755 = vpop.xlane.xlu0 %1754
        %1756 = vadd.xlane.f32.xlu0 %v1723
        %v1757 = vpop.xlane.xlu0 %1756
        %1758 = vadd.xlane.f32.xlu0 %v1724
        %v1759 = vpop.xlane.xlu0 %1758
        %1760 = vadd.xlane.f32.xlu0 %v1725
        %v1761 = vpop.xlane.xlu0 %1760
        %1762 = vadd.xlane.f32.xlu0 %v1726
        %v1763 = vpop.xlane.xlu0 %1762
        %1764 = vadd.xlane.f32.xlu0 %v1727
        %v1765 = vpop.xlane.xlu0 %1764
        %1766 = vadd.xlane.f32.xlu0 %v1728
        %v1767 = vpop.xlane.xlu0 %1766
        %1768 = vadd.xlane.f32.xlu0 %v1729
        %v1769 = vpop.xlane.xlu0 %1768
        %1770 = vadd.xlane.f32.xlu0 %v1730
        %v1771 = vpop.xlane.xlu0 %1770
        %1772 = vadd.xlane.f32.xlu0 %v1731
        %v1773 = vpop.xlane.xlu0 %1772
        %1774 = vadd.xlane.f32.xlu0 %v1732
        %v1775 = vpop.xlane.xlu0 %1774
        %1776 = vadd.xlane.f32.xlu0 %v1733
        %v1777 = vpop.xlane.xlu0 %1776
        %1778 = vadd.xlane.f32.xlu0 %v1734
        %v1779 = vpop.xlane.xlu0 %1778
        %1780 = vadd.xlane.f32.xlu0 %v1735
        %v1781 = vpop.xlane.xlu0 %1780
        %1782 = vadd.xlane.f32.xlu0 %v1736
        %v1783 = vpop.xlane.xlu0 %1782
        %1784 = vadd.xlane.f32.xlu0 %v1737
        %v1785 = vpop.xlane.xlu0 %1784
        %1786 = vadd.xlane.f32.xlu0 %v1738
        %v1787 = vpop.xlane.xlu0 %1786
        %1788 = vadd.xlane.f32.xlu0 %v1739
        %v1789 = vpop.xlane.xlu0 %1788
        %1790 = vadd.xlane.f32.xlu0 %v1740
        %v1791 = vpop.xlane.xlu0 %1790
        %1792 = vadd.xlane.f32.xlu0 %v1741
        %v1793 = vpop.xlane.xlu0 %1792
        %1794 = vadd.xlane.f32.xlu0 %v1742
        %v1795 = vpop.xlane.xlu0 %1794
        %1796 = vadd.xlane.f32.xlu0 %v1743
        %v1797 = vpop.xlane.xlu0 %1796
        %1798 = vadd.xlane.f32.xlu0 %v1744
        %v1799 = vpop.xlane.xlu0 %1798
        %1800 = vadd.xlane.f32.xlu0 %v1745
        %v1801 = vpop.xlane.xlu0 %1800
        %1802 = vadd.xlane.f32.xlu0 %v1746
        %v1803 = vpop.xlane.xlu0 %1802
        %1804 = vadd.xlane.f32.xlu0 %v1747
        %v1805 = vpop.xlane.xlu0 %1804
        %1806 = vadd.xlane.f32.xlu0 %v1748
        %v1807 = vpop.xlane.xlu0 %1806
        %1808 = vadd.xlane.f32.xlu0 %v1749
        %v1809 = vpop.xlane.xlu0 %1808
        %1810 = vadd.xlane.f32.xlu0 %v1750
        %v1811 = vpop.xlane.xlu0 %1810
        %1812 = vadd.xlane.f32.xlu0 %v1751
        %v1813 = vpop.xlane.xlu0 %1812
        %1814 = vadd.xlane.f32.xlu0 %v1752
        %v1815 = vpop.xlane.xlu0 %1814
        %1816 = vadd.xlane.f32.xlu0 %v1753
        %v1817 = vpop.xlane.xlu0 %1816
        %v1818 = vrcp.pop 128.0
        %v1819 = vmul.f32 %v1755, %v1818
        %v1820 = vmul.f32 %v1757, %v1818
        %v1821 = vmul.f32 %v1759, %v1818
        %v1822 = vmul.f32 %v1761, %v1818
        %v1823 = vmul.f32 %v1763, %v1818
        %v1824 = vmul.f32 %v1765, %v1818
        %v1825 = vmul.f32 %v1767, %v1818
        %v1826 = vmul.f32 %v1769, %v1818
        %v1827 = vmul.f32 %v1771, %v1818
        %v1828 = vmul.f32 %v1773, %v1818
        %v1829 = vmul.f32 %v1775, %v1818
        %v1830 = vmul.f32 %v1777, %v1818
        %v1831 = vmul.f32 %v1779, %v1818
        %v1832 = vmul.f32 %v1781, %v1818
        %v1833 = vmul.f32 %v1783, %v1818
        %v1834 = vmul.f32 %v1785, %v1818
        %v1835 = vmul.f32 %v1787, %v1818
        %v1836 = vmul.f32 %v1789, %v1818
        %v1837 = vmul.f32 %v1791, %v1818
        %v1838 = vmul.f32 %v1793, %v1818
        %v1839 = vmul.f32 %v1795, %v1818
        %v1840 = vmul.f32 %v1797, %v1818
        %v1841 = vmul.f32 %v1799, %v1818
        %v1842 = vmul.f32 %v1801, %v1818
        %v1843 = vmul.f32 %v1803, %v1818
        %v1844 = vmul.f32 %v1805, %v1818
        %v1845 = vmul.f32 %v1807, %v1818
        %v1846 = vmul.f32 %v1809, %v1818
        %v1847 = vmul.f32 %v1811, %v1818
        %v1848 = vmul.f32 %v1813, %v1818
        %v1849 = vmul.f32 %v1815, %v1818
        %v1850 = vmul.f32 %v1817, %v1818
        %v1851 = vsub.f32 %v1722, %v1819
        %v1852 = vsub.f32 %v1723, %v1820
        %v1853 = vsub.f32 %v1724, %v1821
        %v1854 = vsub.f32 %v1725, %v1822
        %v1855 = vsub.f32 %v1726, %v1823
        %v1856 = vsub.f32 %v1727, %v1824
        %v1857 = vsub.f32 %v1728, %v1825
        %v1858 = vsub.f32 %v1729, %v1826
        %v1859 = vsub.f32 %v1730, %v1827
        %v1860 = vsub.f32 %v1731, %v1828
        %v1861 = vsub.f32 %v1732, %v1829
        %v1862 = vsub.f32 %v1733, %v1830
        %v1863 = vsub.f32 %v1734, %v1831
        %v1864 = vsub.f32 %v1735, %v1832
        %v1865 = vsub.f32 %v1736, %v1833
        %v1866 = vsub.f32 %v1737, %v1834
        %v1867 = vsub.f32 %v1738, %v1835
        %v1868 = vsub.f32 %v1739, %v1836
        %v1869 = vsub.f32 %v1740, %v1837
        %v1870 = vsub.f32 %v1741, %v1838
        %v1871 = vsub.f32 %v1742, %v1839
        %v1872 = vsub.f32 %v1743, %v1840
        %v1873 = vsub.f32 %v1744, %v1841
        %v1874 = vsub.f32 %v1745, %v1842
        %v1875 = vsub.f32 %v1746, %v1843
        %v1876 = vsub.f32 %v1747, %v1844
        %v1877 = vsub.f32 %v1748, %v1845
        %v1878 = vsub.f32 %v1749, %v1846
        %v1879 = vsub.f32 %v1750, %v1847
        %v1880 = vsub.f32 %v1751, %v1848
        %v1881 = vsub.f32 %v1752, %v1849
        %v1882 = vsub.f32 %v1753, %v1850
        %v1883 = vmul.f32 %v1851, %v1851
        %v1884 = vmul.f32 %v1852, %v1852
        %v1885 = vmul.f32 %v1853, %v1853
        %v1886 = vmul.f32 %v1854, %v1854
        %v1887 = vmul.f32 %v1855, %v1855
        %v1888 = vmul.f32 %v1856, %v1856
        %v1889 = vmul.f32 %v1857, %v1857
        %v1890 = vmul.f32 %v1858, %v1858
        %v1891 = vmul.f32 %v1859, %v1859
        %v1892 = vmul.f32 %v1860, %v1860
        %v1893 = vmul.f32 %v1861, %v1861
        %v1894 = vmul.f32 %v1862, %v1862
        %v1895 = vmul.f32 %v1863, %v1863
        %v1896 = vmul.f32 %v1864, %v1864
        %v1897 = vmul.f32 %v1865, %v1865
        %v1898 = vmul.f32 %v1866, %v1866
        %v1899 = vmul.f32 %v1867, %v1867
        %v1900 = vmul.f32 %v1868, %v1868
        %v1901 = vmul.f32 %v1869, %v1869
        %v1902 = vmul.f32 %v1870, %v1870
        %v1903 = vmul.f32 %v1871, %v1871
        %v1904 = vmul.f32 %v1872, %v1872
        %v1905 = vmul.f32 %v1873, %v1873
        %v1906 = vmul.f32 %v1874, %v1874
        %v1907 = vmul.f32 %v1875, %v1875
        %v1908 = vmul.f32 %v1876, %v1876
        %v1909 = vmul.f32 %v1877, %v1877
        %v1910 = vmul.f32 %v1878, %v1878
        %v1911 = vmul.f32 %v1879, %v1879
        %v1912 = vmul.f32 %v1880, %v1880
        %v1913 = vmul.f32 %v1881, %v1881
        %v1914 = vmul.f32 %v1882, %v1882
        %1915 = vadd.xlane.f32.xlu0 %v1883
        %v1916 = vpop.xlane.xlu0 %1915
        %1917 = vadd.xlane.f32.xlu0 %v1884
        %v1918 = vpop.xlane.xlu0 %1917
        %1919 = vadd.xlane.f32.xlu0 %v1885
        %v1920 = vpop.xlane.xlu0 %1919
        %1921 = vadd.xlane.f32.xlu0 %v1886
        %v1922 = vpop.xlane.xlu0 %1921
        %1923 = vadd.xlane.f32.xlu0 %v1887
        %v1924 = vpop.xlane.xlu0 %1923
        %1925 = vadd.xlane.f32.xlu0 %v1888
        %v1926 = vpop.xlane.xlu0 %1925
        %1927 = vadd.xlane.f32.xlu0 %v1889
        %v1928 = vpop.xlane.xlu0 %1927
        %1929 = vadd.xlane.f32.xlu0 %v1890
        %v1930 = vpop.xlane.xlu0 %1929
        %1931 = vadd.xlane.f32.xlu0 %v1891
        %v1932 = vpop.xlane.xlu0 %1931
        %1933 = vadd.xlane.f32.xlu0 %v1892
        %v1934 = vpop.xlane.xlu0 %1933
        %1935 = vadd.xlane.f32.xlu0 %v1893
        %v1936 = vpop.xlane.xlu0 %1935
        %1937 = vadd.xlane.f32.xlu0 %v1894
        %v1938 = vpop.xlane.xlu0 %1937
        %1939 = vadd.xlane.f32.xlu0 %v1895
        %v1940 = vpop.xlane.xlu0 %1939
        %1941 = vadd.xlane.f32.xlu0 %v1896
        %v1942 = vpop.xlane.xlu0 %1941
        %1943 = vadd.xlane.f32.xlu0 %v1897
        %v1944 = vpop.xlane.xlu0 %1943
        %1945 = vadd.xlane.f32.xlu0 %v1898
        %v1946 = vpop.xlane.xlu0 %1945
        %1947 = vadd.xlane.f32.xlu0 %v1899
        %v1948 = vpop.xlane.xlu0 %1947
        %1949 = vadd.xlane.f32.xlu0 %v1900
        %v1950 = vpop.xlane.xlu0 %1949
        %1951 = vadd.xlane.f32.xlu0 %v1901
        %v1952 = vpop.xlane.xlu0 %1951
        %1953 = vadd.xlane.f32.xlu0 %v1902
        %v1954 = vpop.xlane.xlu0 %1953
        %1955 = vadd.xlane.f32.xlu0 %v1903
        %v1956 = vpop.xlane.xlu0 %1955
        %1957 = vadd.xlane.f32.xlu0 %v1904
        %v1958 = vpop.xlane.xlu0 %1957
        %1959 = vadd.xlane.f32.xlu0 %v1905
        %v1960 = vpop.xlane.xlu0 %1959
        %1961 = vadd.xlane.f32.xlu0 %v1906
        %v1962 = vpop.xlane.xlu0 %1961
        %1963 = vadd.xlane.f32.xlu0 %v1907
        %v1964 = vpop.xlane.xlu0 %1963
        %1965 = vadd.xlane.f32.xlu0 %v1908
        %v1966 = vpop.xlane.xlu0 %1965
        %1967 = vadd.xlane.f32.xlu0 %v1909
        %v1968 = vpop.xlane.xlu0 %1967
        %1969 = vadd.xlane.f32.xlu0 %v1910
        %v1970 = vpop.xlane.xlu0 %1969
        %1971 = vadd.xlane.f32.xlu0 %v1911
        %v1972 = vpop.xlane.xlu0 %1971
        %1973 = vadd.xlane.f32.xlu0 %v1912
        %v1974 = vpop.xlane.xlu0 %1973
        %1975 = vadd.xlane.f32.xlu0 %v1913
        %v1976 = vpop.xlane.xlu0 %1975
        %1977 = vadd.xlane.f32.xlu0 %v1914
        %v1978 = vpop.xlane.xlu0 %1977
        %v1979 = vmul.f32 %v1916, %v1818
        %v1980 = vmul.f32 %v1918, %v1818
        %v1981 = vmul.f32 %v1920, %v1818
        %v1982 = vmul.f32 %v1922, %v1818
        %v1983 = vmul.f32 %v1924, %v1818
        %v1984 = vmul.f32 %v1926, %v1818
        %v1985 = vmul.f32 %v1928, %v1818
        %v1986 = vmul.f32 %v1930, %v1818
        %v1987 = vmul.f32 %v1932, %v1818
        %v1988 = vmul.f32 %v1934, %v1818
        %v1989 = vmul.f32 %v1936, %v1818
        %v1990 = vmul.f32 %v1938, %v1818
        %v1991 = vmul.f32 %v1940, %v1818
        %v1992 = vmul.f32 %v1942, %v1818
        %v1993 = vmul.f32 %v1944, %v1818
        %v1994 = vmul.f32 %v1946, %v1818
        %v1995 = vmul.f32 %v1948, %v1818
        %v1996 = vmul.f32 %v1950, %v1818
        %v1997 = vmul.f32 %v1952, %v1818
        %v1998 = vmul.f32 %v1954, %v1818
        %v1999 = vmul.f32 %v1956, %v1818
        %v2000 = vmul.f32 %v1958, %v1818
        %v2001 = vmul.f32 %v1960, %v1818
        %v2002 = vmul.f32 %v1962, %v1818
        %v2003 = vmul.f32 %v1964, %v1818
        %v2004 = vmul.f32 %v1966, %v1818
        %v2005 = vmul.f32 %v1968, %v1818
        %v2006 = vmul.f32 %v1970, %v1818
        %v2007 = vmul.f32 %v1972, %v1818
        %v2008 = vmul.f32 %v1974, %v1818
        %v2009 = vmul.f32 %v1976, %v1818
        %v2010 = vmul.f32 %v1978, %v1818
        %v2011 = vadd.f32 %v1979, 1e-12
        %v2012 = vadd.f32 %v1980, 1e-12
        %v2013 = vadd.f32 %v1981, 1e-12
        %v2014 = vadd.f32 %v1982, 1e-12
        %v2015 = vadd.f32 %v1983, 1e-12
        %v2016 = vadd.f32 %v1984, 1e-12
        %v2017 = vadd.f32 %v1985, 1e-12
        %v2018 = vadd.f32 %v1986, 1e-12
        %v2019 = vadd.f32 %v1987, 1e-12
        %v2020 = vadd.f32 %v1988, 1e-12
        %v2021 = vadd.f32 %v1989, 1e-12
        %v2022 = vadd.f32 %v1990, 1e-12
        %v2023 = vadd.f32 %v1991, 1e-12
        %v2024 = vadd.f32 %v1992, 1e-12
        %v2025 = vadd.f32 %v1993, 1e-12
        %v2026 = vadd.f32 %v1994, 1e-12
        %v2027 = vadd.f32 %v1995, 1e-12
        %v2028 = vadd.f32 %v1996, 1e-12
        %v2029 = vadd.f32 %v1997, 1e-12
        %v2030 = vadd.f32 %v1998, 1e-12
        %v2031 = vadd.f32 %v1999, 1e-12
        %v2032 = vadd.f32 %v2000, 1e-12
        %v2033 = vadd.f32 %v2001, 1e-12
        %v2034 = vadd.f32 %v2002, 1e-12
        %v2035 = vadd.f32 %v2003, 1e-12
        %v2036 = vadd.f32 %v2004, 1e-12
        %v2037 = vadd.f32 %v2005, 1e-12
        %v2038 = vadd.f32 %v2006, 1e-12
        %v2039 = vadd.f32 %v2007, 1e-12
        %v2040 = vadd.f32 %v2008, 1e-12
        %v2041 = vadd.f32 %v2009, 1e-12
        %v2042 = vadd.f32 %v2010, 1e-12
        %v2043 = vrsqrt.pop %v2011
        %v2044 = vrsqrt.pop %v2012
        %v2045 = vrsqrt.pop %v2013
        %v2046 = vrsqrt.pop %v2014
        %v2047 = vrsqrt.pop %v2015
        %v2048 = vrsqrt.pop %v2016
        %v2049 = vrsqrt.pop %v2017
        %v2050 = vrsqrt.pop %v2018
        %v2051 = vrsqrt.pop %v2019
        %v2052 = vrsqrt.pop %v2020
        %v2053 = vrsqrt.pop %v2021
        %v2054 = vrsqrt.pop %v2022
        %v2055 = vrsqrt.pop %v2023
        %v2056 = vrsqrt.pop %v2024
        %v2057 = vrsqrt.pop %v2025
        %v2058 = vrsqrt.pop %v2026
        %v2059 = vrsqrt.pop %v2027
        %v2060 = vrsqrt.pop %v2028
        %v2061 = vrsqrt.pop %v2029
        %v2062 = vrsqrt.pop %v2030
        %v2063 = vrsqrt.pop %v2031
        %v2064 = vrsqrt.pop %v2032
        %v2065 = vrsqrt.pop %v2033
        %v2066 = vrsqrt.pop %v2034
        %v2067 = vrsqrt.pop %v2035
        %v2068 = vrsqrt.pop %v2036
        %v2069 = vrsqrt.pop %v2037
        %v2070 = vrsqrt.pop %v2038
        %v2071 = vrsqrt.pop %v2039
        %v2072 = vrsqrt.pop %v2040
        %v2073 = vrsqrt.pop %v2041
        %v2074 = vrsqrt.pop %v2042
        %v2075 = vmul.f32 %v1851, %v2043
        %v2076 = vmul.f32 %v1852, %v2044
        %v2077 = vmul.f32 %v1853, %v2045
        %v2078 = vmul.f32 %v1854, %v2046
        %v2079 = vmul.f32 %v1855, %v2047
        %v2080 = vmul.f32 %v1856, %v2048
        %v2081 = vmul.f32 %v1857, %v2049
        %v2082 = vmul.f32 %v1858, %v2050
        %v2083 = vmul.f32 %v1859, %v2051
        %v2084 = vmul.f32 %v1860, %v2052
        %v2085 = vmul.f32 %v1861, %v2053
        %v2086 = vmul.f32 %v1862, %v2054
        %v2087 = vmul.f32 %v1863, %v2055
        %v2088 = vmul.f32 %v1864, %v2056
        %v2089 = vmul.f32 %v1865, %v2057
        %v2090 = vmul.f32 %v1866, %v2058
        %v2091 = vmul.f32 %v1867, %v2059
        %v2092 = vmul.f32 %v1868, %v2060
        %v2093 = vmul.f32 %v1869, %v2061
        %v2094 = vmul.f32 %v1870, %v2062
        %v2095 = vmul.f32 %v1871, %v2063
        %v2096 = vmul.f32 %v1872, %v2064
        %v2097 = vmul.f32 %v1873, %v2065
        %v2098 = vmul.f32 %v1874, %v2066
        %v2099 = vmul.f32 %v1875, %v2067
        %v2100 = vmul.f32 %v1876, %v2068
        %v2101 = vmul.f32 %v1877, %v2069
        %v2102 = vmul.f32 %v1878, %v2070
        %v2103 = vmul.f32 %v1879, %v2071
        %v2104 = vmul.f32 %v1880, %v2072
        %v2105 = vmul.f32 %v1881, %v2073
        %v2106 = vmul.f32 %v1882, %v2074
        %v2107 = vld [vmem:[%s5] sm:$0x1]
        %v2109 = vlaneseq
        %v2110 = vshrl.u32 %v2109, 7
        %v2111 = vsub.s32 0, %v2110
        %v2112 = vrot.slane %v2107, %v2111
        %v2114 = vmul.f32 %v2075, %v2112
        %v2115 = vmul.f32 %v2076, %v2112
        %v2116 = vmul.f32 %v2077, %v2112
        %v2117 = vmul.f32 %v2078, %v2112
        %v2118 = vmul.f32 %v2079, %v2112
        %v2119 = vmul.f32 %v2080, %v2112
        %v2120 = vmul.f32 %v2081, %v2112
        %v2121 = vmul.f32 %v2082, %v2112
        %v2122 = vmul.f32 %v2083, %v2112
        %v2123 = vmul.f32 %v2084, %v2112
        %v2124 = vmul.f32 %v2085, %v2112
        %v2125 = vmul.f32 %v2086, %v2112
        %v2126 = vmul.f32 %v2087, %v2112
        %v2127 = vmul.f32 %v2088, %v2112
        %v2128 = vmul.f32 %v2089, %v2112
        %v2129 = vmul.f32 %v2090, %v2112
        %v2130 = vmul.f32 %v2091, %v2112
        %v2131 = vmul.f32 %v2092, %v2112
        %v2132 = vmul.f32 %v2093, %v2112
        %v2133 = vmul.f32 %v2094, %v2112
        %v2134 = vmul.f32 %v2095, %v2112
        %v2135 = vmul.f32 %v2096, %v2112
        %v2136 = vmul.f32 %v2097, %v2112
        %v2137 = vmul.f32 %v2098, %v2112
        %v2138 = vmul.f32 %v2099, %v2112
        %v2139 = vmul.f32 %v2100, %v2112
        %v2140 = vmul.f32 %v2101, %v2112
        %v2141 = vmul.f32 %v2102, %v2112
        %v2142 = vmul.f32 %v2103, %v2112
        %v2143 = vmul.f32 %v2104, %v2112
        %v2144 = vmul.f32 %v2105, %v2112
        %v2145 = vmul.f32 %v2106, %v2112
        %v2146 = vld [vmem:[%s6] sm:$0x1]
        %v2148 = vlaneseq
        %v2149 = vshrl.u32 %v2148, 7
        %v2150 = vsub.s32 0, %v2149
        %v2151 = vrot.slane %v2146, %v2150
        %v2153 = vadd.f32 %v2114, %v2151
        %v2154 = vadd.f32 %v2115, %v2151
        %v2155 = vadd.f32 %v2116, %v2151
        %v2156 = vadd.f32 %v2117, %v2151
        %v2157 = vadd.f32 %v2118, %v2151
        %v2158 = vadd.f32 %v2119, %v2151
        %v2159 = vadd.f32 %v2120, %v2151
        %v2160 = vadd.f32 %v2121, %v2151
        %v2161 = vadd.f32 %v2122, %v2151
        %v2162 = vadd.f32 %v2123, %v2151
        %v2163 = vadd.f32 %v2124, %v2151
        %v2164 = vadd.f32 %v2125, %v2151
        %v2165 = vadd.f32 %v2126, %v2151
        %v2166 = vadd.f32 %v2127, %v2151
        %v2167 = vadd.f32 %v2128, %v2151
        %v2168 = vadd.f32 %v2129, %v2151
        %v2169 = vadd.f32 %v2130, %v2151
        %v2170 = vadd.f32 %v2131, %v2151
        %v2171 = vadd.f32 %v2132, %v2151
        %v2172 = vadd.f32 %v2133, %v2151
        %v2173 = vadd.f32 %v2134, %v2151
        %v2174 = vadd.f32 %v2135, %v2151
        %v2175 = vadd.f32 %v2136, %v2151
        %v2176 = vadd.f32 %v2137, %v2151
        %v2177 = vadd.f32 %v2138, %v2151
        %v2178 = vadd.f32 %v2139, %v2151
        %v2179 = vadd.f32 %v2140, %v2151
        %v2180 = vadd.f32 %v2141, %v2151
        %v2181 = vadd.f32 %v2142, %v2151
        %v2182 = vadd.f32 %v2143, %v2151
        %v2183 = vadd.f32 %v2144, %v2151
        %v2184 = vadd.f32 %v2145, %v2151
        %2185 = vst [vmem:[%s267] sm:$0xff] %v2153
        %2186 = vst [vmem:[%s267 + $0x8] sm:$0xff] %v2154
        %2187 = vst [vmem:[%s267 + $0x10] sm:$0xff] %v2155
        %2188 = vst [vmem:[%s267 + $0x18] sm:$0xff] %v2156
        %2189 = vst [vmem:[%s267 + $0x20] sm:$0xff] %v2157
        %2190 = vst [vmem:[%s267 + $0x28] sm:$0xff] %v2158
        %2191 = vst [vmem:[%s267 + $0x30] sm:$0xff] %v2159
        %2192 = vst [vmem:[%s267 + $0x38] sm:$0xff] %v2160
        %2193 = vst [vmem:[%s267 + $0x40] sm:$0xff] %v2161
        %2194 = vst [vmem:[%s267 + $0x48] sm:$0xff] %v2162
        %2195 = vst [vmem:[%s267 + $0x50] sm:$0xff] %v2163
        %2196 = vst [vmem:[%s267 + $0x58] sm:$0xff] %v2164
        %2197 = vst [vmem:[%s267 + $0x60] sm:$0xff] %v2165
        %2198 = vst [vmem:[%s267 + $0x68] sm:$0xff] %v2166
        %2199 = vst [vmem:[%s267 + $0x70] sm:$0xff] %v2167
        %2200 = vst [vmem:[%s267 + $0x78] sm:$0xff] %v2168
        %2201 = vst [vmem:[%s267 + $0x80] sm:$0xff] %v2169
        %2202 = vst [vmem:[%s267 + $0x88] sm:$0xff] %v2170
        %2203 = vst [vmem:[%s267 + $0x90] sm:$0xff] %v2171
        %2204 = vst [vmem:[%s267 + $0x98] sm:$0xff] %v2172
        %2205 = vst [vmem:[%s267 + $0xa0] sm:$0xff] %v2173
        %2206 = vst [vmem:[%s267 + $0xa8] sm:$0xff] %v2174
        %2207 = vst [vmem:[%s267 + $0xb0] sm:$0xff] %v2175
        %2208 = vst [vmem:[%s267 + $0xb8] sm:$0xff] %v2176
        %2209 = vst [vmem:[%s267 + $0xc0] sm:$0xff] %v2177
        %2210 = vst [vmem:[%s267 + $0xc8] sm:$0xff] %v2178
        %2211 = vst [vmem:[%s267 + $0xd0] sm:$0xff] %v2179
        %2212 = vst [vmem:[%s267 + $0xd8] sm:$0xff] %v2180
        %2213 = vst [vmem:[%s267 + $0xe0] sm:$0xff] %v2181
        %2214 = vst [vmem:[%s267 + $0xe8] sm:$0xff] %v2182
        %2215 = vst [vmem:[%s267 + $0xf0] sm:$0xff] %v2183
        %2216 = vst [vmem:[%s267 + $0xf8] sm:$0xff] %v2184
        %s2217 = sand.u32 %s166, 1
        %s2218 = scalar_lea.sflag [#allocation8], %s2217
        %s2219 = sand.u32 %s166, 1
        %s2220 = smul.addr %s2219, 256
        %s2221 = scalar_lea.vmem [#allocation9], %s2220
        // Predicated region
        $region547: #{tpu_custom_call.1} parent=39 // pred_check
          %p2222 = pneg %p176
        $region548: #{tpu_custom_call.1} parent=39 // pred_check_branch
          %2224 = sbr.rel (%p2222) target = $region550
        $region549: #{tpu_custom_call.1} parent=39 // pred_region
          %s2225 = smul.u32 %s32, 2
          %s2226 = sadd.s32 %s2225, %s33
          %s2227 = smul.u32 32, %s2226
          %s2229 = ssub.s32 4096, 4096
          %2230 = vsyncadd %s2218, %s2229
          %s2231 = smul.addr %s2227, 128
          %s2232 = scalar_lea.hbm %s7, %s2231
          %s2233 = sshll.u32 %s2221, 4
          %s2234 = int_to_ptr.vmem [resolvable:$true] %s2233
          %2239 = dma.vmem_to_hbm [thread:$0]  %s2234, 4096, %s2232, %s2218, 128, 128, 8
        $region550: #{tpu_custom_call.1} parent=39 // pred_fallthru
          _
      $region40: #{tpu_custom_call.1} parent=5 // pred_fallthru
        _
      %p2240 = scmp.le.s32.totalorder 2, %s23
      // Predicated region
      $region551: #{tpu_custom_call.1} parent=5 // pred_check
        %p2241 = pneg %p2240
      $region552: #{tpu_custom_call.1} parent=5 // pred_check_branch
        %2243 = sbr.rel (%p2241) target = $region554
      $region553: #{tpu_custom_call.1} parent=5 // pred_region
        %s2244 = ssub.s32 %s23, 2
        // Predicated region
        $region555: #{tpu_custom_call.1} parent=553 // pred_check
          %p2245 = pneg %p182
        $region556: #{tpu_custom_call.1} parent=553 // pred_check_branch
          %2247 = sbr.rel (%p2245) target = $region558
        $region557: #{tpu_custom_call.1} parent=553 // pred_region
          %s2248 = sand.u32 %s167, 1
          %s2249 = scalar_lea.sflag [#allocation8], %s2248
          %s2250 = sand.u32 %s167, 1
          %s2251 = smul.addr %s2250, 256
          %s2252 = scalar_lea.vmem [#allocation9], %s2251
          %2253 = dma.done %s2249, 4096
        $region558: #{tpu_custom_call.1} parent=553 // pred_fallthru
          _
      $region554: #{tpu_custom_call.1} parent=5 // pred_fallthru
        _
    $region6: #{tpu_custom_call.1} parent=1 // loop_footer
      %s27 = sadd.s32 1, %s23
    $region7: #{tpu_custom_call.1} parent=1 // loop_footer_branch
      %22 = sbr.rel target = $region3
    $region8: #{tpu_custom_call.1} parent=1 // loop_exit
      _
    %2254 = vsyncpa [#allocation7], 1
    %s2255 = scalar_lea.sflag [#allocation7], 1
    %2256 = vsyncpa %s2255, 1
    %2257 = vsyncpa [#allocation8], 1
    %s2258 = scalar_lea.sflag [#allocation8], 1
    %2259 = vsyncpa %s2258, 1
  %2260 = vsyncmov [#allocation3]
  %s2261 = vpop.sfrf %2260
  %p2262 = scmp.eq.s32.totalorder %s2261, 0
  %p2263 = pneg %p2262
  %2265 = shalt.err (%p2263)
  %s2266 = scalar_lea.sflag [#allocation3], 1
  %2267 = vsyncmov %s2266
  %s2268 = vpop.sfrf %2267
  %p2269 = scmp.eq.s32.totalorder %s2268, 0
  %p2270 = pneg %p2269
  %2272 = shalt.err (%p2270)

</llo_original>
